<compile_context>
chip_gen: v7x
topology: tpu7x:2x2x1
jax: 0.10.0
libtpu: 0.0.40
codegen_flags: <defaults>
</compile_context>

<pallas_src>
import math
import functools

import jax
import jax.numpy as jnp
from jax.experimental import pallas as pl
from jax.experimental.pallas import tpu as pltpu


NC_PAD = 128          # classes padded to a full lane width for lane-dense stores


def _vmem_limit_bytes():
    # Generation-aware scoped-VMEM budget: ~3/4 of physical (v5e/v6e: 96 MiB of 128 MiB,
    # v7x: 48 MiB of 64 MiB).  Falls back to a v7x-safe 48 MiB if the query is unavailable.
    try:
        cap = int(pltpu.get_tpu_info().vmem_capacity_bytes)
    except Exception:
        return 48 * 1024 * 1024
    return min((cap * 3) // 4, 96 * 1024 * 1024)


VMEM_LIMIT = _vmem_limit_bytes()


# ---------------------------------------------------------------------------
# Kernel 1: fused shapelet branch (all shapelet lengths + classifier), grid over batch blocks.
#   refs: x(Bb, C, T+L_max), bank(N_total, L_max*C) bf16, ssq(N_total, 1),
#         cls_w(N_total, NC_PAD), cls_b(1, NC_PAD), out(Bb, 1, NC_PAD)
# ---------------------------------------------------------------------------
def make_shapelet_kernel(groups, C, T, L_max, Bb):
    K = L_max * C

    def kernel(x_ref, bank_ref, ssq_ref, cls_w_ref, cls_b_ref, o_ref):
        bank = bank_ref[...]              # (N_total, K) bf16, resident across the grid
        ssq = ssq_ref[...]                # (N_total, 1)  precomputed ||s||^2
        cls_w = cls_w_ref[...]            # (N_total, NC_PAD)
        cls_b = cls_b_ref[...]            # (1, NC_PAD)

        for b in range(Bb):
            xb = x_ref[b]                 # (C, T + L_max) f32, zero-padded past T
            # Shifted-view stack (equivalent to pltpu.roll on the zero-padded tile):
            # x_stk[l*C + c, w] = xb[c, w + l]  -> ONE MXU matmul against the whole bank
            # instead of building a (W, C*L) im2col matrix row by row.
            x_stk = jnp.concatenate([xb[:, l:l + T] for l in range(L_max)], axis=0)  # (K, T)
            cross = jnp.dot(bank, x_stk.astype(jnp.bfloat16),
                            preferred_element_type=jnp.float32)                       # (N_total, T)
            x2 = x_stk * x_stk                                                        # f32

            feats = []
            for (L, off, n_l) in groups:
                # ||x_win||^2 for this length = sum of the first L*C shifted rows of x^2.
                xsq = jnp.sum(x2[:L * C], axis=0, keepdims=True)                      # (1, T)
                d = (xsq - 2.0 * cross[off:off + n_l] + ssq[off:off + n_l]) \
                    * (1.0 / float(C * L))
                w_valid = T - L + 1
                lane = jax.lax.broadcasted_iota(jnp.int32, (n_l, T), 1)
                d = jnp.where(lane < w_valid, d, jnp.inf)       # mask windows hitting the pad
                feats.append(jnp.min(d, axis=-1, keepdims=True))                      # (n_l, 1)
            f = jnp.concatenate(feats, axis=0)                                        # (N_total, 1)

            # Classifier: logits[k] = sum_n f[n] * W[n, k] (VPU mul + sublane reduce; avoids a
            # transposed-operand matmul for the tiny feature vector).
            logits = jnp.sum(f * cls_w, axis=0, keepdims=True) + cls_b               # (1, NC_PAD)
            o_ref[b] = logits

    return kernel


def shapelet_branch(x, kp, *, groups, l_max, block_b):
    B, C, T = x.shape
    t_pad = T + l_max
    x_pad = jnp.pad(x, ((0, 0), (0, 0), (0, l_max)))
    kernel = make_shapelet_kernel(groups, C, T, l_max, block_b)

    return pl.pallas_call(
        kernel,
        grid=(B // block_b,),
        in_specs=[
            pl.BlockSpec((block_b, C, t_pad), lambda i: (i, 0, 0)),
            pl.BlockSpec(kp['shp_bank'].shape, lambda i: (0, 0)),     # resident weights
            pl.BlockSpec(kp['shp_ssq'].shape, lambda i: (0, 0)),
            pl.BlockSpec(kp['shp_cls_w'].shape, lambda i: (0, 0)),
            pl.BlockSpec(kp['shp_cls_b'].shape, lambda i: (0, 0)),
        ],
        out_specs=pl.BlockSpec((block_b, 1, NC_PAD), lambda i: (i, 0, 0)),
        out_shape=jax.ShapeDtypeStruct((B, 1, NC_PAD), jnp.float32),
        compiler_params=pltpu.CompilerParams(
            dimension_semantics=("parallel",),
            vmem_limit_bytes=VMEM_LIMIT),
    )(x_pad, kp['shp_bank'], kp['shp_ssq'], kp['shp_cls_w'], kp['shp_cls_b'])


# ---------------------------------------------------------------------------
# Kernel 2: channel proj + pos-enc prologue, transformer encoder stack (post-LN, ReLU FFN),
#           mean-pool + classifier + weighted fusion + fusion Linear epilogue.
#   grid = (B // Bb, num_layers); activations live in a VMEM scratch across the layer axis.
#   Per layer step: 3 packed weight-slab DMAs (matA, matB, vec) instead of 16 tensors.
# ---------------------------------------------------------------------------
def make_encoder_stack_kernel(nhead, d_model, dim_ff, Bb, T, eps=1e-5):
    D, F, H = d_model, dim_ff, nhead
    dh = D // H
    scale = 1.0 / math.sqrt(dh)

    # lane offsets inside the packed slabs
    oa_qkv, oa_o, oa_1 = 0, 3 * D, 4 * D                      # matA: [Wqkv | Wo | W1]
    widths = [3 * D, D, F, D, D, D, D, D]                     # vec:  [bqkv|bo|b1|b2|g1|be1|g2|be2]
    offs, acc = [], 0
    for w in widths:
        offs.append(acc)
        acc += w
    ov_bqkv, ov_bo, ov_b1, ov_b2, ov_g1, ov_be1, ov_g2, ov_be2 = offs

    def kernel(x_ref, s_ref, fw_ref, pw_ref, pb_ref, pe_ref,
               mat_a_ref, mat_b_ref, vec_ref,
               tfw_ref, tfb_ref, flw_ref, flb_ref,
               o_ref, h_scr):
        layer = pl.program_id(1)
        n_layers = pl.num_programs(1)

        @pl.when(layer == 0)
        def _():
            # Fused channel projection + positional encoding: stream raw (Bb,T,C) instead of a
            # precomputed (Bb,T,D) activation through HBM.
            xc = x_ref[...]                                            # (Bb, T, C)
            x2 = xc.reshape(Bb * T, xc.shape[-1])
            h0 = jnp.dot(x2, pw_ref[...], preferred_element_type=jnp.float32) + pb_ref[...]
            h_scr[...] = h0.reshape(Bb, T, D) + pe_ref[...][None]

        h = h_scr[...]                                                 # (Bb, T, D) f32, resident
        x2d = h.reshape(Bb * T, D)                                     # batch folded into M
        x_bf = x2d.astype(jnp.bfloat16)

        mat_a = mat_a_ref[0]                                           # (D, 4D+F) bf16
        mat_b = mat_b_ref[0]                                           # (F, D)    bf16
        vec = vec_ref[0]                                               # (1, 8D+F) f32

        # Fused QKV projection: one wide MXU pass over (Bb*T, D) @ (D, 3D).
        qkv = jnp.dot(x_bf, mat_a[:, oa_qkv:oa_qkv + 3 * D],
                      preferred_element_type=jnp.float32) + vec[:, ov_bqkv:ov_bqkv + 3 * D]
        q = qkv[:, 0:D].reshape(Bb, T, D)
        k = qkv[:, D:2 * D].reshape(Bb, T, D)
        v = qkv[:, 2 * D:3 * D].reshape(Bb, T, D)

        # Attention: batched over the Bb rows, static per-head loop.
        # TODO(synk): for long T on v7x (64 MiB VMEM) tile the KV axis (flash-style online softmax).
        ctx_heads = []
        for hh in range(H):
            sl = slice(hh * dh, (hh + 1) * dh)
            qh = q[:, :, sl].astype(jnp.bfloat16)
            kh = k[:, :, sl].astype(jnp.bfloat16)
            vh = v[:, :, sl].astype(jnp.bfloat16)
            s = jnp.einsum('btd,bsd->bts', qh, kh,
                           preferred_element_type=jnp.float32) * scale
            s = s - jnp.max(s, axis=-1, keepdims=True)
            p = jnp.exp(s)
            p = p * pl.reciprocal(jnp.sum(p, axis=-1, keepdims=True), approx=True)
            ctx_heads.append(jnp.einsum('bts,bsd->btd', p.astype(jnp.bfloat16), vh,
                                        preferred_element_type=jnp.float32))
        ctx = jnp.concatenate(ctx_heads, axis=-1).reshape(Bb * T, D)

        attn = jnp.dot(ctx.astype(jnp.bfloat16), mat_a[:, oa_o:oa_o + D],
                       preferred_element_type=jnp.float32) + vec[:, ov_bo:ov_bo + D]

        def layer_norm(val, g, b):                                     # stats in f32
            m = jnp.mean(val, axis=-1, keepdims=True)
            c = val - m
            var = jnp.mean(c * c, axis=-1, keepdims=True)
            return c * jax.lax.rsqrt(var + eps) * g + b

        h1 = layer_norm(x2d + attn, vec[:, ov_g1:ov_g1 + D], vec[:, ov_be1:ov_be1 + D])
        ff = jnp.maximum(
            jnp.dot(h1.astype(jnp.bfloat16), mat_a[:, oa_1:oa_1 + F],
                    preferred_element_type=jnp.float32) + vec[:, ov_b1:ov_b1 + F], 0.0)
        ff = jnp.dot(ff.astype(jnp.bfloat16), mat_b,
                     preferred_element_type=jnp.float32) + vec[:, ov_b2:ov_b2 + D]
        h_new = layer_norm(h1 + ff, vec[:, ov_g2:ov_g2 + D], vec[:, ov_be2:ov_be2 + D])
        h_scr[...] = h_new.reshape(Bb, T, D)

        # Epilogue fused into the last layer step: pool -> classifier -> weighted fusion -> Linear.
        @pl.when(layer == n_layers - 1)
        def _():
            pooled = jnp.mean(h_new.reshape(Bb, T, D), axis=1)                          # (Bb, D)
            t_log = jnp.dot(pooled, tfw_ref[...],
                            preferred_element_type=jnp.float32) + tfb_ref[...]          # (Bb, NC_PAD)
            s2d = jnp.concatenate([s_ref[b] for b in range(Bb)], axis=0)                # (Bb, NC_PAD)
            fused = fw_ref[0] * s2d + fw_ref[1] * t_log
            out = jnp.dot(fused, flw_ref[...],
                          preferred_element_type=jnp.float32) + flb_ref[...]            # (Bb, NC_PAD)
            for b in range(Bb):
                o_ref[b] = out[b:b + 1, :]

    return kernel


def transformer_and_fusion(x_t, s_logits, fw_soft, kp, *, nhead, block_b):
    B, T, C = x_t.shape
    D = kp['proj_w'].shape[1]
    F = kp['matB'].shape[1]
    n_layers = kp['matA'].shape[0]
    kernel = make_encoder_stack_kernel(nhead, D, F, block_b, T)

    # TODO(synk): on v6e (128 MiB VMEM) small models fit all layers resident — the layer grid axis
    # could be collapsed into an in-kernel fori_loop to remove per-step grid overhead.
    in_specs = [
        pl.BlockSpec((block_b, T, C), lambda i, l: (i, 0, 0)),        # raw input, fetched once/blk
        pl.BlockSpec((block_b, 1, NC_PAD), lambda i, l: (i, 0, 0)),   # shapelet logits (padded)
        pl.BlockSpec(memory_space=pltpu.MemorySpace.SMEM),            # softmaxed fusion weights (2,)
        pl.BlockSpec(kp['proj_w'].shape, lambda i, l: (0, 0)),        # resident prologue weights
        pl.BlockSpec(kp['proj_b'].shape, lambda i, l: (0, 0)),
        pl.BlockSpec(kp['pos_enc'].shape, lambda i, l: (0, 0)),
        pl.BlockSpec((1,) + kp['matA'].shape[1:], lambda i, l: (l, 0, 0)),   # 3 packed layer slabs
        pl.BlockSpec((1,) + kp['matB'].shape[1:], lambda i, l: (l, 0, 0)),
        pl.BlockSpec((1,) + kp['vecC'].shape[1:], lambda i, l: (l, 0, 0)),
        pl.BlockSpec(kp['tf_cls_w'].shape, lambda i, l: (0, 0)),      # resident epilogue weights
        pl.BlockSpec(kp['tf_cls_b'].shape, lambda i, l: (0, 0)),
        pl.BlockSpec(kp['fuse_lin_w'].shape, lambda i, l: (0, 0)),
        pl.BlockSpec(kp['fuse_lin_b'].shape, lambda i, l: (0, 0)),
    ]
    inputs = [x_t, s_logits, fw_soft, kp['proj_w'], kp['proj_b'], kp['pos_enc'],
              kp['matA'], kp['matB'], kp['vecC'],
              kp['tf_cls_w'], kp['tf_cls_b'], kp['fuse_lin_w'], kp['fuse_lin_b']]

    return pl.pallas_call(
        kernel,
        grid=(B // block_b, n_layers),
        in_specs=in_specs,
        out_specs=pl.BlockSpec((block_b, 1, NC_PAD), lambda i, l: (i, 0, 0)),
        out_shape=jax.ShapeDtypeStruct((B, 1, NC_PAD), jnp.float32),
        scratch_shapes=[pltpu.VMEM((block_b, T, D), jnp.float32)],
        compiler_params=pltpu.CompilerParams(
            dimension_semantics=("parallel", "arbitrary"),
            vmem_limit_bytes=VMEM_LIMIT),
    )(*inputs)


# ---------------------------------------------------------------------------
# Parameter construction (deterministic, synthetic), stored directly in kernel-friendly layout:
# pre-transposed Linear weights (in, out); one concatenated shapelet bank (bf16); per-layer
# weights packed into 3 stacked slabs (matrices in bf16, biases/LN in f32); classifier / fusion
# weights zero-padded to NC_PAD output lanes.
# ---------------------------------------------------------------------------
def sinusoidal_pe(seq_len, d_model):
    pos = jnp.arange(seq_len, dtype=jnp.float32)[:, None]
    i = jnp.arange(d_model, dtype=jnp.float32)[None, :]
    angle = pos / jnp.power(10000.0, (2.0 * jnp.floor(i / 2.0)) / d_model)
    return jnp.where((jnp.arange(d_model) % 2) == 0,
                     jnp.sin(angle), jnp.cos(angle)).astype(jnp.float32)


def init_params(key, shapelets_size_and_len, seq_len, in_channels,
                num_classes, d_model, nhead, num_layers, dim_ff):
    keys = iter(jax.random.split(key, 128))

    def rnd(shape, scale=0.1):
        return (scale * jax.random.normal(next(keys), shape)).astype(jnp.float32)

    def pad_last(a, n):
        return jnp.pad(a, [(0, 0)] * (a.ndim - 1) + [(0, n - a.shape[-1])])

    p = {}
    C, D, F = in_channels, d_model, dim_ff
    lengths = tuple(sorted(shapelets_size_and_len))
    l_max = max(lengths)
    K = l_max * C

    # ---- shapelet branch: single concatenated bank (rows ordered l*C + c to match the
    # in-kernel shifted-view stack), short shapelets zero-padded along the length dim ----
    bank_rows, ssq_rows, off = [], [], 0
    for L in lengths:
        n_l = shapelets_size_and_len[L]
        s = rnd((n_l, C, L))
        b = jnp.transpose(s, (0, 2, 1)).reshape(n_l, L * C)
        bank_rows.append(jnp.pad(b, ((0, 0), (0, K - L * C))))
        ssq_rows.append(jnp.sum(s * s, axis=(1, 2))[:, None])
        off += n_l
    n_total = off
    p['shp_bank'] = jnp.concatenate(bank_rows, axis=0).astype(jnp.bfloat16)   # (N_total, K)
    p['shp_ssq'] = jnp.concatenate(ssq_rows, axis=0)                          # (N_total, 1)
    p['shp_cls_w'] = pad_last(jnp.transpose(rnd((num_classes, n_total))), NC_PAD)
    p['shp_cls_b'] = pad_last(rnd((1, num_classes)), NC_PAD)

    # ---- transformer branch ----
    p['proj_w'] = jnp.transpose(rnd((D, C)))                                  # (C, D)
    p['proj_b'] = rnd((1, D))
    p['pos_enc'] = sinusoidal_pe(seq_len, D)

    mat_a, mat_b, vec_c = [], [], []
    for _ in range(num_layers):
        wq, wk, wv = (jnp.transpose(rnd((D, D))) for _ in range(3))
        wo = jnp.transpose(rnd((D, D)))
        w1 = jnp.transpose(rnd((F, D)))                                       # (D, F)
        w2 = jnp.transpose(rnd((D, F)))                                       # (F, D)
        bq, bk, bv, bo = rnd((1, D)), rnd((1, D)), rnd((1, D)), rnd((1, D))
        b1, b2 = rnd((1, F)), rnd((1, D))
        g1 = jnp.ones((1, D), jnp.float32)
        be1 = jnp.zeros((1, D), jnp.float32)
        g2 = jnp.ones((1, D), jnp.float32)
        be2 = jnp.zeros((1, D), jnp.float32)
        mat_a.append(jnp.concatenate([wq, wk, wv, wo, w1], axis=1))           # (D, 4D+F)
        mat_b.append(w2)                                                      # (F, D)
        vec_c.append(jnp.concatenate([bq, bk, bv, bo, b1, b2, g1, be1, g2, be2], axis=1))
    p['matA'] = jnp.stack(mat_a).astype(jnp.bfloat16)                         # (L, D, 4D+F)
    p['matB'] = jnp.stack(mat_b).astype(jnp.bfloat16)                         # (L, F, D)
    p['vecC'] = jnp.stack(vec_c)                                              # (L, 1, 8D+F) f32

    p['tf_cls_w'] = pad_last(jnp.transpose(rnd((num_classes, D))), NC_PAD)    # (D, NC_PAD)
    p['tf_cls_b'] = pad_last(rnd((1, num_classes)), NC_PAD)

    # ---- fusion head (fusion_weights = randn(2), fusion_layer = Linear(C, C)) ----
    p['fusion_w'] = jax.random.normal(next(keys), (2,)).astype(jnp.float32)
    fl_w = jnp.transpose(rnd((num_classes, num_classes)))
    p['fuse_lin_w'] = jnp.pad(fl_w, ((0, NC_PAD - num_classes), (0, NC_PAD - num_classes)))
    p['fuse_lin_b'] = pad_last(rnd((1, num_classes)), NC_PAD)
    return p


# ---------------------------------------------------------------------------
# Forward pass (2 pallas_calls; tiny prologue ops in plain jnp).
# ---------------------------------------------------------------------------
def multi_branch_forward(x, kp, *, shapelets_size_and_len, num_classes, nhead):
    B, C, T = x.shape
    x = x.astype(jnp.float32)

    lengths = tuple(sorted(shapelets_size_and_len))
    l_max = max(lengths)
    groups, off = [], 0
    for L in lengths:
        groups.append((L, off, shapelets_size_and_len[L]))
        off += shapelets_size_and_len[L]
    groups = tuple(groups)

    # Batch blocking: largest divisor of B up to 8 rows per grid step.
    # TODO(synk): on v7x keep >= 2 steps on the parallel batch axis so both TensorCores get work.
    block_b = max(d for d in (8, 4, 2, 1) if B % d == 0)

    # Shapelet branch (fused kernel over batch blocks).
    s_logits = shapelet_branch(x, kp, groups=groups, l_max=l_max, block_b=block_b)

    # Transformer branch: stream the raw (B, T, C) input; projection + pos-enc happen in-kernel.
    x_t = jnp.swapaxes(x, 1, 2)                                   # (B, T, C)
    fw_soft = jax.nn.softmax(kp['fusion_w']).astype(jnp.float32)  # softmax over the 2 fusion params

    out = transformer_and_fusion(x_t, s_logits, fw_soft, kp, nhead=nhead, block_b=block_b)
    return out[:, 0, :num_classes]


# ---------------------------------------------------------------------------
if __name__ == "__main__":
    B, C, T = 2, 1, 16
    num_classes, d_model, nhead, num_layers, dim_ff = 2, 4, 2, 4, 16
    shapelets_size_and_len = {4: 3, 8: 2}

    key = jax.random.PRNGKey(0)
    k_x, k_p = jax.random.split(key)
    x = jax.random.normal(k_x, (B, C, T), dtype=jnp.float32)

    params = init_params(k_p, shapelets_size_and_len, T, C,
                         num_classes, d_model, nhead, num_layers, dim_ff)

    fwd = jax.jit(functools.partial(
        multi_branch_forward,
        shapelets_size_and_len=shapelets_size_and_len,
        num_classes=num_classes,
        nhead=nhead))

    out = fwd(x, params)
    out = jax.block_until_ready(out)
    assert out.shape == (B, num_classes) and out.dtype == jnp.float32
    assert bool(jnp.all(jnp.isfinite(out)))
    print("KERNEL_OK")
</pallas_src>

<mosaic_0001>
module attributes {stable_mosaic.version = 11 : i64} {
  func.func @kernel(%arg0: i32, %arg1: memref<2x1x24xf32, #tpu.memory_space<vmem>>, %arg2: memref<5x8xbf16, #tpu.memory_space<vmem>>, %arg3: memref<5x1xf32, #tpu.memory_space<vmem>>, %arg4: memref<5x128xf32, #tpu.memory_space<vmem>>, %arg5: memref<1x128xf32, #tpu.memory_space<vmem>>, %arg6: memref<2x1x128xf32, #tpu.memory_space<vmem>>) attributes {dimension_semantics = [#tpu.dimension_semantics<parallel>], iteration_bounds = array<i64: 1>, scalar_prefetch = 0 : i64, scratch_operands = 0 : i64, tpu.core_type = #tpu.core_type<tc>, window_params = [{transform_indices = @transform_0, window_bounds = array<i64: 2, 1, 24>}, {pipeline_mode = #tpu.pipeline_mode<synchronous>, transform_indices = @transform_1, window_bounds = array<i64: 5, 8>}, {pipeline_mode = #tpu.pipeline_mode<synchronous>, transform_indices = @transform_2, window_bounds = array<i64: 5, 1>}, {pipeline_mode = #tpu.pipeline_mode<synchronous>, transform_indices = @transform_3, window_bounds = array<i64: 5, 128>}, {pipeline_mode = #tpu.pipeline_mode<synchronous>, transform_indices = @transform_4, window_bounds = array<i64: 1, 128>}, {transform_indices = @transform_5, window_bounds = array<i64: 2, 1, 128>}]} {
    %c0 = arith.constant 0 : index
    %c0_0 = arith.constant 0 : index
    %0 = vector.load %arg2[%c0, %c0_0] : memref<5x8xbf16, #tpu.memory_space<vmem>>, vector<5x8xbf16>
    %c0_1 = arith.constant 0 : index
    %c0_2 = arith.constant 0 : index
    %1 = vector.load %arg3[%c0_1, %c0_2] : memref<5x1xf32, #tpu.memory_space<vmem>>, vector<5x1xf32>
    %c0_3 = arith.constant 0 : index
    %c0_4 = arith.constant 0 : index
    %2 = vector.load %arg4[%c0_3, %c0_4] : memref<5x128xf32, #tpu.memory_space<vmem>>, vector<5x128xf32>
    %c0_5 = arith.constant 0 : index
    %c0_6 = arith.constant 0 : index
    %3 = vector.load %arg5[%c0_5, %c0_6] : memref<1x128xf32, #tpu.memory_space<vmem>>, vector<1x128xf32>
    %c0_7 = arith.constant 0 : index
    %c0_8 = arith.constant 0 : index
    %c0_9 = arith.constant 0 : index
    %4 = vector.load %arg1[%c0_7, %c0_8, %c0_9] : memref<2x1x24xf32, #tpu.memory_space<vmem>>, vector<1x1x24xf32>
    %5 = vector.shape_cast %4 : vector<1x1x24xf32> to vector<1x24xf32>
    %6 = vector.extract_strided_slice %5 {offsets = [0, 0], sizes = [1, 16], strides = [1, 1]} : vector<1x24xf32> to vector<1x16xf32>
    %7 = vector.extract_strided_slice %5 {offsets = [0, 1], sizes = [1, 16], strides = [1, 1]} : vector<1x24xf32> to vector<1x16xf32>
    %8 = vector.extract_strided_slice %5 {offsets = [0, 2], sizes = [1, 16], strides = [1, 1]} : vector<1x24xf32> to vector<1x16xf32>
    %9 = vector.extract_strided_slice %5 {offsets = [0, 3], sizes = [1, 16], strides = [1, 1]} : vector<1x24xf32> to vector<1x16xf32>
    %10 = vector.extract_strided_slice %5 {offsets = [0, 4], sizes = [1, 16], strides = [1, 1]} : vector<1x24xf32> to vector<1x16xf32>
    %11 = vector.extract_strided_slice %5 {offsets = [0, 5], sizes = [1, 16], strides = [1, 1]} : vector<1x24xf32> to vector<1x16xf32>
    %12 = vector.extract_strided_slice %5 {offsets = [0, 6], sizes = [1, 16], strides = [1, 1]} : vector<1x24xf32> to vector<1x16xf32>
    %13 = vector.extract_strided_slice %5 {offsets = [0, 7], sizes = [1, 16], strides = [1, 1]} : vector<1x24xf32> to vector<1x16xf32>
    %14 = tpu.concatenate %6, %7, %8, %9, %10, %11, %12, %13 in 0 : vector<1x16xf32>, vector<1x16xf32>, vector<1x16xf32>, vector<1x16xf32>, vector<1x16xf32>, vector<1x16xf32>, vector<1x16xf32>, vector<1x16xf32> -> vector<8x16xf32>
    %15 = arith.truncf %14 : vector<8x16xf32> to vector<8x16xbf16>
    %cst = arith.constant dense<0.000000e+00> : vector<5x16xf32>
    %16 = tpu.matmul %0, %15, %cst {dimension_numbers = #tpu.dot_dimension_numbers<[1], [0], [0], [1], [0, 0, 1, 1], [], []>} : vector<5x8xbf16>, vector<8x16xbf16>, vector<5x16xf32> -> vector<5x16xf32>
    %17 = arith.mulf %14, %14 : vector<8x16xf32>
    %18 = vector.extract_strided_slice %17 {offsets = [0, 0], sizes = [4, 16], strides = [1, 1]} : vector<8x16xf32> to vector<4x16xf32>
    %cst_10 = arith.constant dense<0.000000e+00> : vector<16xf32>
    %19 = vector.multi_reduction <add>, %18, %cst_10 [0] : vector<4x16xf32> to vector<16xf32>
    %20 = vector.shape_cast %19 : vector<16xf32> to vector<1x16xf32>
    %21 = vector.extract_strided_slice %16 {offsets = [0, 0], sizes = [3, 16], strides = [1, 1]} : vector<5x16xf32> to vector<3x16xf32>
    %cst_11 = arith.constant 2.000000e+00 : f32
    %22 = vector.broadcast %cst_11 : f32 to vector<3x16xf32>
    %23 = arith.mulf %22, %21 : vector<3x16xf32>
    %24 = vector.broadcast %20 : vector<1x16xf32> to vector<3x16xf32>
    %25 = arith.subf %24, %23 : vector<3x16xf32>
    %26 = vector.extract_strided_slice %1 {offsets = [0, 0], sizes = [3, 1], strides = [1, 1]} : vector<5x1xf32> to vector<3x1xf32>
    %27 = vector.broadcast %26 : vector<3x1xf32> to vector<3x16xf32>
    %28 = arith.addf %25, %27 : vector<3x16xf32>
    %cst_12 = arith.constant 2.500000e-01 : f32
    %29 = vector.broadcast %cst_12 : f32 to vector<3x16xf32>
    %30 = arith.mulf %28, %29 : vector<3x16xf32>
    %31 = tpu.iota {dimensions = array<i32: 1>} : vector<3x16xi32>
    %c13_i32 = arith.constant 13 : i32
    %32 = vector.broadcast %c13_i32 : i32 to vector<3x16xi32>
    %33 = arith.cmpi slt, %31, %32 : vector<3x16xi32>
    %cst_13 = arith.constant 0x7F800000 : f32
    %34 = vector.broadcast %cst_13 : f32 to vector<3x16xf32>
    %35 = arith.select %33, %30, %34 : vector<3x16xi1>, vector<3x16xf32>
    %cst_14 = arith.constant dense<0x7F800000> : vector<3xf32>
    %36 = vector.multi_reduction <minimumf>, %35, %cst_14 [1] : vector<3x16xf32> to vector<3xf32>
    %37 = vector.shape_cast %36 : vector<3xf32> to vector<3x1xf32>
    %cst_15 = arith.constant dense<0.000000e+00> : vector<16xf32>
    %38 = vector.multi_reduction <add>, %17, %cst_15 [0] : vector<8x16xf32> to vector<16xf32>
    %39 = vector.shape_cast %38 : vector<16xf32> to vector<1x16xf32>
    %40 = vector.extract_strided_slice %16 {offsets = [3, 0], sizes = [2, 16], strides = [1, 1]} : vector<5x16xf32> to vector<2x16xf32>
    %cst_16 = arith.constant 2.000000e+00 : f32
    %41 = vector.broadcast %cst_16 : f32 to vector<2x16xf32>
    %42 = arith.mulf %41, %40 : vector<2x16xf32>
    %43 = vector.broadcast %39 : vector<1x16xf32> to vector<2x16xf32>
    %44 = arith.subf %43, %42 : vector<2x16xf32>
    %45 = vector.extract_strided_slice %1 {offsets = [3, 0], sizes = [2, 1], strides = [1, 1]} : vector<5x1xf32> to vector<2x1xf32>
    %46 = vector.broadcast %45 : vector<2x1xf32> to vector<2x16xf32>
    %47 = arith.addf %44, %46 : vector<2x16xf32>
    %cst_17 = arith.constant 1.250000e-01 : f32
    %48 = vector.broadcast %cst_17 : f32 to vector<2x16xf32>
    %49 = arith.mulf %47, %48 : vector<2x16xf32>
    %50 = tpu.iota {dimensions = array<i32: 1>} : vector<2x16xi32>
    %c9_i32 = arith.constant 9 : i32
    %51 = vector.broadcast %c9_i32 : i32 to vector<2x16xi32>
    %52 = arith.cmpi slt, %50, %51 : vector<2x16xi32>
    %cst_18 = arith.constant 0x7F800000 : f32
    %53 = vector.broadcast %cst_18 : f32 to vector<2x16xf32>
    %54 = arith.select %52, %49, %53 : vector<2x16xi1>, vector<2x16xf32>
    %cst_19 = arith.constant dense<0x7F800000> : vector<2xf32>
    %55 = vector.multi_reduction <minimumf>, %54, %cst_19 [1] : vector<2x16xf32> to vector<2xf32>
    %56 = vector.shape_cast %55 : vector<2xf32> to vector<2x1xf32>
    %57 = tpu.concatenate %37, %56 in 0 : vector<3x1xf32>, vector<2x1xf32> -> vector<5x1xf32>
    %58 = vector.broadcast %57 : vector<5x1xf32> to vector<5x128xf32>
    %59 = arith.mulf %58, %2 : vector<5x128xf32>
    %cst_20 = arith.constant dense<0.000000e+00> : vector<128xf32>
    %60 = vector.multi_reduction <add>, %59, %cst_20 [0] : vector<5x128xf32> to vector<128xf32>
    %61 = vector.shape_cast %60 : vector<128xf32> to vector<1x128xf32>
    %62 = arith.addf %61, %3 : vector<1x128xf32>
    %c0_21 = arith.constant 0 : index
    %c0_22 = arith.constant 0 : index
    %c0_23 = arith.constant 0 : index
    %63 = vector.load %arg6[%c0_21, %c0_22, %c0_23] : memref<2x1x128xf32, #tpu.memory_space<vmem>>, vector<1x1x128xf32>
    %64 = vector.shape_cast %63 : vector<1x1x128xf32> to vector<1x128xf32>
    %65 = vector.shape_cast %62 : vector<1x128xf32> to vector<1x1x128xf32>
    tpu.vector_store %arg6[%c0_21, %c0_22, %c0_23], %65 {strides = array<i32>} : memref<2x1x128xf32, #tpu.memory_space<vmem>>, vector<1x1x128xf32>,
    %c1 = arith.constant 1 : index
    %c0_24 = arith.constant 0 : index
    %c0_25 = arith.constant 0 : index
    %66 = vector.load %arg1[%c1, %c0_24, %c0_25] : memref<2x1x24xf32, #tpu.memory_space<vmem>>, vector<1x1x24xf32>
    %67 = vector.shape_cast %66 : vector<1x1x24xf32> to vector<1x24xf32>
    %68 = vector.extract_strided_slice %67 {offsets = [0, 0], sizes = [1, 16], strides = [1, 1]} : vector<1x24xf32> to vector<1x16xf32>
    %69 = vector.extract_strided_slice %67 {offsets = [0, 1], sizes = [1, 16], strides = [1, 1]} : vector<1x24xf32> to vector<1x16xf32>
    %70 = vector.extract_strided_slice %67 {offsets = [0, 2], sizes = [1, 16], strides = [1, 1]} : vector<1x24xf32> to vector<1x16xf32>
    %71 = vector.extract_strided_slice %67 {offsets = [0, 3], sizes = [1, 16], strides = [1, 1]} : vector<1x24xf32> to vector<1x16xf32>
    %72 = vector.extract_strided_slice %67 {offsets = [0, 4], sizes = [1, 16], strides = [1, 1]} : vector<1x24xf32> to vector<1x16xf32>
    %73 = vector.extract_strided_slice %67 {offsets = [0, 5], sizes = [1, 16], strides = [1, 1]} : vector<1x24xf32> to vector<1x16xf32>
    %74 = vector.extract_strided_slice %67 {offsets = [0, 6], sizes = [1, 16], strides = [1, 1]} : vector<1x24xf32> to vector<1x16xf32>
    %75 = vector.extract_strided_slice %67 {offsets = [0, 7], sizes = [1, 16], strides = [1, 1]} : vector<1x24xf32> to vector<1x16xf32>
    %76 = tpu.concatenate %68, %69, %70, %71, %72, %73, %74, %75 in 0 : vector<1x16xf32>, vector<1x16xf32>, vector<1x16xf32>, vector<1x16xf32>, vector<1x16xf32>, vector<1x16xf32>, vector<1x16xf32>, vector<1x16xf32> -> vector<8x16xf32>
    %77 = arith.truncf %76 : vector<8x16xf32> to vector<8x16xbf16>
    %cst_26 = arith.constant dense<0.000000e+00> : vector<5x16xf32>
    %78 = tpu.matmul %0, %77, %cst_26 {dimension_numbers = #tpu.dot_dimension_numbers<[1], [0], [0], [1], [0, 0, 1, 1], [], []>} : vector<5x8xbf16>, vector<8x16xbf16>, vector<5x16xf32> -> vector<5x16xf32>
    %79 = arith.mulf %76, %76 : vector<8x16xf32>
    %80 = vector.extract_strided_slice %79 {offsets = [0, 0], sizes = [4, 16], strides = [1, 1]} : vector<8x16xf32> to vector<4x16xf32>
    %cst_27 = arith.constant dense<0.000000e+00> : vector<16xf32>
    %81 = vector.multi_reduction <add>, %80, %cst_27 [0] : vector<4x16xf32> to vector<16xf32>
    %82 = vector.shape_cast %81 : vector<16xf32> to vector<1x16xf32>
    %83 = vector.extract_strided_slice %78 {offsets = [0, 0], sizes = [3, 16], strides = [1, 1]} : vector<5x16xf32> to vector<3x16xf32>
    %cst_28 = arith.constant 2.000000e+00 : f32
    %84 = vector.broadcast %cst_28 : f32 to vector<3x16xf32>
    %85 = arith.mulf %84, %83 : vector<3x16xf32>
    %86 = vector.broadcast %82 : vector<1x16xf32> to vector<3x16xf32>
    %87 = arith.subf %86, %85 : vector<3x16xf32>
    %88 = vector.extract_strided_slice %1 {offsets = [0, 0], sizes = [3, 1], strides = [1, 1]} : vector<5x1xf32> to vector<3x1xf32>
    %89 = vector.broadcast %88 : vector<3x1xf32> to vector<3x16xf32>
    %90 = arith.addf %87, %89 : vector<3x16xf32>
    %cst_29 = arith.constant 2.500000e-01 : f32
    %91 = vector.broadcast %cst_29 : f32 to vector<3x16xf32>
    %92 = arith.mulf %90, %91 : vector<3x16xf32>
    %93 = tpu.iota {dimensions = array<i32: 1>} : vector<3x16xi32>
    %c13_i32_30 = arith.constant 13 : i32
    %94 = vector.broadcast %c13_i32_30 : i32 to vector<3x16xi32>
    %95 = arith.cmpi slt, %93, %94 : vector<3x16xi32>
    %cst_31 = arith.constant 0x7F800000 : f32
    %96 = vector.broadcast %cst_31 : f32 to vector<3x16xf32>
    %97 = arith.select %95, %92, %96 : vector<3x16xi1>, vector<3x16xf32>
    %cst_32 = arith.constant dense<0x7F800000> : vector<3xf32>
    %98 = vector.multi_reduction <minimumf>, %97, %cst_32 [1] : vector<3x16xf32> to vector<3xf32>
    %99 = vector.shape_cast %98 : vector<3xf32> to vector<3x1xf32>
    %cst_33 = arith.constant dense<0.000000e+00> : vector<16xf32>
    %100 = vector.multi_reduction <add>, %79, %cst_33 [0] : vector<8x16xf32> to vector<16xf32>
    %101 = vector.shape_cast %100 : vector<16xf32> to vector<1x16xf32>
    %102 = vector.extract_strided_slice %78 {offsets = [3, 0], sizes = [2, 16], strides = [1, 1]} : vector<5x16xf32> to vector<2x16xf32>
    %cst_34 = arith.constant 2.000000e+00 : f32
    %103 = vector.broadcast %cst_34 : f32 to vector<2x16xf32>
    %104 = arith.mulf %103, %102 : vector<2x16xf32>
    %105 = vector.broadcast %101 : vector<1x16xf32> to vector<2x16xf32>
    %106 = arith.subf %105, %104 : vector<2x16xf32>
    %107 = vector.extract_strided_slice %1 {offsets = [3, 0], sizes = [2, 1], strides = [1, 1]} : vector<5x1xf32> to vector<2x1xf32>
    %108 = vector.broadcast %107 : vector<2x1xf32> to vector<2x16xf32>
    %109 = arith.addf %106, %108 : vector<2x16xf32>
    %cst_35 = arith.constant 1.250000e-01 : f32
    %110 = vector.broadcast %cst_35 : f32 to vector<2x16xf32>
    %111 = arith.mulf %109, %110 : vector<2x16xf32>
    %112 = tpu.iota {dimensions = array<i32: 1>} : vector<2x16xi32>
    %c9_i32_36 = arith.constant 9 : i32
    %113 = vector.broadcast %c9_i32_36 : i32 to vector<2x16xi32>
    %114 = arith.cmpi slt, %112, %113 : vector<2x16xi32>
    %cst_37 = arith.constant 0x7F800000 : f32
    %115 = vector.broadcast %cst_37 : f32 to vector<2x16xf32>
    %116 = arith.select %114, %111, %115 : vector<2x16xi1>, vector<2x16xf32>
    %cst_38 = arith.constant dense<0x7F800000> : vector<2xf32>
    %117 = vector.multi_reduction <minimumf>, %116, %cst_38 [1] : vector<2x16xf32> to vector<2xf32>
    %118 = vector.shape_cast %117 : vector<2xf32> to vector<2x1xf32>
    %119 = tpu.concatenate %99, %118 in 0 : vector<3x1xf32>, vector<2x1xf32> -> vector<5x1xf32>
    %120 = vector.broadcast %119 : vector<5x1xf32> to vector<5x128xf32>
    %121 = arith.mulf %120, %2 : vector<5x128xf32>
    %cst_39 = arith.constant dense<0.000000e+00> : vector<128xf32>
    %122 = vector.multi_reduction <add>, %121, %cst_39 [0] : vector<5x128xf32> to vector<128xf32>
    %123 = vector.shape_cast %122 : vector<128xf32> to vector<1x128xf32>
    %124 = arith.addf %123, %3 : vector<1x128xf32>
    %c1_40 = arith.constant 1 : index
    %c0_41 = arith.constant 0 : index
    %c0_42 = arith.constant 0 : index
    %125 = vector.load %arg6[%c1_40, %c0_41, %c0_42] : memref<2x1x128xf32, #tpu.memory_space<vmem>>, vector<1x1x128xf32>
    %126 = vector.shape_cast %125 : vector<1x1x128xf32> to vector<1x128xf32>
    %127 = vector.shape_cast %124 : vector<1x128xf32> to vector<1x1x128xf32>
    tpu.vector_store %arg6[%c1_40, %c0_41, %c0_42], %127 {strides = array<i32>} : memref<2x1x128xf32, #tpu.memory_space<vmem>>, vector<1x1x128xf32>,
    return
  }
  func.func @transform_0(%arg0: i32) -> (i32, i32, i32) {
    %c0_i32 = arith.constant 0 : i32
    %c0_i32_0 = arith.constant 0 : i32
    %c0_i32_1 = arith.constant 0 : i32
    return %arg0, %c0_i32, %c0_i32_0 : i32, i32, i32
  }
  func.func @transform_1(%arg0: i32) -> (i32, i32) {
    %c0_i32 = arith.constant 0 : i32
    %c0_i32_0 = arith.constant 0 : i32
    %c0_i32_1 = arith.constant 0 : i32
    return %c0_i32, %c0_i32_0 : i32, i32
  }
  func.func @transform_2(%arg0: i32) -> (i32, i32) {
    %c0_i32 = arith.constant 0 : i32
    %c0_i32_0 = arith.constant 0 : i32
    %c0_i32_1 = arith.constant 0 : i32
    return %c0_i32, %c0_i32_0 : i32, i32
  }
  func.func @transform_3(%arg0: i32) -> (i32, i32) {
    %c0_i32 = arith.constant 0 : i32
    %c0_i32_0 = arith.constant 0 : i32
    %c0_i32_1 = arith.constant 0 : i32
    return %c0_i32, %c0_i32_0 : i32, i32
  }
  func.func @transform_4(%arg0: i32) -> (i32, i32) {
    %c0_i32 = arith.constant 0 : i32
    %c0_i32_0 = arith.constant 0 : i32
    %c0_i32_1 = arith.constant 0 : i32
    return %c0_i32, %c0_i32_0 : i32, i32
  }
  func.func @transform_5(%arg0: i32) -> (i32, i32, i32) {
    %c0_i32 = arith.constant 0 : i32
    %c0_i32_0 = arith.constant 0 : i32
    %c0_i32_1 = arith.constant 0 : i32
    return %arg0, %c0_i32, %c0_i32_0 : i32, i32, i32
  }
}

module attributes {stable_mosaic.version = 11 : i64} {
  func.func @kernel(%arg0: i32, %arg1: i32, %arg2: memref<2x16x1xf32, #tpu.memory_space<vmem>>, %arg3: memref<2x1x128xf32, #tpu.memory_space<vmem>>, %arg4: memref<2xf32, #tpu.memory_space<smem>>, %arg5: memref<1x4xf32, #tpu.memory_space<vmem>>, %arg6: memref<1x4xf32, #tpu.memory_space<vmem>>, %arg7: memref<16x4xf32, #tpu.memory_space<vmem>>, %arg8: memref<1x4x32xbf16, #tpu.memory_space<vmem>>, %arg9: memref<1x16x4xbf16, #tpu.memory_space<vmem>>, %arg10: memref<1x1x52xf32, #tpu.memory_space<vmem>>, %arg11: memref<4x128xf32, #tpu.memory_space<vmem>>, %arg12: memref<1x128xf32, #tpu.memory_space<vmem>>, %arg13: memref<128x128xf32, #tpu.memory_space<vmem>>, %arg14: memref<1x128xf32, #tpu.memory_space<vmem>>, %arg15: memref<2x1x128xf32, #tpu.memory_space<vmem>>, %arg16: memref<2x16x4xf32, #tpu.memory_space<vmem>>) attributes {dimension_semantics = [#tpu.dimension_semantics<parallel>, #tpu.dimension_semantics<arbitrary>], iteration_bounds = array<i64: 1, 4>, scalar_prefetch = 0 : i64, scratch_operands = 1 : i64, tpu.core_type = #tpu.core_type<tc>, window_params = [{transform_indices = @transform_0, window_bounds = array<i64: 2, 16, 1>}, {transform_indices = @transform_1, window_bounds = array<i64: 2, 1, 128>}, {transform_indices = @transform_2, window_bounds = array<i64: 2>}, {pipeline_mode = #tpu.pipeline_mode<synchronous>, transform_indices = @transform_3, window_bounds = array<i64: 1, 4>}, {pipeline_mode = #tpu.pipeline_mode<synchronous>, transform_indices = @transform_4, window_bounds = array<i64: 1, 4>}, {pipeline_mode = #tpu.pipeline_mode<synchronous>, transform_indices = @transform_5, window_bounds = array<i64: 16, 4>}, {transform_indices = @transform_6, window_bounds = array<i64: 1, 4, 32>}, {transform_indices = @transform_7, window_bounds = array<i64: 1, 16, 4>}, {transform_indices = @transform_8, window_bounds = array<i64: 1, 1, 52>}, {pipeline_mode = #tpu.pipeline_mode<synchronous>, transform_indices = @transform_9, window_bounds = array<i64: 4, 128>}, {pipeline_mode = #tpu.pipeline_mode<synchronous>, transform_indices = @transform_10, window_bounds = array<i64: 1, 128>}, {pipeline_mode = #tpu.pipeline_mode<synchronous>, transform_indices = @transform_11, window_bounds = array<i64: 128, 128>}, {pipeline_mode = #tpu.pipeline_mode<synchronous>, transform_indices = @transform_12, window_bounds = array<i64: 1, 128>}, {transform_indices = @transform_13, window_bounds = array<i64: 2, 1, 128>}]} {
    %c0_i32 = arith.constant 0 : i32
    %0 = arith.cmpi eq, %arg1, %c0_i32 : i32
    %1 = arith.extui %0 : i1 to i32
    %c0_i32_0 = arith.constant 0 : i32
    %2 = arith.cmpi ne, %1, %c0_i32_0 : i32
    scf.if %2 {
      %c0_40 = arith.constant 0 : index
      %c0_41 = arith.constant 0 : index
      %c0_42 = arith.constant 0 : index
      %137 = vector.load %arg2[%c0_40, %c0_41, %c0_42] : memref<2x16x1xf32, #tpu.memory_space<vmem>>, vector<2x16x1xf32>
      %138 = vector.shape_cast %137 : vector<2x16x1xf32> to vector<32x1xf32>
      %c0_43 = arith.constant 0 : index
      %c0_44 = arith.constant 0 : index
      %139 = vector.load %arg5[%c0_43, %c0_44] : memref<1x4xf32, #tpu.memory_space<vmem>>, vector<1x4xf32>
      %cst_45 = arith.constant dense<0.000000e+00> : vector<32x4xf32>
      %140 = tpu.matmul %138, %139, %cst_45 {dimension_numbers = #tpu.dot_dimension_numbers<[1], [0], [0], [1], [0, 0, 1, 1], [], []>} : vector<32x1xf32>, vector<1x4xf32>, vector<32x4xf32> -> vector<32x4xf32>
      %c0_46 = arith.constant 0 : index
      %c0_47 = arith.constant 0 : index
      %141 = vector.load %arg6[%c0_46, %c0_47] : memref<1x4xf32, #tpu.memory_space<vmem>>, vector<1x4xf32>
      %142 = vector.broadcast %141 : vector<1x4xf32> to vector<32x4xf32>
      %143 = arith.addf %140, %142 : vector<32x4xf32>
      %144 = vector.shape_cast %143 : vector<32x4xf32> to vector<2x16x4xf32>
      %c0_48 = arith.constant 0 : index
      %c0_49 = arith.constant 0 : index
      %145 = vector.load %arg7[%c0_48, %c0_49] : memref<16x4xf32, #tpu.memory_space<vmem>>, vector<16x4xf32>
      %146 = vector.shape_cast %145 : vector<16x4xf32> to vector<1x16x4xf32>
      %147 = vector.broadcast %146 : vector<1x16x4xf32> to vector<2x16x4xf32>
      %148 = arith.addf %144, %147 : vector<2x16x4xf32>
      %c0_50 = arith.constant 0 : index
      %c0_51 = arith.constant 0 : index
      %c0_52 = arith.constant 0 : index
      %149 = vector.load %arg16[%c0_50, %c0_51, %c0_52] : memref<2x16x4xf32, #tpu.memory_space<vmem>>, vector<2x16x4xf32>
      tpu.vector_store %arg16[%c0_50, %c0_51, %c0_52], %148 {strides = array<i32>} : memref<2x16x4xf32, #tpu.memory_space<vmem>>, vector<2x16x4xf32>,
    } else {
    }
    %c0 = arith.constant 0 : index
    %c0_1 = arith.constant 0 : index
    %c0_2 = arith.constant 0 : index
    %3 = vector.load %arg16[%c0, %c0_1, %c0_2] : memref<2x16x4xf32, #tpu.memory_space<vmem>>, vector<2x16x4xf32>
    %4 = vector.shape_cast %3 : vector<2x16x4xf32> to vector<32x4xf32>
    %5 = arith.truncf %4 : vector<32x4xf32> to vector<32x4xbf16>
    %c0_3 = arith.constant 0 : index
    %c0_4 = arith.constant 0 : index
    %c0_5 = arith.constant 0 : index
    %6 = vector.load %arg8[%c0_3, %c0_4, %c0_5] : memref<1x4x32xbf16, #tpu.memory_space<vmem>>, vector<1x4x32xbf16>
    %7 = vector.shape_cast %6 : vector<1x4x32xbf16> to vector<4x32xbf16>
    %c0_6 = arith.constant 0 : index
    %c0_7 = arith.constant 0 : index
    %c0_8 = arith.constant 0 : index
    %8 = vector.load %arg9[%c0_6, %c0_7, %c0_8] : memref<1x16x4xbf16, #tpu.memory_space<vmem>>, vector<1x16x4xbf16>
    %9 = vector.shape_cast %8 : vector<1x16x4xbf16> to vector<16x4xbf16>
    %c0_9 = arith.constant 0 : index
    %c0_10 = arith.constant 0 : index
    %c0_11 = arith.constant 0 : index
    %10 = vector.load %arg10[%c0_9, %c0_10, %c0_11] : memref<1x1x52xf32, #tpu.memory_space<vmem>>, vector<1x1x52xf32>
    %11 = vector.shape_cast %10 : vector<1x1x52xf32> to vector<1x52xf32>
    %12 = vector.extract_strided_slice %7 {offsets = [0, 0], sizes = [4, 12], strides = [1, 1]} : vector<4x32xbf16> to vector<4x12xbf16>
    %cst = arith.constant dense<0.000000e+00> : vector<32x12xf32>
    %13 = tpu.matmul %5, %12, %cst {dimension_numbers = #tpu.dot_dimension_numbers<[1], [0], [0], [1], [0, 0, 1, 1], [], []>} : vector<32x4xbf16>, vector<4x12xbf16>, vector<32x12xf32> -> vector<32x12xf32>
    %14 = vector.extract_strided_slice %11 {offsets = [0, 0], sizes = [1, 12], strides = [1, 1]} : vector<1x52xf32> to vector<1x12xf32>
    %15 = vector.broadcast %14 : vector<1x12xf32> to vector<32x12xf32>
    %16 = arith.addf %13, %15 : vector<32x12xf32>
    %17 = vector.extract_strided_slice %16 {offsets = [0, 0], sizes = [32, 4], strides = [1, 1]} : vector<32x12xf32> to vector<32x4xf32>
    %18 = vector.shape_cast %17 : vector<32x4xf32> to vector<2x16x4xf32>
    %19 = vector.extract_strided_slice %16 {offsets = [0, 4], sizes = [32, 4], strides = [1, 1]} : vector<32x12xf32> to vector<32x4xf32>
    %20 = vector.shape_cast %19 : vector<32x4xf32> to vector<2x16x4xf32>
    %21 = vector.extract_strided_slice %16 {offsets = [0, 8], sizes = [32, 4], strides = [1, 1]} : vector<32x12xf32> to vector<32x4xf32>
    %22 = vector.shape_cast %21 : vector<32x4xf32> to vector<2x16x4xf32>
    %23 = vector.extract_strided_slice %18 {offsets = [0, 0, 0], sizes = [2, 16, 2], strides = [1, 1, 1]} : vector<2x16x4xf32> to vector<2x16x2xf32>
    %24 = arith.truncf %23 : vector<2x16x2xf32> to vector<2x16x2xbf16>
    %25 = vector.extract_strided_slice %20 {offsets = [0, 0, 0], sizes = [2, 16, 2], strides = [1, 1, 1]} : vector<2x16x4xf32> to vector<2x16x2xf32>
    %26 = arith.truncf %25 : vector<2x16x2xf32> to vector<2x16x2xbf16>
    %27 = vector.extract_strided_slice %22 {offsets = [0, 0, 0], sizes = [2, 16, 2], strides = [1, 1, 1]} : vector<2x16x4xf32> to vector<2x16x2xf32>
    %28 = arith.truncf %27 : vector<2x16x2xf32> to vector<2x16x2xbf16>
    "tpu.trace_start"() <{level = 10 : i32, message = "btd,bsd->bts"}> : () -> ()
    %cst_12 = arith.constant dense<0.000000e+00> : vector<2x16x16xf32>
    %29 = tpu.matmul %24, %26, %cst_12 {dimension_numbers = #tpu.dot_dimension_numbers<[2], [2], [1], [1], [0, 0, 0, 1, 1, 1], [0], [0]>} : vector<2x16x2xbf16>, vector<2x16x2xbf16>, vector<2x16x16xf32> -> vector<2x16x16xf32>
    "tpu.trace_stop"() : () -> ()
    %cst_13 = arith.constant 0.707106769 : f32
    %30 = vector.broadcast %cst_13 : f32 to vector<2x16x16xf32>
    %31 = arith.mulf %29, %30 : vector<2x16x16xf32>
    %cst_14 = arith.constant dense<0xFF800000> : vector<2x16xf32>
    %32 = vector.multi_reduction <maximumf>, %31, %cst_14 [2] : vector<2x16x16xf32> to vector<2x16xf32>
    %33 = vector.shape_cast %32 : vector<2x16xf32> to vector<2x16x1xf32>
    %34 = vector.broadcast %33 : vector<2x16x1xf32> to vector<2x16x16xf32>
    %35 = arith.subf %31, %34 : vector<2x16x16xf32>
    %36 = math.exp %35 : vector<2x16x16xf32>
    %cst_15 = arith.constant dense<0.000000e+00> : vector<2x16xf32>
    %37 = vector.multi_reduction <add>, %36, %cst_15 [2] : vector<2x16x16xf32> to vector<2x16xf32>
    %38 = vector.shape_cast %37 : vector<2x16xf32> to vector<2x16x1xf32>
    %39 = tpu.reciprocal %38 {approx = true} : vector<2x16x1xf32> -> vector<2x16x1xf32>
    %40 = vector.broadcast %39 : vector<2x16x1xf32> to vector<2x16x16xf32>
    %41 = arith.mulf %36, %40 : vector<2x16x16xf32>
    %42 = arith.truncf %41 : vector<2x16x16xf32> to vector<2x16x16xbf16>
    "tpu.trace_start"() <{level = 10 : i32, message = "bts,bsd->btd"}> : () -> ()
    %cst_16 = arith.constant dense<0.000000e+00> : vector<2x16x2xf32>
    %43 = tpu.matmul %42, %28, %cst_16 {dimension_numbers = #tpu.dot_dimension_numbers<[2], [1], [1], [2], [0, 0, 0, 1, 1, 2], [0], [0]>} : vector<2x16x16xbf16>, vector<2x16x2xbf16>, vector<2x16x2xf32> -> vector<2x16x2xf32>
    "tpu.trace_stop"() : () -> ()
    %44 = vector.extract_strided_slice %18 {offsets = [0, 0, 2], sizes = [2, 16, 2], strides = [1, 1, 1]} : vector<2x16x4xf32> to vector<2x16x2xf32>
    %45 = arith.truncf %44 : vector<2x16x2xf32> to vector<2x16x2xbf16>
    %46 = vector.extract_strided_slice %20 {offsets = [0, 0, 2], sizes = [2, 16, 2], strides = [1, 1, 1]} : vector<2x16x4xf32> to vector<2x16x2xf32>
    %47 = arith.truncf %46 : vector<2x16x2xf32> to vector<2x16x2xbf16>
    %48 = vector.extract_strided_slice %22 {offsets = [0, 0, 2], sizes = [2, 16, 2], strides = [1, 1, 1]} : vector<2x16x4xf32> to vector<2x16x2xf32>
    %49 = arith.truncf %48 : vector<2x16x2xf32> to vector<2x16x2xbf16>
    "tpu.trace_start"() <{level = 10 : i32, message = "btd,bsd->bts"}> : () -> ()
    %cst_17 = arith.constant dense<0.000000e+00> : vector<2x16x16xf32>
    %50 = tpu.matmul %45, %47, %cst_17 {dimension_numbers = #tpu.dot_dimension_numbers<[2], [2], [1], [1], [0, 0, 0, 1, 1, 1], [0], [0]>} : vector<2x16x2xbf16>, vector<2x16x2xbf16>, vector<2x16x16xf32> -> vector<2x16x16xf32>
    "tpu.trace_stop"() : () -> ()
    %cst_18 = arith.constant 0.707106769 : f32
    %51 = vector.broadcast %cst_18 : f32 to vector<2x16x16xf32>
    %52 = arith.mulf %50, %51 : vector<2x16x16xf32>
    %cst_19 = arith.constant dense<0xFF800000> : vector<2x16xf32>
    %53 = vector.multi_reduction <maximumf>, %52, %cst_19 [2] : vector<2x16x16xf32> to vector<2x16xf32>
    %54 = vector.shape_cast %53 : vector<2x16xf32> to vector<2x16x1xf32>
    %55 = vector.broadcast %54 : vector<2x16x1xf32> to vector<2x16x16xf32>
    %56 = arith.subf %52, %55 : vector<2x16x16xf32>
    %57 = math.exp %56 : vector<2x16x16xf32>
    %cst_20 = arith.constant dense<0.000000e+00> : vector<2x16xf32>
    %58 = vector.multi_reduction <add>, %57, %cst_20 [2] : vector<2x16x16xf32> to vector<2x16xf32>
    %59 = vector.shape_cast %58 : vector<2x16xf32> to vector<2x16x1xf32>
    %60 = tpu.reciprocal %59 {approx = true} : vector<2x16x1xf32> -> vector<2x16x1xf32>
    %61 = vector.broadcast %60 : vector<2x16x1xf32> to vector<2x16x16xf32>
    %62 = arith.mulf %57, %61 : vector<2x16x16xf32>
    %63 = arith.truncf %62 : vector<2x16x16xf32> to vector<2x16x16xbf16>
    "tpu.trace_start"() <{level = 10 : i32, message = "bts,bsd->btd"}> : () -> ()
    %cst_21 = arith.constant dense<0.000000e+00> : vector<2x16x2xf32>
    %64 = tpu.matmul %63, %49, %cst_21 {dimension_numbers = #tpu.dot_dimension_numbers<[2], [1], [1], [2], [0, 0, 0, 1, 1, 2], [0], [0]>} : vector<2x16x16xbf16>, vector<2x16x2xbf16>, vector<2x16x2xf32> -> vector<2x16x2xf32>
    "tpu.trace_stop"() : () -> ()
    %65 = tpu.concatenate %43, %64 in 2 : vector<2x16x2xf32>, vector<2x16x2xf32> -> vector<2x16x4xf32>
    %66 = vector.shape_cast %65 : vector<2x16x4xf32> to vector<32x4xf32>
    %67 = arith.truncf %66 : vector<32x4xf32> to vector<32x4xbf16>
    %68 = vector.extract_strided_slice %7 {offsets = [0, 12], sizes = [4, 4], strides = [1, 1]} : vector<4x32xbf16> to vector<4x4xbf16>
    %cst_22 = arith.constant dense<0.000000e+00> : vector<32x4xf32>
    %69 = tpu.matmul %67, %68, %cst_22 {dimension_numbers = #tpu.dot_dimension_numbers<[1], [0], [0], [1], [0, 0, 1, 1], [], []>} : vector<32x4xbf16>, vector<4x4xbf16>, vector<32x4xf32> -> vector<32x4xf32>
    %70 = vector.extract_strided_slice %11 {offsets = [0, 12], sizes = [1, 4], strides = [1, 1]} : vector<1x52xf32> to vector<1x4xf32>
    %71 = vector.broadcast %70 : vector<1x4xf32> to vector<32x4xf32>
    %72 = arith.addf %69, %71 : vector<32x4xf32>
    %73 = arith.addf %4, %72 : vector<32x4xf32>
    %74 = vector.extract_strided_slice %11 {offsets = [0, 36], sizes = [1, 4], strides = [1, 1]} : vector<1x52xf32> to vector<1x4xf32>
    %75 = vector.extract_strided_slice %11 {offsets = [0, 40], sizes = [1, 4], strides = [1, 1]} : vector<1x52xf32> to vector<1x4xf32>
    %cst_23 = arith.constant dense<0.000000e+00> : vector<32xf32>
    %76 = vector.multi_reduction <add>, %73, %cst_23 [1] : vector<32x4xf32> to vector<32xf32>
    %77 = vector.shape_cast %76 : vector<32xf32> to vector<32x1xf32>
    %cst_24 = arith.constant 4.000000e+00 : f32
    %78 = vector.broadcast %cst_24 : f32 to vector<32x1xf32>
    %79 = arith.divf %77, %78 : vector<32x1xf32>
    %80 = vector.broadcast %79 : vector<32x1xf32> to vector<32x4xf32>
    %81 = arith.subf %73, %80 : vector<32x4xf32>
    %82 = arith.mulf %81, %81 : vector<32x4xf32>
    %cst_25 = arith.constant dense<0.000000e+00> : vector<32xf32>
    %83 = vector.multi_reduction <add>, %82, %cst_25 [1] : vector<32x4xf32> to vector<32xf32>
    %84 = vector.shape_cast %83 : vector<32xf32> to vector<32x1xf32>
    %cst_26 = arith.constant 4.000000e+00 : f32
    %85 = vector.broadcast %cst_26 : f32 to vector<32x1xf32>
    %86 = arith.divf %84, %85 : vector<32x1xf32>
    %cst_27 = arith.constant 9.99999974E-6 : f32
    %87 = vector.broadcast %cst_27 : f32 to vector<32x1xf32>
    %88 = arith.addf %86, %87 : vector<32x1xf32>
    %89 = math.rsqrt %88 : vector<32x1xf32>
    %90 = vector.broadcast %89 : vector<32x1xf32> to vector<32x4xf32>
    %91 = arith.mulf %81, %90 : vector<32x4xf32>
    %92 = vector.broadcast %74 : vector<1x4xf32> to vector<32x4xf32>
    %93 = arith.mulf %91, %92 : vector<32x4xf32>
    %94 = vector.broadcast %75 : vector<1x4xf32> to vector<32x4xf32>
    %95 = arith.addf %93, %94 : vector<32x4xf32>
    %96 = arith.truncf %95 : vector<32x4xf32> to vector<32x4xbf16>
    %97 = vector.extract_strided_slice %7 {offsets = [0, 16], sizes = [4, 16], strides = [1, 1]} : vector<4x32xbf16> to vector<4x16xbf16>
    %cst_28 = arith.constant dense<0.000000e+00> : vector<32x16xf32>
    %98 = tpu.matmul %96, %97, %cst_28 {dimension_numbers = #tpu.dot_dimension_numbers<[1], [0], [0], [1], [0, 0, 1, 1], [], []>} : vector<32x4xbf16>, vector<4x16xbf16>, vector<32x16xf32> -> vector<32x16xf32>
    %99 = vector.extract_strided_slice %11 {offsets = [0, 16], sizes = [1, 16], strides = [1, 1]} : vector<1x52xf32> to vector<1x16xf32>
    %100 = vector.broadcast %99 : vector<1x16xf32> to vector<32x16xf32>
    %101 = arith.addf %98, %100 : vector<32x16xf32>
    %cst_29 = arith.constant 0.000000e+00 : f32
    %102 = vector.broadcast %cst_29 : f32 to vector<32x16xf32>
    %103 = arith.maximumf %101, %102 : vector<32x16xf32>
    %104 = arith.truncf %103 : vector<32x16xf32> to vector<32x16xbf16>
    %cst_30 = arith.constant dense<0.000000e+00> : vector<32x4xf32>
    %105 = tpu.matmul %104, %9, %cst_30 {dimension_numbers = #tpu.dot_dimension_numbers<[1], [0], [0], [1], [0, 0, 1, 1], [], []>} : vector<32x16xbf16>, vector<16x4xbf16>, vector<32x4xf32> -> vector<32x4xf32>
    %106 = vector.extract_strided_slice %11 {offsets = [0, 32], sizes = [1, 4], strides = [1, 1]} : vector<1x52xf32> to vector<1x4xf32>
    %107 = vector.broadcast %106 : vector<1x4xf32> to vector<32x4xf32>
    %108 = arith.addf %105, %107 : vector<32x4xf32>
    %109 = arith.addf %95, %108 : vector<32x4xf32>
    %110 = vector.extract_strided_slice %11 {offsets = [0, 44], sizes = [1, 4], strides = [1, 1]} : vector<1x52xf32> to vector<1x4xf32>
    %111 = vector.extract_strided_slice %11 {offsets = [0, 48], sizes = [1, 4], strides = [1, 1]} : vector<1x52xf32> to vector<1x4xf32>
    %cst_31 = arith.constant dense<0.000000e+00> : vector<32xf32>
    %112 = vector.multi_reduction <add>, %109, %cst_31 [1] : vector<32x4xf32> to vector<32xf32>
    %113 = vector.shape_cast %112 : vector<32xf32> to vector<32x1xf32>
    %cst_32 = arith.constant 4.000000e+00 : f32
    %114 = vector.broadcast %cst_32 : f32 to vector<32x1xf32>
    %115 = arith.divf %113, %114 : vector<32x1xf32>
    %116 = vector.broadcast %115 : vector<32x1xf32> to vector<32x4xf32>
    %117 = arith.subf %109, %116 : vector<32x4xf32>
    %118 = arith.mulf %117, %117 : vector<32x4xf32>
    %cst_33 = arith.constant dense<0.000000e+00> : vector<32xf32>
    %119 = vector.multi_reduction <add>, %118, %cst_33 [1] : vector<32x4xf32> to vector<32xf32>
    %120 = vector.shape_cast %119 : vector<32xf32> to vector<32x1xf32>
    %cst_34 = arith.constant 4.000000e+00 : f32
    %121 = vector.broadcast %cst_34 : f32 to vector<32x1xf32>
    %122 = arith.divf %120, %121 : vector<32x1xf32>
    %cst_35 = arith.constant 9.99999974E-6 : f32
    %123 = vector.broadcast %cst_35 : f32 to vector<32x1xf32>
    %124 = arith.addf %122, %123 : vector<32x1xf32>
    %125 = math.rsqrt %124 : vector<32x1xf32>
    %126 = vector.broadcast %125 : vector<32x1xf32> to vector<32x4xf32>
    %127 = arith.mulf %117, %126 : vector<32x4xf32>
    %128 = vector.broadcast %110 : vector<1x4xf32> to vector<32x4xf32>
    %129 = arith.mulf %127, %128 : vector<32x4xf32>
    %130 = vector.broadcast %111 : vector<1x4xf32> to vector<32x4xf32>
    %131 = arith.addf %129, %130 : vector<32x4xf32>
    %132 = vector.shape_cast %131 : vector<32x4xf32> to vector<2x16x4xf32>
    %c0_36 = arith.constant 0 : index
    %c0_37 = arith.constant 0 : index
    %c0_38 = arith.constant 0 : index
    %133 = vector.load %arg16[%c0_36, %c0_37, %c0_38] : memref<2x16x4xf32, #tpu.memory_space<vmem>>, vector<2x16x4xf32>
    tpu.vector_store %arg16[%c0_36, %c0_37, %c0_38], %132 {strides = array<i32>} : memref<2x16x4xf32, #tpu.memory_space<vmem>>, vector<2x16x4xf32>,
    %c3_i32 = arith.constant 3 : i32
    %134 = arith.cmpi eq, %arg1, %c3_i32 : i32
    %135 = arith.extui %134 : i1 to i32
    %c0_i32_39 = arith.constant 0 : i32
    %136 = arith.cmpi ne, %135, %c0_i32_39 : i32
    scf.if %136 {
      %137 = vector.shape_cast %131 : vector<32x4xf32> to vector<2x16x4xf32>
      %cst_40 = arith.constant dense<0.000000e+00> : vector<2x4xf32>
      %138 = vector.multi_reduction <add>, %137, %cst_40 [1] : vector<2x16x4xf32> to vector<2x4xf32>
      %cst_41 = arith.constant 1.600000e+01 : f32
      %139 = vector.broadcast %cst_41 : f32 to vector<2x4xf32>
      %140 = arith.divf %138, %139 : vector<2x4xf32>
      %c0_42 = arith.constant 0 : index
      %c0_43 = arith.constant 0 : index
      %141 = vector.load %arg11[%c0_42, %c0_43] : memref<4x128xf32, #tpu.memory_space<vmem>>, vector<4x128xf32>
      %cst_44 = arith.constant dense<0.000000e+00> : vector<2x128xf32>
      %142 = tpu.matmul %140, %141, %cst_44 {dimension_numbers = #tpu.dot_dimension_numbers<[1], [0], [0], [1], [0, 0, 1, 1], [], []>} : vector<2x4xf32>, vector<4x128xf32>, vector<2x128xf32> -> vector<2x128xf32>
      %c0_45 = arith.constant 0 : index
      %c0_46 = arith.constant 0 : index
      %143 = vector.load %arg12[%c0_45, %c0_46] : memref<1x128xf32, #tpu.memory_space<vmem>>, vector<1x128xf32>
      %144 = vector.broadcast %143 : vector<1x128xf32> to vector<2x128xf32>
      %145 = arith.addf %142, %144 : vector<2x128xf32>
      %c0_47 = arith.constant 0 : index
      %c0_48 = arith.constant 0 : index
      %c0_49 = arith.constant 0 : index
      %146 = vector.load %arg3[%c0_47, %c0_48, %c0_49] : memref<2x1x128xf32, #tpu.memory_space<vmem>>, vector<1x1x128xf32>
      %147 = vector.shape_cast %146 : vector<1x1x128xf32> to vector<1x128xf32>
      %c1 = arith.constant 1 : index
      %c0_50 = arith.constant 0 : index
      %c0_51 = arith.constant 0 : index
      %148 = vector.load %arg3[%c1, %c0_50, %c0_51] : memref<2x1x128xf32, #tpu.memory_space<vmem>>, vector<1x1x128xf32>
      %149 = vector.shape_cast %148 : vector<1x1x128xf32> to vector<1x128xf32>
      %150 = tpu.concatenate %147, %149 in 0 : vector<1x128xf32>, vector<1x128xf32> -> vector<2x128xf32>
      %c0_52 = arith.constant 0 : index
      %151 = memref.load %arg4[%c0_52] : memref<2xf32, #tpu.memory_space<smem>>
      %152 = vector.broadcast %151 : f32 to vector<2x128xf32>
      %153 = arith.mulf %152, %150 : vector<2x128xf32>
      %c1_53 = arith.constant 1 : index
      %154 = memref.load %arg4[%c1_53] : memref<2xf32, #tpu.memory_space<smem>>
      %155 = vector.broadcast %154 : f32 to vector<2x128xf32>
      %156 = arith.mulf %155, %145 : vector<2x128xf32>
      %157 = arith.addf %153, %156 : vector<2x128xf32>
      %c0_54 = arith.constant 0 : index
      %c0_55 = arith.constant 0 : index
      %158 = vector.load %arg13[%c0_54, %c0_55] : memref<128x128xf32, #tpu.memory_space<vmem>>, vector<128x128xf32>
      %cst_56 = arith.constant dense<0.000000e+00> : vector<2x128xf32>
      %159 = tpu.matmul %157, %158, %cst_56 {dimension_numbers = #tpu.dot_dimension_numbers<[1], [0], [0], [1], [0, 0, 1, 1], [], []>} : vector<2x128xf32>, vector<128x128xf32>, vector<2x128xf32> -> vector<2x128xf32>
      %c0_57 = arith.constant 0 : index
      %c0_58 = arith.constant 0 : index
      %160 = vector.load %arg14[%c0_57, %c0_58] : memref<1x128xf32, #tpu.memory_space<vmem>>, vector<1x128xf32>
      %161 = vector.broadcast %160 : vector<1x128xf32> to vector<2x128xf32>
      %162 = arith.addf %159, %161 : vector<2x128xf32>
      %163 = vector.extract_strided_slice %162 {offsets = [0, 0], sizes = [1, 128], strides = [1, 1]} : vector<2x128xf32> to vector<1x128xf32>
      %c0_59 = arith.constant 0 : index
      %c0_60 = arith.constant 0 : index
      %c0_61 = arith.constant 0 : index
      %164 = vector.load %arg15[%c0_59, %c0_60, %c0_61] : memref<2x1x128xf32, #tpu.memory_space<vmem>>, vector<1x1x128xf32>
      %165 = vector.shape_cast %164 : vector<1x1x128xf32> to vector<1x128xf32>
      %166 = vector.shape_cast %163 : vector<1x128xf32> to vector<1x1x128xf32>
      tpu.vector_store %arg15[%c0_59, %c0_60, %c0_61], %166 {strides = array<i32>} : memref<2x1x128xf32, #tpu.memory_space<vmem>>, vector<1x1x128xf32>,
      %167 = vector.extract_strided_slice %162 {offsets = [1, 0], sizes = [1, 128], strides = [1, 1]} : vector<2x128xf32> to vector<1x128xf32>
      %c1_62 = arith.constant 1 : index
      %c0_63 = arith.constant 0 : index
      %c0_64 = arith.constant 0 : index
      %168 = vector.load %arg15[%c1_62, %c0_63, %c0_64] : memref<2x1x128xf32, #tpu.memory_space<vmem>>, vector<1x1x128xf32>
      %169 = vector.shape_cast %168 : vector<1x1x128xf32> to vector<1x128xf32>
      %170 = vector.shape_cast %167 : vector<1x128xf32> to vector<1x1x128xf32>
      tpu.vector_store %arg15[%c1_62, %c0_63, %c0_64], %170 {strides = array<i32>} : memref<2x1x128xf32, #tpu.memory_space<vmem>>, vector<1x1x128xf32>,
    } else {
    }
    return
  }
  func.func @transform_0(%arg0: i32, %arg1: i32) -> (i32, i32, i32) {
    %c0_i32 = arith.constant 0 : i32
    %c0_i32_0 = arith.constant 0 : i32
    %c0_i32_1 = arith.constant 0 : i32
    return %arg0, %c0_i32, %c0_i32_0 : i32, i32, i32
  }
  func.func @transform_1(%arg0: i32, %arg1: i32) -> (i32, i32, i32) {
    %c0_i32 = arith.constant 0 : i32
    %c0_i32_0 = arith.constant 0 : i32
    %c0_i32_1 = arith.constant 0 : i32
    return %arg0, %c0_i32, %c0_i32_0 : i32, i32, i32
  }
  func.func @transform_2(%arg0: i32, %arg1: i32) -> i32 {
    %c0_i32 = arith.constant 0 : i32
    %c0_i32_0 = arith.constant 0 : i32
    return %c0_i32 : i32
  }
  func.func @transform_3(%arg0: i32, %arg1: i32) -> (i32, i32) {
    %c0_i32 = arith.constant 0 : i32
    %c0_i32_0 = arith.constant 0 : i32
    %c0_i32_1 = arith.constant 0 : i32
    return %c0_i32, %c0_i32_0 : i32, i32
  }
  func.func @transform_4(%arg0: i32, %arg1: i32) -> (i32, i32) {
    %c0_i32 = arith.constant 0 : i32
    %c0_i32_0 = arith.constant 0 : i32
    %c0_i32_1 = arith.constant 0 : i32
    return %c0_i32, %c0_i32_0 : i32, i32
  }
  func.func @transform_5(%arg0: i32, %arg1: i32) -> (i32, i32) {
    %c0_i32 = arith.constant 0 : i32
    %c0_i32_0 = arith.constant 0 : i32
    %c0_i32_1 = arith.constant 0 : i32
    return %c0_i32, %c0_i32_0 : i32, i32
  }
  func.func @transform_6(%arg0: i32, %arg1: i32) -> (i32, i32, i32) {
    %c0_i32 = arith.constant 0 : i32
    %c0_i32_0 = arith.constant 0 : i32
    %c0_i32_1 = arith.constant 0 : i32
    return %arg1, %c0_i32, %c0_i32_0 : i32, i32, i32
  }
  func.func @transform_7(%arg0: i32, %arg1: i32) -> (i32, i32, i32) {
    %c0_i32 = arith.constant 0 : i32
    %c0_i32_0 = arith.constant 0 : i32
    %c0_i32_1 = arith.constant 0 : i32
    return %arg1, %c0_i32, %c0_i32_0 : i32, i32, i32
  }
  func.func @transform_8(%arg0: i32, %arg1: i32) -> (i32, i32, i32) {
    %c0_i32 = arith.constant 0 : i32
    %c0_i32_0 = arith.constant 0 : i32
    %c0_i32_1 = arith.constant 0 : i32
    return %arg1, %c0_i32, %c0_i32_0 : i32, i32, i32
  }
  func.func @transform_9(%arg0: i32, %arg1: i32) -> (i32, i32) {
    %c0_i32 = arith.constant 0 : i32
    %c0_i32_0 = arith.constant 0 : i32
    %c0_i32_1 = arith.constant 0 : i32
    return %c0_i32, %c0_i32_0 : i32, i32
  }
  func.func @transform_10(%arg0: i32, %arg1: i32) -> (i32, i32) {
    %c0_i32 = arith.constant 0 : i32
    %c0_i32_0 = arith.constant 0 : i32
    %c0_i32_1 = arith.constant 0 : i32
    return %c0_i32, %c0_i32_0 : i32, i32
  }
  func.func @transform_11(%arg0: i32, %arg1: i32) -> (i32, i32) {
    %c0_i32 = arith.constant 0 : i32
    %c0_i32_0 = arith.constant 0 : i32
    %c0_i32_1 = arith.constant 0 : i32
    return %c0_i32, %c0_i32_0 : i32, i32
  }
  func.func @transform_12(%arg0: i32, %arg1: i32) -> (i32, i32) {
    %c0_i32 = arith.constant 0 : i32
    %c0_i32_0 = arith.constant 0 : i32
    %c0_i32_1 = arith.constant 0 : i32
    return %c0_i32, %c0_i32_0 : i32, i32
  }
  func.func @transform_13(%arg0: i32, %arg1: i32) -> (i32, i32, i32) {
    %c0_i32 = arith.constant 0 : i32
    %c0_i32_0 = arith.constant 0 : i32
    %c0_i32_1 = arith.constant 0 : i32
    return %arg0, %c0_i32, %c0_i32_0 : i32, i32, i32
  }
}

</mosaic_0001>

<llo_original>
// kernel: multi_branch_forward.2
$region0: #{multi_branch_forward.2}
  #allocation0 [shape = 'u32[]', space=smem, size = 0x4, offset = 0x4, fixed_abs, tag = 'smem constant byte address 0x4 - core index']
  #allocation1 [shape = 'u32[144,128]{1,0:T(1,128)}', space=vmem, size = 0x12000, scoped, tag = 'internal scratch']
  %s0 = inlined_call_operand.vmem [shape: f32[2,1,24], index: 0, kind: input, shape index: {}]
  %s1 = inlined_call_operand.vmem [shape: bf16[5,8], index: 1, kind: input, shape index: {}]
  %s2 = inlined_call_operand.vmem [shape: f32[5,1], index: 2, kind: input, shape index: {}]
  %s3 = inlined_call_operand.vmem [shape: f32[5,128], index: 3, kind: input, shape index: {}]
  %s4 = inlined_call_operand.vmem [shape: f32[1,128], index: 4, kind: input, shape index: {}]
  %s5 = inlined_call_operand.vmem [shape: f32[2,1,128], index: 5, kind: output, shape index: {}]
  %s6 = sld [smem:[#allocation0]]
  $region30: #{multi_branch_forward.2} parent=0
    _
  %s8 = ssub.s32 1, %s6
  %s9 = scalar_select 0, %s8, %s6
  // Predicated region
  $region2: #{multi_branch_forward.2} parent=0 // pred_check
    _
  $region3: #{multi_branch_forward.2} parent=0 // pred_check_branch
    %11 = sbr.rel (0) target = $region5
  $region4: #{multi_branch_forward.2} parent=0 // pred_region
    _
  $region5: #{multi_branch_forward.2} parent=0 // pred_fallthru
    _
  // Predicated region
  $region6: #{multi_branch_forward.2} parent=0 // pred_check
    _
  $region7: #{multi_branch_forward.2} parent=0 // pred_check_branch
    %13 = sbr.rel (0) target = $region9
  $region8: #{multi_branch_forward.2} parent=0 // pred_region
    _
  $region9: #{multi_branch_forward.2} parent=0 // pred_fallthru
    _
  // Predicated region
  $region10: #{multi_branch_forward.2} parent=0 // pred_check
    _
  $region11: #{multi_branch_forward.2} parent=0 // pred_check_branch
    %15 = sbr.rel (0) target = $region13
  $region12: #{multi_branch_forward.2} parent=0 // pred_region
    _
  $region13: #{multi_branch_forward.2} parent=0 // pred_fallthru
    _
  // Predicated region
  $region14: #{multi_branch_forward.2} parent=0 // pred_check
    _
  $region15: #{multi_branch_forward.2} parent=0 // pred_check_branch
    %17 = sbr.rel (0) target = $region17
  $region16: #{multi_branch_forward.2} parent=0 // pred_region
    _
  $region17: #{multi_branch_forward.2} parent=0 // pred_fallthru
    _
  // Predicated region
  $region18: #{multi_branch_forward.2} parent=0 // pred_check
    _
  $region19: #{multi_branch_forward.2} parent=0 // pred_check_branch
    %19 = sbr.rel (0) target = $region21
  $region20: #{multi_branch_forward.2} parent=0 // pred_region
    _
  $region21: #{multi_branch_forward.2} parent=0 // pred_fallthru
    _
  %v21 = vld [vmem:[%s1] sm:$0x7]
  %v22 = vld [vmem:[%s2] sm:$0x1f]
  %v23 = vld [vmem:[%s3] sm:$0x1f]
  %v24 = vld [vmem:[%s4] sm:$0x1]
  %v25 = vld [vmem:[%s0] sm:$0x1]
  %v27 = vlaneseq
  %v28 = vshrl.u32 %v27, 7
  %v29 = vsub.s32 0, %v28
  %v30 = vrot.slane %v25, %v29
  %31 = vrot.lane.b32.xlu0 %v30, 127
  %v32 = vpop.permute.xlu0 %31
  %34 = vrot.lane.b32.xlu0 %v30, 126
  %v35 = vpop.permute.xlu0 %34
  %37 = vrot.lane.b32.xlu0 %v30, 125
  %v38 = vpop.permute.xlu0 %37
  %40 = vrot.lane.b32.xlu0 %v30, 124
  %v41 = vpop.permute.xlu0 %40
  %43 = vrot.lane.b32.xlu0 %v30, 123
  %v44 = vpop.permute.xlu0 %43
  %46 = vrot.lane.b32.xlu0 %v30, 122
  %v47 = vpop.permute.xlu0 %46
  %49 = vrot.lane.b32.xlu0 %v30, 121
  %v50 = vpop.permute.xlu0 %49
  %vm52 = vcmask 1040384
  %v53 = vsel %vm52, %v25, %v32
  %vm54 = vcmask 1041408
  %v55 = vsel %vm54, %v53, %v35
  %vm56 = vcmask 1042432
  %v57 = vsel %vm56, %v55, %v38
  %vm58 = vcmask 1043456
  %v59 = vsel %vm58, %v57, %v41
  %vm60 = vcmask 1044480
  %v61 = vsel %vm60, %v59, %v44
  %vm62 = vcmask 1045504
  %v63 = vsel %vm62, %v61, %v47
  %vm64 = vcmask 1046528
  %v65 = vsel %vm64, %v63, %v50
  %v66 = vpack.c.bf16 %v65, %v65
  %vm67 = vcmask 64512
  %v69 = vsel %vm67, %v21, 0
  %v72 = vsel %vm58, %v66, 0
  %74 = vmatprep.subr.bf16.mxu0 0
  %75 = vmatpush1.bf16.msra.mxu0 %v72
  %76 = vmatprep.subr.bf16.mxu0 0
  %77 = vmatpush1.bf16.msra.mxu0 0
  %78 = vmatprep.subr.bf16.mxu0 0
  %79 = vmatpush1.bf16.msra.mxu0 0
  %80 = vmatprep.subr.bf16.mxu0 0
  %81 = vmatpush1.bf16.msra.mxu0 0
  %82 = vmatprep.subr.bf16.mxu0 0
  %83 = vmatpush1.bf16.msra.mxu0 0
  %84 = vmatprep.subr.bf16.mxu0 0
  %85 = vmatpush1.bf16.msra.mxu0 0
  %86 = vmatprep.subr.bf16.mxu0 0
  %87 = vmatpush1.bf16.msra.mxu0 0
  %88 = vmatprep.subr.bf16.mxu0 0
  %89 = vmatpush1.bf16.msra.mxu0 0
  %90 = vmatprep.subr.bf16.mxu0 0
  %91 = vmatpush1.bf16.msra.mxu0 0
  %92 = vmatprep.subr.bf16.mxu0 0
  %93 = vmatpush1.bf16.msra.mxu0 0
  %94 = vmatprep.subr.bf16.mxu0 0
  %95 = vmatpush1.bf16.msra.mxu0 0
  %96 = vmatprep.subr.bf16.mxu0 0
  %97 = vmatpush1.bf16.msra.mxu0 0
  %98 = vmatprep.subr.bf16.mxu0 0
  %99 = vmatpush1.bf16.msra.mxu0 0
  %100 = vmatprep.subr.bf16.mxu0 0
  %101 = vmatpush1.bf16.msra.mxu0 0
  %102 = vmatprep.subr.bf16.mxu0 0
  %103 = vmatpush1.bf16.msra.mxu0 0
  %104 = vmatprep.subr.bf16.mxu0 0
  %105 = vmatpush1.bf16.msra.mxu0 0
  %106 = vmatprep.mubr.bf16.mxu0 0
  %107 = vmatmul.mubr.bf16.gmra.mrb[0].mxu0 %v69
  %v108 = vpop.f32.mrb[0].mxu0
  %v109 = vadd.f32 0.0, %v108
  %v110 = vpop.f32.mrb[0].mxu0
  %v111 = vpop.f32.mrb[0].mxu0
  %v112 = vpop.f32.mrb[0].mxu0
  %113 = vdwg.mxu0
  %v114 = vmul.f32 %v65, %v65
  %vm115 = vcmask 125952
  %v116 = vsel %vm115, %v114, 0.0
  %v117 = vrot.slane %v116, 4
  %v118 = vadd.f32 %v116, %v117
  %v119 = vrot.slane %v118, 2
  %v120 = vadd.f32 %v118, %v119
  %v121 = vrot.slane %v120, 1
  %v122 = vadd.f32 %v120, %v121
  %v123 = vmul.f32 %v109, 2.0
  %v124 = vsub.f32 %v122, %v123
  %126 = vset.pattern.permute.xlu0 0
  %127 = vperm.xlu0 %126, %v22
  %v128 = vpop.permute.xlu0 %127
  %v130 = vadd.f32 %v124, %v128
  %v131 = vmul.f32 %v130, 0.25
  %v132 = vlaneseq
  %v133 = vand.u32 %v132, 127
  %vm134 = vcmp.lt.s32.totalorder %v133, 13
  %v135 = vsel %vm134, %v131, inf
  %vm136 = vcmask 124928
  %v137 = vsel %vm136, %v135, inf
  %138 = vmin.xlane.f32.xlu0 %v137
  %v139 = vpop.xlane.xlu0 %138
  %vm140 = vcmask 130048
  %v141 = vsel %vm140, %v114, 0.0
  %v142 = vrot.slane %v141, 4
  %v143 = vadd.f32 %v141, %v142
  %v144 = vrot.slane %v143, 2
  %v145 = vadd.f32 %v143, %v144
  %v146 = vrot.slane %v145, 1
  %v147 = vadd.f32 %v145, %v146
  %v148 = vsub.f32 %v147, %v123
  %v149 = vadd.f32 %v148, %v128
  %v150 = vmul.f32 %v149, 0.125
  %vm151 = vcmp.lt.s32.totalorder %v133, 9
  %v152 = vsel %vm151, %v150, inf
  %vm153 = vcmask 126979
  %v154 = vsel %vm153, %v152, inf
  %155 = vmin.xlane.f32.xlu0 %v154
  %v156 = vpop.xlane.xlu0 %155
  %v157 = vsel %vm56, %v139, %v156
  %159 = vset.pattern.permute.xlu0 0
  %160 = vperm.xlu0 %159, %v157
  %v161 = vpop.permute.xlu0 %160
  %v163 = vmul.f32 %v161, %v23
  %v164 = vsel %vm60, %v163, 0.0
  %v165 = vrot.slane %v164, 4
  %v166 = vadd.f32 %v164, %v165
  %v167 = vrot.slane %v166, 2
  %v168 = vadd.f32 %v166, %v167
  %v169 = vrot.slane %v168, 1
  %v170 = vadd.f32 %v168, %v169
  %v171 = vadd.f32 %v170, %v24
  %172 = vst [vmem:[%s5] sm:$0x1] %v171
  %s173 = scalar_lea.vmem %s0, 1
  %v174 = vld [vmem:[%s173] sm:$0x1]
  %v176 = vlaneseq
  %v177 = vshrl.u32 %v176, 7
  %v178 = vsub.s32 0, %v177
  %v179 = vrot.slane %v174, %v178
  %180 = vrot.lane.b32.xlu0 %v179, 127
  %v181 = vpop.permute.xlu0 %180
  %183 = vrot.lane.b32.xlu0 %v179, 126
  %v184 = vpop.permute.xlu0 %183
  %186 = vrot.lane.b32.xlu0 %v179, 125
  %v187 = vpop.permute.xlu0 %186
  %189 = vrot.lane.b32.xlu0 %v179, 124
  %v190 = vpop.permute.xlu0 %189
  %192 = vrot.lane.b32.xlu0 %v179, 123
  %v193 = vpop.permute.xlu0 %192
  %195 = vrot.lane.b32.xlu0 %v179, 122
  %v196 = vpop.permute.xlu0 %195
  %198 = vrot.lane.b32.xlu0 %v179, 121
  %v199 = vpop.permute.xlu0 %198
  %v201 = vsel %vm52, %v174, %v181
  %v202 = vsel %vm54, %v201, %v184
  %v203 = vsel %vm56, %v202, %v187
  %v204 = vsel %vm58, %v203, %v190
  %v205 = vsel %vm60, %v204, %v193
  %v206 = vsel %vm62, %v205, %v196
  %v207 = vsel %vm64, %v206, %v199
  %v208 = vpack.c.bf16 %v207, %v207
  %v210 = vsel %vm58, %v208, 0
  %212 = vmatprep.subr.bf16.mxu0 0
  %213 = vmatpush1.bf16.msra.mxu0 %v210
  %214 = vmatprep.subr.bf16.mxu0 0
  %215 = vmatpush1.bf16.msra.mxu0 0
  %216 = vmatprep.subr.bf16.mxu0 0
  %217 = vmatpush1.bf16.msra.mxu0 0
  %218 = vmatprep.subr.bf16.mxu0 0
  %219 = vmatpush1.bf16.msra.mxu0 0
  %220 = vmatprep.subr.bf16.mxu0 0
  %221 = vmatpush1.bf16.msra.mxu0 0
  %222 = vmatprep.subr.bf16.mxu0 0
  %223 = vmatpush1.bf16.msra.mxu0 0
  %224 = vmatprep.subr.bf16.mxu0 0
  %225 = vmatpush1.bf16.msra.mxu0 0
  %226 = vmatprep.subr.bf16.mxu0 0
  %227 = vmatpush1.bf16.msra.mxu0 0
  %228 = vmatprep.subr.bf16.mxu0 0
  %229 = vmatpush1.bf16.msra.mxu0 0
  %230 = vmatprep.subr.bf16.mxu0 0
  %231 = vmatpush1.bf16.msra.mxu0 0
  %232 = vmatprep.subr.bf16.mxu0 0
  %233 = vmatpush1.bf16.msra.mxu0 0
  %234 = vmatprep.subr.bf16.mxu0 0
  %235 = vmatpush1.bf16.msra.mxu0 0
  %236 = vmatprep.subr.bf16.mxu0 0
  %237 = vmatpush1.bf16.msra.mxu0 0
  %238 = vmatprep.subr.bf16.mxu0 0
  %239 = vmatpush1.bf16.msra.mxu0 0
  %240 = vmatprep.subr.bf16.mxu0 0
  %241 = vmatpush1.bf16.msra.mxu0 0
  %242 = vmatprep.subr.bf16.mxu0 0
  %243 = vmatpush1.bf16.msra.mxu0 0
  %244 = vmatprep.mubr.bf16.mxu0 0
  %245 = vmatmul.mubr.bf16.gmra.mrb[0].mxu0 %v69
  %v246 = vpop.f32.mrb[0].mxu0
  %v247 = vadd.f32 0.0, %v246
  %v248 = vpop.f32.mrb[0].mxu0
  %v249 = vpop.f32.mrb[0].mxu0
  %v250 = vpop.f32.mrb[0].mxu0
  %251 = vdwg.mxu0
  %v252 = vmul.f32 %v207, %v207
  %v253 = vsel %vm115, %v252, 0.0
  %v254 = vrot.slane %v253, 4
  %v255 = vadd.f32 %v253, %v254
  %v256 = vrot.slane %v255, 2
  %v257 = vadd.f32 %v255, %v256
  %v258 = vrot.slane %v257, 1
  %v259 = vadd.f32 %v257, %v258
  %v260 = vmul.f32 %v247, 2.0
  %v261 = vsub.f32 %v259, %v260
  %v262 = vadd.f32 %v261, %v128
  %v263 = vmul.f32 %v262, 0.25
  %v264 = vsel %vm134, %v263, inf
  %v265 = vsel %vm136, %v264, inf
  %266 = vmin.xlane.f32.xlu0 %v265
  %v267 = vpop.xlane.xlu0 %266
  %v268 = vsel %vm140, %v252, 0.0
  %v269 = vrot.slane %v268, 4
  %v270 = vadd.f32 %v268, %v269
  %v271 = vrot.slane %v270, 2
  %v272 = vadd.f32 %v270, %v271
  %v273 = vrot.slane %v272, 1
  %v274 = vadd.f32 %v272, %v273
  %v275 = vsub.f32 %v274, %v260
  %v276 = vadd.f32 %v275, %v128
  %v277 = vmul.f32 %v276, 0.125
  %v278 = vsel %vm151, %v277, inf
  %v279 = vsel %vm153, %v278, inf
  %280 = vmin.xlane.f32.xlu0 %v279
  %v281 = vpop.xlane.xlu0 %280
  %v282 = vsel %vm56, %v267, %v281
  %284 = vset.pattern.permute.xlu0 0
  %285 = vperm.xlu0 %284, %v282
  %v286 = vpop.permute.xlu0 %285
  %v288 = vmul.f32 %v286, %v23
  %v289 = vsel %vm60, %v288, 0.0
  %v290 = vrot.slane %v289, 4
  %v291 = vadd.f32 %v289, %v290
  %v292 = vrot.slane %v291, 2
  %v293 = vadd.f32 %v291, %v292
  %v294 = vrot.slane %v293, 1
  %v295 = vadd.f32 %v293, %v294
  %v296 = vadd.f32 %v295, %v24
  %s297 = scalar_lea.vmem %s5, 1
  %298 = vst [vmem:[%s297] sm:$0x1] %v296
  // Predicated region
  $region22: #{multi_branch_forward.2} parent=0 // pred_check
    _
  $region23: #{multi_branch_forward.2} parent=0 // pred_check_branch
    %300 = sbr.rel (0) target = $region25
  $region24: #{multi_branch_forward.2} parent=0 // pred_region
    _
  $region25: #{multi_branch_forward.2} parent=0 // pred_fallthru
    _
  // Predicated region
  $region26: #{multi_branch_forward.2} parent=0 // pred_check
    _
  $region27: #{multi_branch_forward.2} parent=0 // pred_check_branch
    %302 = sbr.rel (0) target = $region29
  $region28: #{multi_branch_forward.2} parent=0 // pred_region
    _
  $region29: #{multi_branch_forward.2} parent=0 // pred_fallthru
    _

// kernel: multi_branch_forward.3
$region0: #{multi_branch_forward.3}
  #allocation0 [shape = 'u32[]', space=smem, size = 0x4, offset = 0x4, fixed_abs, tag = 'smem constant byte address 0x4 - core index']
  #allocation1 [shape = 'u32[144,128]{1,0:T(1,128)}', space=vmem, size = 0x12000, scoped, tag = 'internal scratch']
  #allocation2 [shape = 'f32[2,16,4]{2,1,0:T(8,128)}', space=vmem, size = 0x4000, scoped, tag = 'scratch operand']
  %s0 = inlined_call_operand.vmem [shape: f32[2,16,1], index: 0, kind: input, shape index: {}]
  %s1 = inlined_call_operand.vmem [shape: f32[2,1,128], index: 1, kind: input, shape index: {}]
  %s2 = inlined_call_operand.vmem [shape: f32[2], index: 2, kind: input, shape index: {}]
  %s3 = inlined_call_operand.vmem [shape: f32[1,4], index: 3, kind: input, shape index: {}]
  %s4 = inlined_call_operand.hbm [shape: f32[1,4], index: 4, kind: input, shape index: {}]
  %s5 = inlined_call_operand.vmem [shape: f32[16,4], index: 5, kind: input, shape index: {}]
  %s6 = inlined_call_operand.vmem [shape: bf16[4,4,32], index: 6, kind: input, shape index: {}]
  %s7 = inlined_call_operand.vmem [shape: bf16[4,16,4], index: 7, kind: input, shape index: {}]
  %s8 = inlined_call_operand.vmem [shape: f32[4,1,52], index: 8, kind: input, shape index: {}]
  %s9 = inlined_call_operand.vmem [shape: f32[4,128], index: 9, kind: input, shape index: {}]
  %s10 = inlined_call_operand.vmem [shape: f32[1,128], index: 10, kind: input, shape index: {}]
  %s11 = inlined_call_operand.vmem [shape: f32[128,128], index: 11, kind: input, shape index: {}]
  %s12 = inlined_call_operand.hbm [shape: f32[1,128], index: 12, kind: input, shape index: {}]
  %s13 = inlined_call_operand.hbm [shape: f32[2,1,128], index: 13, kind: output, shape index: {}]
  %s14 = sld [smem:[#allocation0]]
  $region105: #{multi_branch_forward.3} parent=0
    _
  %s16 = ssub.s32 1, %s14
  %s17 = scalar_select 0, %s16, %s14
  $region1: #{multi_branch_forward.3} parent=0
    #allocation3 [shape = 'u8[512]{0}', space=smem, size = 0x200, scoped, tag = 'input window, operand 2, single buffered']
    #allocation4 [shape = 's32[2]{0}', space=sflag, size = 0x8, scoped, tag = 'scoped memory for multi_branch_forward.3']
    #allocation5 [shape = 's32[2]{0}', space=sflag, size = 0x8, scoped, tag = 'scoped memory for multi_branch_forward.3']
    #allocation6 [shape = 's32[2]{0}', space=sflag, size = 0x8, scoped, tag = 'scoped memory for multi_branch_forward.3']
    #allocation7 [shape = 'u8[512]{0}', space=vmem, size = 0x400, scoped, tag = 'input window, operand 4, single buffered']
    #allocation8 [shape = 'u8[512]{0}', space=vmem, size = 0x400, scoped, tag = 'input window, operand 12, single buffered']
    #allocation9 [shape = 's32[1]{0}', space=sflag, size = 0x4, scoped, tag = 'scoped memory for multi_branch_forward.3']
    #allocation10 [shape = 'u8[1024]{0}', space=vmem, size = 0x400, scoped, tag = 'output window, operand 0, single buffered']
    %18 = vsyncpa [#allocation6], 0
    %19 = vsyncpa [#allocation4], 0
    %20 = vsyncpa [#allocation9], 0
    %21 = vsyncpa [#allocation5], 0
    loop: start=0, step=1, limit=6
    $region2: #{multi_branch_forward.3} parent=1 // loop_pre_header
      _
    $region3: #{multi_branch_forward.3} parent=1 // loop_header
      %s23 = sphi 0, %s27
      %p24 = scmp.ge.s32.totalorder %s23, 6
      %s30 = sphi 0, %s42
      %s31 = sphi 0, %s38
      %s32 = sphi 0, %s30
      %s33 = sphi 0, %s31
      %s34 = sphi 0, %s32
      %s35 = sphi 0, %s33
      %s45 = sphi 0, %s47
      %s48 = sphi 0, %s45
      %s49 = sphi 0, %s48
      %s65 = sphi 0, %s49
      %s71 = sphi 0, %s73
      %s74 = sphi 0, %s71
      %s75 = sphi 0, %s74
      %s91 = sphi 0, %s75
      %s95 = sphi 0, %s95
      %s97 = sphi 0, %s95
      %s98 = sphi 0, %s97
      %s112 = sphi 0, %s98
      %s116 = sphi 0, %s116
      %s118 = sphi 0, %s116
      %s119 = sphi 0, %s118
      %s133 = sphi 0, %s119
      %s137 = sphi 0, %s137
      %s139 = sphi 0, %s137
      %s140 = sphi 0, %s139
      %s154 = sphi 0, %s140
      %s158 = sphi 0, %s158
      %s160 = sphi 0, %s158
      %s161 = sphi 0, %s160
      %s175 = sphi 0, %s161
      %s181 = sphi 0, %s183
      %s184 = sphi 0, %s181
      %s185 = sphi 0, %s184
      %s201 = sphi 0, %s185
      %s207 = sphi 0, %s209
      %s210 = sphi 0, %s207
      %s211 = sphi 0, %s210
      %s227 = sphi 0, %s211
      %s233 = sphi 0, %s235
      %s236 = sphi 0, %s233
      %s237 = sphi 0, %s236
      %s253 = sphi 0, %s237
      %s257 = sphi 0, %s257
      %s259 = sphi 0, %s257
      %s260 = sphi 0, %s259
      %s274 = sphi 0, %s260
      %s278 = sphi 0, %s278
      %s280 = sphi 0, %s278
      %s281 = sphi 0, %s280
      %s295 = sphi 0, %s281
      %s299 = sphi 0, %s299
      %s301 = sphi 0, %s299
      %s302 = sphi 0, %s301
      %s316 = sphi 0, %s302
      %s320 = sphi 0, %s320
      %s322 = sphi 0, %s320
      %s323 = sphi 0, %s322
      %s337 = sphi 0, %s323
      %s343 = sphi 0, %s345
      %s346 = sphi 0, %s343
      %s347 = sphi 0, %s346
      %s363 = sphi 0, %s347
    $region4: #{multi_branch_forward.3} parent=1 // loop_header_branch
      %26 = sbr.rel (%p24) target = $region8
    $region5: #{multi_branch_forward.3} parent=1 // loop_body
      %s28 = ssub.s32 %s23, 1
      %s29 = ssub.s32 %s23, 2
      %s36 = sadd.s32 1, %s31
      %p37 = scmp.ge.s32.totalorder %s36, 4
      %s38 = scalar_select %p37, 0, %s36
      %s39 = sadd.s32 1, %s30
      %s40 = scalar_select %p37, %s39, %s30
      %p41 = scmp.ge.s32.totalorder %s40, 1
      %s42 = scalar_select %p41, 0, %s40
      %s43 = ssub.s32 %s30, %s42
      %p44 = scmp.eq.s32.totalorder %s43, 0
      %s46 = sadd.s32 %s45, 1
      %s47 = scalar_select %p44, %s45, %s46
      %p50 = pneg %p44
      %p51 = scmp.eq.s32.totalorder %s23, 3
      %p52 = por %p50, %p51
      %p53 = scmp.ne.s32.totalorder %s45, %s48
      %p54 = scmp.eq.s32.totalorder %s23, 0
      %p55 = por %p53, %p54
      %p56 = scmp.ne.s32.totalorder %s45, %s48
      %p57 = scmp.eq.s32.totalorder %s28, 3
      %p58 = por %p56, %p57
      %p59 = scmp.ne.s32.totalorder %s48, %s49
      %p60 = scmp.eq.s32.totalorder %s28, 0
      %p61 = por %p59, %p60
      %p62 = scmp.ne.s32.totalorder %s48, %s49
      %p63 = scmp.eq.s32.totalorder %s29, 3
      %p64 = por %p62, %p63
      %p66 = scmp.ne.s32.totalorder %s49, %s65
      %p67 = scmp.eq.s32.totalorder %s29, 0
      %p68 = por %p66, %p67
      %s69 = ssub.s32 %s30, %s42
      %p70 = scmp.eq.s32.totalorder %s69, 0
      %s72 = sadd.s32 %s71, 1
      %s73 = scalar_select %p70, %s71, %s72
      %p76 = pneg %p70
      %p77 = scmp.eq.s32.totalorder %s23, 3
      %p78 = por %p76, %p77
      %p79 = scmp.ne.s32.totalorder %s71, %s74
      %p80 = scmp.eq.s32.totalorder %s23, 0
      %p81 = por %p79, %p80
      %p82 = scmp.ne.s32.totalorder %s71, %s74
      %p83 = scmp.eq.s32.totalorder %s28, 3
      %p84 = por %p82, %p83
      %p85 = scmp.ne.s32.totalorder %s74, %s75
      %p86 = scmp.eq.s32.totalorder %s28, 0
      %p87 = por %p85, %p86
      %p88 = scmp.ne.s32.totalorder %s74, %s75
      %p89 = scmp.eq.s32.totalorder %s29, 3
      %p90 = por %p88, %p89
      %p92 = scmp.ne.s32.totalorder %s75, %s91
      %p93 = scmp.eq.s32.totalorder %s29, 0
      %p94 = por %p92, %p93
      %s96 = sadd.s32 %s95, 1
      %p99 = scmp.eq.s32.totalorder %s23, 3
      %p100 = scmp.ne.s32.totalorder %s95, %s97
      %p101 = scmp.eq.s32.totalorder %s23, 0
      %p102 = por %p100, %p101
      %p103 = scmp.ne.s32.totalorder %s95, %s97
      %p104 = scmp.eq.s32.totalorder %s28, 3
      %p105 = por %p103, %p104
      %p106 = scmp.ne.s32.totalorder %s97, %s98
      %p107 = scmp.eq.s32.totalorder %s28, 0
      %p108 = por %p106, %p107
      %p109 = scmp.ne.s32.totalorder %s97, %s98
      %p110 = scmp.eq.s32.totalorder %s29, 3
      %p111 = por %p109, %p110
      %p113 = scmp.ne.s32.totalorder %s98, %s112
      %p114 = scmp.eq.s32.totalorder %s29, 0
      %p115 = por %p113, %p114
      %s117 = sadd.s32 %s116, 1
      %p120 = scmp.eq.s32.totalorder %s23, 3
      %p121 = scmp.ne.s32.totalorder %s116, %s118
      %p122 = scmp.eq.s32.totalorder %s23, 0
      %p123 = por %p121, %p122
      %p124 = scmp.ne.s32.totalorder %s116, %s118
      %p125 = scmp.eq.s32.totalorder %s28, 3
      %p126 = por %p124, %p125
      %p127 = scmp.ne.s32.totalorder %s118, %s119
      %p128 = scmp.eq.s32.totalorder %s28, 0
      %p129 = por %p127, %p128
      %p130 = scmp.ne.s32.totalorder %s118, %s119
      %p131 = scmp.eq.s32.totalorder %s29, 3
      %p132 = por %p130, %p131
      %p134 = scmp.ne.s32.totalorder %s119, %s133
      %p135 = scmp.eq.s32.totalorder %s29, 0
      %p136 = por %p134, %p135
      %s138 = sadd.s32 %s137, 1
      %p141 = scmp.eq.s32.totalorder %s23, 3
      %p142 = scmp.ne.s32.totalorder %s137, %s139
      %p143 = scmp.eq.s32.totalorder %s23, 0
      %p144 = por %p142, %p143
      %p145 = scmp.ne.s32.totalorder %s137, %s139
      %p146 = scmp.eq.s32.totalorder %s28, 3
      %p147 = por %p145, %p146
      %p148 = scmp.ne.s32.totalorder %s139, %s140
      %p149 = scmp.eq.s32.totalorder %s28, 0
      %p150 = por %p148, %p149
      %p151 = scmp.ne.s32.totalorder %s139, %s140
      %p152 = scmp.eq.s32.totalorder %s29, 3
      %p153 = por %p151, %p152
      %p155 = scmp.ne.s32.totalorder %s140, %s154
      %p156 = scmp.eq.s32.totalorder %s29, 0
      %p157 = por %p155, %p156
      %s159 = sadd.s32 %s158, 1
      %p162 = scmp.eq.s32.totalorder %s23, 3
      %p163 = scmp.ne.s32.totalorder %s158, %s160
      %p164 = scmp.eq.s32.totalorder %s23, 0
      %p165 = por %p163, %p164
      %p166 = scmp.ne.s32.totalorder %s158, %s160
      %p167 = scmp.eq.s32.totalorder %s28, 3
      %p168 = por %p166, %p167
      %p169 = scmp.ne.s32.totalorder %s160, %s161
      %p170 = scmp.eq.s32.totalorder %s28, 0
      %p171 = por %p169, %p170
      %p172 = scmp.ne.s32.totalorder %s160, %s161
      %p173 = scmp.eq.s32.totalorder %s29, 3
      %p174 = por %p172, %p173
      %p176 = scmp.ne.s32.totalorder %s161, %s175
      %p177 = scmp.eq.s32.totalorder %s29, 0
      %p178 = por %p176, %p177
      %s179 = ssub.s32 %s31, %s38
      %p180 = scmp.eq.s32.totalorder %s179, 0
      %s182 = sadd.s32 %s181, 1
      %s183 = scalar_select %p180, %s181, %s182
      %p186 = pneg %p180
      %p187 = scmp.eq.s32.totalorder %s23, 3
      %p188 = por %p186, %p187
      %p189 = scmp.ne.s32.totalorder %s181, %s184
      %p190 = scmp.eq.s32.totalorder %s23, 0
      %p191 = por %p189, %p190
      %p192 = scmp.ne.s32.totalorder %s181, %s184
      %p193 = scmp.eq.s32.totalorder %s28, 3
      %p194 = por %p192, %p193
      %p195 = scmp.ne.s32.totalorder %s184, %s185
      %p196 = scmp.eq.s32.totalorder %s28, 0
      %p197 = por %p195, %p196
      %p198 = scmp.ne.s32.totalorder %s184, %s185
      %p199 = scmp.eq.s32.totalorder %s29, 3
      %p200 = por %p198, %p199
      %p202 = scmp.ne.s32.totalorder %s185, %s201
      %p203 = scmp.eq.s32.totalorder %s29, 0
      %p204 = por %p202, %p203
      %s205 = ssub.s32 %s31, %s38
      %p206 = scmp.eq.s32.totalorder %s205, 0
      %s208 = sadd.s32 %s207, 1
      %s209 = scalar_select %p206, %s207, %s208
      %p212 = pneg %p206
      %p213 = scmp.eq.s32.totalorder %s23, 3
      %p214 = por %p212, %p213
      %p215 = scmp.ne.s32.totalorder %s207, %s210
      %p216 = scmp.eq.s32.totalorder %s23, 0
      %p217 = por %p215, %p216
      %p218 = scmp.ne.s32.totalorder %s207, %s210
      %p219 = scmp.eq.s32.totalorder %s28, 3
      %p220 = por %p218, %p219
      %p221 = scmp.ne.s32.totalorder %s210, %s211
      %p222 = scmp.eq.s32.totalorder %s28, 0
      %p223 = por %p221, %p222
      %p224 = scmp.ne.s32.totalorder %s210, %s211
      %p225 = scmp.eq.s32.totalorder %s29, 3
      %p226 = por %p224, %p225
      %p228 = scmp.ne.s32.totalorder %s211, %s227
      %p229 = scmp.eq.s32.totalorder %s29, 0
      %p230 = por %p228, %p229
      %s231 = ssub.s32 %s31, %s38
      %p232 = scmp.eq.s32.totalorder %s231, 0
      %s234 = sadd.s32 %s233, 1
      %s235 = scalar_select %p232, %s233, %s234
      %p238 = pneg %p232
      %p239 = scmp.eq.s32.totalorder %s23, 3
      %p240 = por %p238, %p239
      %p241 = scmp.ne.s32.totalorder %s233, %s236
      %p242 = scmp.eq.s32.totalorder %s23, 0
      %p243 = por %p241, %p242
      %p244 = scmp.ne.s32.totalorder %s233, %s236
      %p245 = scmp.eq.s32.totalorder %s28, 3
      %p246 = por %p244, %p245
      %p247 = scmp.ne.s32.totalorder %s236, %s237
      %p248 = scmp.eq.s32.totalorder %s28, 0
      %p249 = por %p247, %p248
      %p250 = scmp.ne.s32.totalorder %s236, %s237
      %p251 = scmp.eq.s32.totalorder %s29, 3
      %p252 = por %p250, %p251
      %p254 = scmp.ne.s32.totalorder %s237, %s253
      %p255 = scmp.eq.s32.totalorder %s29, 0
      %p256 = por %p254, %p255
      %s258 = sadd.s32 %s257, 1
      %p261 = scmp.eq.s32.totalorder %s23, 3
      %p262 = scmp.ne.s32.totalorder %s257, %s259
      %p263 = scmp.eq.s32.totalorder %s23, 0
      %p264 = por %p262, %p263
      %p265 = scmp.ne.s32.totalorder %s257, %s259
      %p266 = scmp.eq.s32.totalorder %s28, 3
      %p267 = por %p265, %p266
      %p268 = scmp.ne.s32.totalorder %s259, %s260
      %p269 = scmp.eq.s32.totalorder %s28, 0
      %p270 = por %p268, %p269
      %p271 = scmp.ne.s32.totalorder %s259, %s260
      %p272 = scmp.eq.s32.totalorder %s29, 3
      %p273 = por %p271, %p272
      %p275 = scmp.ne.s32.totalorder %s260, %s274
      %p276 = scmp.eq.s32.totalorder %s29, 0
      %p277 = por %p275, %p276
      %s279 = sadd.s32 %s278, 1
      %p282 = scmp.eq.s32.totalorder %s23, 3
      %p283 = scmp.ne.s32.totalorder %s278, %s280
      %p284 = scmp.eq.s32.totalorder %s23, 0
      %p285 = por %p283, %p284
      %p286 = scmp.ne.s32.totalorder %s278, %s280
      %p287 = scmp.eq.s32.totalorder %s28, 3
      %p288 = por %p286, %p287
      %p289 = scmp.ne.s32.totalorder %s280, %s281
      %p290 = scmp.eq.s32.totalorder %s28, 0
      %p291 = por %p289, %p290
      %p292 = scmp.ne.s32.totalorder %s280, %s281
      %p293 = scmp.eq.s32.totalorder %s29, 3
      %p294 = por %p292, %p293
      %p296 = scmp.ne.s32.totalorder %s281, %s295
      %p297 = scmp.eq.s32.totalorder %s29, 0
      %p298 = por %p296, %p297
      %s300 = sadd.s32 %s299, 1
      %p303 = scmp.eq.s32.totalorder %s23, 3
      %p304 = scmp.ne.s32.totalorder %s299, %s301
      %p305 = scmp.eq.s32.totalorder %s23, 0
      %p306 = por %p304, %p305
      %p307 = scmp.ne.s32.totalorder %s299, %s301
      %p308 = scmp.eq.s32.totalorder %s28, 3
      %p309 = por %p307, %p308
      %p310 = scmp.ne.s32.totalorder %s301, %s302
      %p311 = scmp.eq.s32.totalorder %s28, 0
      %p312 = por %p310, %p311
      %p313 = scmp.ne.s32.totalorder %s301, %s302
      %p314 = scmp.eq.s32.totalorder %s29, 3
      %p315 = por %p313, %p314
      %p317 = scmp.ne.s32.totalorder %s302, %s316
      %p318 = scmp.eq.s32.totalorder %s29, 0
      %p319 = por %p317, %p318
      %s321 = sadd.s32 %s320, 1
      %p324 = scmp.eq.s32.totalorder %s23, 3
      %p325 = scmp.ne.s32.totalorder %s320, %s322
      %p326 = scmp.eq.s32.totalorder %s23, 0
      %p327 = por %p325, %p326
      %p328 = scmp.ne.s32.totalorder %s320, %s322
      %p329 = scmp.eq.s32.totalorder %s28, 3
      %p330 = por %p328, %p329
      %p331 = scmp.ne.s32.totalorder %s322, %s323
      %p332 = scmp.eq.s32.totalorder %s28, 0
      %p333 = por %p331, %p332
      %p334 = scmp.ne.s32.totalorder %s322, %s323
      %p335 = scmp.eq.s32.totalorder %s29, 3
      %p336 = por %p334, %p335
      %p338 = scmp.ne.s32.totalorder %s323, %s337
      %p339 = scmp.eq.s32.totalorder %s29, 0
      %p340 = por %p338, %p339
      %s341 = ssub.s32 %s30, %s42
      %p342 = scmp.eq.s32.totalorder %s341, 0
      %s344 = sadd.s32 %s343, 1
      %s345 = scalar_select %p342, %s343, %s344
      %p348 = pneg %p342
      %p349 = scmp.eq.s32.totalorder %s23, 3
      %p350 = por %p348, %p349
      %p351 = scmp.ne.s32.totalorder %s343, %s346
      %p352 = scmp.eq.s32.totalorder %s23, 0
      %p353 = por %p351, %p352
      %p354 = scmp.ne.s32.totalorder %s343, %s346
      %p355 = scmp.eq.s32.totalorder %s28, 3
      %p356 = por %p354, %p355
      %p357 = scmp.ne.s32.totalorder %s346, %s347
      %p358 = scmp.eq.s32.totalorder %s28, 0
      %p359 = por %p357, %p358
      %p360 = scmp.ne.s32.totalorder %s346, %s347
      %p361 = scmp.eq.s32.totalorder %s29, 3
      %p362 = por %p360, %p361
      %p364 = scmp.ne.s32.totalorder %s347, %s363
      %p365 = scmp.eq.s32.totalorder %s29, 0
      %p366 = por %p364, %p365
      %p367 = scmp.le.s32.totalorder 1, %s23
      %p368 = scmp.lt.s32.totalorder %s23, 5
      %p369 = pnand %p367, %p368
      %p370 = pneg %p369
      // Predicated region
      $region9: #{multi_branch_forward.3} parent=5 // pred_check
        _
      $region10: #{multi_branch_forward.3} parent=5 // pred_check_branch
        %372 = sbr.rel (%p369) target = $region12
      $region11: #{multi_branch_forward.3} parent=5 // pred_region
        %s373 = ssub.s32 %s23, 1
        // Predicated region
        $region13: #{multi_branch_forward.3} parent=11 // pred_check
          %p374 = pneg %p61
        $region14: #{multi_branch_forward.3} parent=11 // pred_check_branch
          %376 = sbr.rel (%p374) target = $region16
        $region15: #{multi_branch_forward.3} parent=11 // pred_region
          %s377 = smul.u32 2, %s32
          %p378 = scmp.lt.s32.totalorder %s377, 1
          %s379 = scalar_select %p378, %s377, 1
          %s380 = smul.addr %s379, 2
          %s381 = smul.addr %s380, 8
          %s382 = scalar_lea.vmem %s0, %s381
          %s383 = smul.u32 2, %s32
        $region16: #{multi_branch_forward.3} parent=11 // pred_fallthru
          _
        // Predicated region
        $region17: #{multi_branch_forward.3} parent=11 // pred_check
          %p384 = pneg %p87
        $region18: #{multi_branch_forward.3} parent=11 // pred_check_branch
          %386 = sbr.rel (%p384) target = $region20
        $region19: #{multi_branch_forward.3} parent=11 // pred_region
          %s387 = smul.u32 2, %s32
          %p388 = scmp.lt.s32.totalorder %s387, 1
          %s389 = scalar_select %p388, %s387, 1
          %s390 = scalar_lea.vmem %s1, %s389
          %s391 = smul.u32 2, %s32
        $region20: #{multi_branch_forward.3} parent=11 // pred_fallthru
          _
        // Predicated region
        $region21: #{multi_branch_forward.3} parent=11 // pred_check
          %p392 = pneg %p108
        $region22: #{multi_branch_forward.3} parent=11 // pred_check_branch
          %394 = sbr.rel (%p392) target = $region24
        $region23: #{multi_branch_forward.3} parent=11 // pred_region
          %s396 = ssub.s32 16, 16
          %397 = vsyncadd [#allocation6], %s396
          %s399 = sshll.u32 %s2, 4
          %s400 = int_to_ptr.vmem [resolvable:$true] %s399
          %402 = dma.vmem_to_smem %s400, 16, [#allocation3], [#allocation6]
        $region24: #{multi_branch_forward.3} parent=11 // pred_fallthru
          _
        // Predicated region
        $region25: #{multi_branch_forward.3} parent=11 // pred_check
          %p403 = pneg %p129
        $region26: #{multi_branch_forward.3} parent=11 // pred_check_branch
          %405 = sbr.rel (%p403) target = $region28
        $region27: #{multi_branch_forward.3} parent=11 // pred_region
          _
        $region28: #{multi_branch_forward.3} parent=11 // pred_fallthru
          _
        // Predicated region
        $region29: #{multi_branch_forward.3} parent=11 // pred_check
          %p406 = pneg %p150
        $region30: #{multi_branch_forward.3} parent=11 // pred_check_branch
          %408 = sbr.rel (%p406) target = $region32
        $region31: #{multi_branch_forward.3} parent=11 // pred_region
          %s410 = ssub.s32 16, 16
          %411 = vsyncadd [#allocation4], %s410
          %s413 = sshll.u32 [#allocation7], 4
          %s414 = int_to_ptr.vmem [resolvable:$true] %s413
          %416 = dma.hbm_to_vmem [thread:$0]  %s4, 16, %s414, [#allocation4]
        $region32: #{multi_branch_forward.3} parent=11 // pred_fallthru
          _
        // Predicated region
        $region33: #{multi_branch_forward.3} parent=11 // pred_check
          %p417 = pneg %p171
        $region34: #{multi_branch_forward.3} parent=11 // pred_check_branch
          %419 = sbr.rel (%p417) target = $region36
        $region35: #{multi_branch_forward.3} parent=11 // pred_region
          _
        $region36: #{multi_branch_forward.3} parent=11 // pred_fallthru
          _
        // Predicated region
        $region37: #{multi_branch_forward.3} parent=11 // pred_check
          %p420 = pneg %p270
        $region38: #{multi_branch_forward.3} parent=11 // pred_check_branch
          %422 = sbr.rel (%p420) target = $region40
        $region39: #{multi_branch_forward.3} parent=11 // pred_region
          _
        $region40: #{multi_branch_forward.3} parent=11 // pred_fallthru
          _
        // Predicated region
        $region41: #{multi_branch_forward.3} parent=11 // pred_check
          %p423 = pneg %p291
        $region42: #{multi_branch_forward.3} parent=11 // pred_check_branch
          %425 = sbr.rel (%p423) target = $region44
        $region43: #{multi_branch_forward.3} parent=11 // pred_region
          _
        $region44: #{multi_branch_forward.3} parent=11 // pred_fallthru
          _
        // Predicated region
        $region45: #{multi_branch_forward.3} parent=11 // pred_check
          %p426 = pneg %p312
        $region46: #{multi_branch_forward.3} parent=11 // pred_check_branch
          %428 = sbr.rel (%p426) target = $region48
        $region47: #{multi_branch_forward.3} parent=11 // pred_region
          _
        $region48: #{multi_branch_forward.3} parent=11 // pred_fallthru
          _
        // Predicated region
        $region49: #{multi_branch_forward.3} parent=11 // pred_check
          %p429 = pneg %p333
        $region50: #{multi_branch_forward.3} parent=11 // pred_check_branch
          %431 = sbr.rel (%p429) target = $region52
        $region51: #{multi_branch_forward.3} parent=11 // pred_region
          %s433 = ssub.s32 16, 16
          %434 = vsyncadd [#allocation9], %s433
          %s436 = sshll.u32 [#allocation8], 4
          %s437 = int_to_ptr.vmem [resolvable:$true] %s436
          %439 = dma.hbm_to_vmem [thread:$0]  %s12, 16, %s437, [#allocation9]
        $region52: #{multi_branch_forward.3} parent=11 // pred_fallthru
          _
      $region12: #{multi_branch_forward.3} parent=5 // pred_fallthru
        _
      %p440 = scmp.lt.s32.totalorder %s23, 4
      // Predicated region
      $region53: #{multi_branch_forward.3} parent=5 // pred_check
        %p441 = pneg %p440
      $region54: #{multi_branch_forward.3} parent=5 // pred_check_branch
        %443 = sbr.rel (%p441) target = $region56
      $region55: #{multi_branch_forward.3} parent=5 // pred_region
        // Predicated region
        $region57: #{multi_branch_forward.3} parent=55 // pred_check
          %p444 = pneg %p191
        $region58: #{multi_branch_forward.3} parent=55 // pred_check_branch
          %446 = sbr.rel (%p444) target = $region60
        $region59: #{multi_branch_forward.3} parent=55 // pred_region
          %p447 = scmp.lt.s32.totalorder %s31, 3
          %s448 = scalar_select %p447, %s31, 3
          %s449 = smul.addr %s448, 2
          %s450 = scalar_lea.vmem %s6, %s449
        $region60: #{multi_branch_forward.3} parent=55 // pred_fallthru
          _
        // Predicated region
        $region61: #{multi_branch_forward.3} parent=55 // pred_check
          %p451 = pneg %p217
        $region62: #{multi_branch_forward.3} parent=55 // pred_check_branch
          %453 = sbr.rel (%p451) target = $region64
        $region63: #{multi_branch_forward.3} parent=55 // pred_region
          %p454 = scmp.lt.s32.totalorder %s31, 3
          %s455 = scalar_select %p454, %s31, 3
          %s456 = smul.addr %s455, 2
          %s457 = smul.addr %s456, 4
          %s458 = scalar_lea.vmem %s7, %s457
        $region64: #{multi_branch_forward.3} parent=55 // pred_fallthru
          _
        // Predicated region
        $region65: #{multi_branch_forward.3} parent=55 // pred_check
          %p459 = pneg %p243
        $region66: #{multi_branch_forward.3} parent=55 // pred_check_branch
          %461 = sbr.rel (%p459) target = $region68
        $region67: #{multi_branch_forward.3} parent=55 // pred_region
          %p462 = scmp.lt.s32.totalorder %s31, 3
          %s463 = scalar_select %p462, %s31, 3
          %s464 = scalar_lea.vmem %s8, %s463
        $region68: #{multi_branch_forward.3} parent=55 // pred_fallthru
          _
      $region56: #{multi_branch_forward.3} parent=5 // pred_fallthru
        _
      %p465 = scmp.le.s32.totalorder 1, %s23
      %p466 = scmp.lt.s32.totalorder %s23, 5
      %p467 = pnand %p465, %p466
      %p468 = pneg %p467
      // Predicated region
      $region69: #{multi_branch_forward.3} parent=5 // pred_check
        _
      $region70: #{multi_branch_forward.3} parent=5 // pred_check_branch
        %470 = sbr.rel (%p467) target = $region72
      $region71: #{multi_branch_forward.3} parent=5 // pred_region
        %s471 = ssub.s32 %s23, 1
        // Predicated region
        $region73: #{multi_branch_forward.3} parent=71 // pred_check
          %p472 = pneg %p108
        $region74: #{multi_branch_forward.3} parent=71 // pred_check_branch
          %474 = sbr.rel (%p472) target = $region76
        $region75: #{multi_branch_forward.3} parent=71 // pred_region
          %475 = dma.done [#allocation6], 16
        $region76: #{multi_branch_forward.3} parent=71 // pred_fallthru
          _
        // Predicated region
        $region77: #{multi_branch_forward.3} parent=71 // pred_check
          %p476 = pneg %p150
        $region78: #{multi_branch_forward.3} parent=71 // pred_check_branch
          %478 = sbr.rel (%p476) target = $region80
        $region79: #{multi_branch_forward.3} parent=71 // pred_region
          %479 = dma.done [#allocation4], 16
        $region80: #{multi_branch_forward.3} parent=71 // pred_fallthru
          _
        // Predicated region
        $region81: #{multi_branch_forward.3} parent=71 // pred_check
          %p480 = pneg %p333
        $region82: #{multi_branch_forward.3} parent=71 // pred_check_branch
          %482 = sbr.rel (%p480) target = $region84
        $region83: #{multi_branch_forward.3} parent=71 // pred_region
          %483 = dma.done [#allocation9], 16
        $region84: #{multi_branch_forward.3} parent=71 // pred_fallthru
          _
        %484 = sfence
        %s485 = smul.u32 2, %s32
        %p486 = scmp.lt.s32.totalorder %s485, 1
        %s487 = scalar_select %p486, %s485, 1
        %s488 = smul.addr %s487, 2
        %s489 = smul.addr %s488, 8
        %s490 = scalar_lea.vmem %s0, %s489
        %p491 = pneg %p61
        %p492 = pneg %p58
        %s493 = smul.u32 2, %s32
        %p494 = scmp.lt.s32.totalorder %s493, 1
        %s495 = scalar_select %p494, %s493, 1
        %s496 = scalar_lea.vmem %s1, %s495
        %p497 = pneg %p87
        %p498 = pneg %p84
        %p499 = pneg %p108
        %p500 = pneg %p105
        %p501 = pneg %p129
        %p502 = pneg %p126
        %p503 = pneg %p150
        %p504 = pneg %p147
        %p505 = pneg %p171
        %p506 = pneg %p168
        %p507 = scmp.lt.s32.totalorder %s33, 3
        %s508 = scalar_select %p507, %s33, 3
        %s509 = smul.addr %s508, 2
        %s510 = scalar_lea.vmem %s6, %s509
        %p511 = pneg %p197
        %p512 = pneg %p194
        %p513 = scmp.lt.s32.totalorder %s33, 3
        %s514 = scalar_select %p513, %s33, 3
        %s515 = smul.addr %s514, 2
        %s516 = smul.addr %s515, 4
        %s517 = scalar_lea.vmem %s7, %s516
        %p518 = pneg %p223
        %p519 = pneg %p220
        %p520 = scmp.lt.s32.totalorder %s33, 3
        %s521 = scalar_select %p520, %s33, 3
        %s522 = scalar_lea.vmem %s8, %s521
        %p523 = pneg %p249
        %p524 = pneg %p246
        %p525 = pneg %p270
        %p526 = pneg %p267
        %p527 = pneg %p291
        %p528 = pneg %p288
        %p529 = pneg %p312
        %p530 = pneg %p309
        %p531 = pneg %p333
        %p532 = pneg %p330
        %p533 = pneg %p359
        %p534 = pneg %p356
        %s535 = smul.u32 2, %s32
        %p536 = scmp.lt.s32.totalorder %s535, 1
        %s537 = scalar_select %p536, %s535, 1
        %s538 = smul.addr %s537, 2
        %s539 = smul.addr %s538, 8
        %s540 = scalar_lea.vmem %s0, %s539
        %s541 = smul.u32 2, %s32
        %s542 = smul.u32 2, %s32
        %p543 = scmp.lt.s32.totalorder %s542, 1
        %s544 = scalar_select %p543, %s542, 1
        %s545 = scalar_lea.vmem %s1, %s544
        %s546 = smul.u32 2, %s32
        %p547 = scmp.lt.s32.totalorder %s33, 3
        %s548 = scalar_select %p547, %s33, 3
        %s549 = smul.addr %s548, 2
        %s550 = scalar_lea.vmem %s6, %s549
        %p551 = scmp.lt.s32.totalorder %s33, 3
        %s552 = scalar_select %p551, %s33, 3
        %s553 = smul.addr %s552, 2
        %s554 = smul.addr %s553, 4
        %s555 = scalar_lea.vmem %s7, %s554
        %p556 = scmp.lt.s32.totalorder %s33, 3
        %s557 = scalar_select %p556, %s33, 3
        %s558 = scalar_lea.vmem %s8, %s557
        %s559 = smul.u32 2, %s32
        %p561 = scmp.eq.s32.totalorder %s33, 0
        // Predicated region
        $region85: #{multi_branch_forward.3} parent=71 // pred_check
          %p562 = pneg %p561
        $region86: #{multi_branch_forward.3} parent=71 // pred_check_branch
          %564 = sbr.rel (%p562) target = $region88
        $region87: #{multi_branch_forward.3} parent=71 // pred_region
          %v565 = vld [vmem:[%s540] sm:$0xff]
          %v566 = vld [vmem:[%s540 + $0x8] sm:$0xff]
          %v567 = vld [vmem:[%s540 + $0x10] sm:$0xff]
          %v568 = vld [vmem:[%s540 + $0x18] sm:$0xff]
          %v569 = vld [vmem:[%s3] sm:$0x1]
          %v570 = vld [vmem:[#allocation7] sm:$0x1]
          %v572 = vlaneseq
          %v573 = vshrl.u32 %v572, 7
          %v574 = vsub.s32 0, %v573
          %v575 = vrot.slane %v570, %v574
          %vm577 = vcmask 7168
          %v579 = vsel %vm577, %v565, 0
          %v582 = vsel %vm577, %v566, 0
          %v585 = vsel %vm577, %v567, 0
          %v588 = vsel %vm577, %v568, 0
          %vm590 = vcmask 1040384
          %v592 = vsel %vm590, %v569, 0
          %594 = vmatprep.subr.mxu0 0.0
          %595 = vmatpush1.msra.mxu0 %v592
          %596 = vmatprep.subr.mxu0 0.0
          %597 = vmatpush1.msra.mxu0 0.0
          %598 = vmatprep.subr.mxu0 0.0
          %599 = vmatpush1.msra.mxu0 0.0
          %600 = vmatprep.subr.mxu0 0.0
          %601 = vmatpush1.msra.mxu0 0.0
          %602 = vmatprep.subr.mxu0 0.0
          %603 = vmatpush1.msra.mxu0 0.0
          %604 = vmatprep.subr.mxu0 0.0
          %605 = vmatpush1.msra.mxu0 0.0
          %606 = vmatprep.subr.mxu0 0.0
          %607 = vmatpush1.msra.mxu0 0.0
          %608 = vmatprep.subr.mxu0 0.0
          %609 = vmatpush1.msra.mxu0 0.0
          %610 = vmatprep.subr.mxu0 0.0
          %611 = vmatpush1.msra.mxu0 0.0
          %612 = vmatprep.subr.mxu0 0.0
          %613 = vmatpush1.msra.mxu0 0.0
          %614 = vmatprep.subr.mxu0 0.0
          %615 = vmatpush1.msra.mxu0 0.0
          %616 = vmatprep.subr.mxu0 0.0
          %617 = vmatpush1.msra.mxu0 0.0
          %618 = vmatprep.subr.mxu0 0.0
          %619 = vmatpush1.msra.mxu0 0.0
          %620 = vmatprep.subr.mxu0 0.0
          %621 = vmatpush1.msra.mxu0 0.0
          %622 = vmatprep.subr.mxu0 0.0
          %623 = vmatpush1.msra.mxu0 0.0
          %624 = vmatprep.subr.mxu0 0.0
          %625 = vmatpush1.msra.mxu0 0.0
          %626 = vmatprep.subr.mxu0 0.0
          %627 = vmatpush1.msra.mxu0 0.0
          %628 = vmatprep.subr.mxu0 0.0
          %629 = vmatpush1.msra.mxu0 0.0
          %630 = vmatprep.subr.mxu0 0.0
          %631 = vmatpush1.msra.mxu0 0.0
          %632 = vmatprep.subr.mxu0 0.0
          %633 = vmatpush1.msra.mxu0 0.0
          %634 = vmatprep.subr.mxu0 0.0
          %635 = vmatpush1.msra.mxu0 0.0
          %636 = vmatprep.subr.mxu0 0.0
          %637 = vmatpush1.msra.mxu0 0.0
          %638 = vmatprep.subr.mxu0 0.0
          %639 = vmatpush1.msra.mxu0 0.0
          %640 = vmatprep.subr.mxu0 0.0
          %641 = vmatpush1.msra.mxu0 0.0
          %642 = vmatprep.subr.mxu0 0.0
          %643 = vmatpush1.msra.mxu0 0.0
          %644 = vmatprep.subr.mxu0 0.0
          %645 = vmatpush1.msra.mxu0 0.0
          %646 = vmatprep.subr.mxu0 0.0
          %647 = vmatpush1.msra.mxu0 0.0
          %648 = vmatprep.subr.mxu0 0.0
          %649 = vmatpush1.msra.mxu0 0.0
          %650 = vmatprep.subr.mxu0 0.0
          %651 = vmatpush1.msra.mxu0 0.0
          %652 = vmatprep.subr.mxu0 0.0
          %653 = vmatpush1.msra.mxu0 0.0
          %654 = vmatprep.subr.mxu0 0.0
          %655 = vmatpush1.msra.mxu0 0.0
          %656 = vmatprep.subr.mxu0 0.0
          %657 = vmatpush1.msra.mxu0 0.0
          %658 = vmatprep.mubr.f32.mxu0 0.0
          %659 = vmatmul.mubr.f32.gmra.mrb[0].mxu0 %v579
          %v660 = vpop.f32.mrb[0].mxu0
          %v661 = vadd.f32 %v575, %v660
          %v662 = vpop.f32.mrb[0].mxu0
          %663 = vmatprep.mubr.f32.mxu0 0.0
          %664 = vmatmul.mubr.f32.gmra.mrb[0].mxu0 %v582
          %v665 = vpop.f32.mrb[0].mxu0
          %v666 = vadd.f32 %v575, %v665
          %v667 = vpop.f32.mrb[0].mxu0
          %668 = vmatprep.mubr.f32.mxu0 0.0
          %669 = vmatmul.mubr.f32.gmra.mrb[0].mxu0 %v585
          %v670 = vpop.f32.mrb[0].mxu0
          %v671 = vadd.f32 %v575, %v670
          %v672 = vpop.f32.mrb[0].mxu0
          %673 = vmatprep.mubr.f32.mxu0 0.0
          %674 = vmatmul.mubr.f32.gmra.mrb[0].mxu0 %v588
          %v675 = vpop.f32.mrb[0].mxu0
          %v676 = vadd.f32 %v575, %v675
          %v677 = vpop.f32.mrb[0].mxu0
          %678 = vdwg.mxu0
          %v679 = vld [vmem:[%s5] sm:$0xff]
          %v680 = vld [vmem:[%s5 + $0x8] sm:$0xff]
          %v681 = vadd.f32 %v661, %v679
          %v682 = vadd.f32 %v666, %v680
          %v683 = vadd.f32 %v671, %v679
          %v684 = vadd.f32 %v676, %v680
          %vm685 = vcmask 31744
          %686 = vst.msk [vmem:[#allocation2] sm:$0xff] %vm685, %v681
          %687 = vst.msk [vmem:[#allocation2 + $0x8] sm:$0xff] %vm685, %v682
          %688 = vst.msk [vmem:[#allocation2 + $0x10] sm:$0xff] %vm685, %v683
          %689 = vst.msk [vmem:[#allocation2 + $0x18] sm:$0xff] %vm685, %v684
        $region88: #{multi_branch_forward.3} parent=71 // pred_fallthru
          _
        %v690 = vld [vmem:[#allocation2] sm:$0xff]
        %v691 = vld [vmem:[#allocation2 + $0x8] sm:$0xff]
        %v692 = vld [vmem:[#allocation2 + $0x10] sm:$0xff]
        %v693 = vld [vmem:[#allocation2 + $0x18] sm:$0xff]
        %v694 = vpack.c.bf16 %v691, %v690
        %v695 = vpack.c.bf16 %v693, %v692
        %v696 = vld [vmem:[%s550] sm:$0x3]
        %v697 = vld [vmem:[%s555] sm:$0xf]
        %v698 = vld [vmem:[%s555 + $0x4] sm:$0xf]
        %v699 = vld [vmem:[%s558] sm:$0x1]
        %v701 = vlaneseq
        %v702 = vshrl.u32 %v701, 7
        %v703 = vsub.s32 0, %v702
        %v704 = vrot.slane %v699, %v703
        %vm706 = vcmask 31744
        %v708 = vsel %vm706, %v694, 0
        %v711 = vsel %vm706, %v695, 0
        %vm713 = vcmask 1041408
        %v715 = vsel %vm713, %v696, 0
        %717 = vmatprep.subr.bf16.mxu0 0
        %718 = vmatpush1.bf16.msra.mxu0 %v715
        %719 = vmatprep.subr.bf16.mxu0 0
        %720 = vmatpush1.bf16.msra.mxu0 0
        %721 = vmatprep.subr.bf16.mxu0 0
        %722 = vmatpush1.bf16.msra.mxu0 0
        %723 = vmatprep.subr.bf16.mxu0 0
        %724 = vmatpush1.bf16.msra.mxu0 0
        %725 = vmatprep.subr.bf16.mxu0 0
        %726 = vmatpush1.bf16.msra.mxu0 0
        %727 = vmatprep.subr.bf16.mxu0 0
        %728 = vmatpush1.bf16.msra.mxu0 0
        %729 = vmatprep.subr.bf16.mxu0 0
        %730 = vmatpush1.bf16.msra.mxu0 0
        %731 = vmatprep.subr.bf16.mxu0 0
        %732 = vmatpush1.bf16.msra.mxu0 0
        %733 = vmatprep.subr.bf16.mxu0 0
        %734 = vmatpush1.bf16.msra.mxu0 0
        %735 = vmatprep.subr.bf16.mxu0 0
        %736 = vmatpush1.bf16.msra.mxu0 0
        %737 = vmatprep.subr.bf16.mxu0 0
        %738 = vmatpush1.bf16.msra.mxu0 0
        %739 = vmatprep.subr.bf16.mxu0 0
        %740 = vmatpush1.bf16.msra.mxu0 0
        %741 = vmatprep.subr.bf16.mxu0 0
        %742 = vmatpush1.bf16.msra.mxu0 0
        %743 = vmatprep.subr.bf16.mxu0 0
        %744 = vmatpush1.bf16.msra.mxu0 0
        %745 = vmatprep.subr.bf16.mxu0 0
        %746 = vmatpush1.bf16.msra.mxu0 0
        %747 = vmatprep.subr.bf16.mxu0 0
        %748 = vmatpush1.bf16.msra.mxu0 0
        %749 = vmatprep.mubr.bf16.mxu0 0
        %750 = vmatmul.mubr.bf16.gmra.mrb[0].mxu0 %v708
        %v751 = vpop.f32.mrb[0].mxu0
        %v752 = vadd.f32 %v704, %v751
        %v753 = vpop.f32.mrb[0].mxu0
        %v754 = vpop.f32.mrb[0].mxu0
        %v755 = vadd.f32 %v704, %v754
        %v756 = vpop.f32.mrb[0].mxu0
        %757 = vmatprep.mubr.bf16.mxu0 0
        %758 = vmatmul.mubr.bf16.gmra.mrb[0].mxu0 %v711
        %v759 = vpop.f32.mrb[0].mxu0
        %v760 = vadd.f32 %v704, %v759
        %v761 = vpop.f32.mrb[0].mxu0
        %v762 = vpop.f32.mrb[0].mxu0
        %v763 = vadd.f32 %v704, %v762
        %v764 = vpop.f32.mrb[0].mxu0
        %765 = vdwg.mxu0
        %v766 = vpack.c.bf16 %v755, %v752
        %v767 = vpack.c.bf16 %v763, %v760
        %769 = vrot.lane.b32.xlu0 %v766, 124
        %v770 = vpop.permute.xlu0 %769
        %vm771 = vcmask 15360
        %v773 = vsel %vm771, %v766, 0
        %v776 = vsel %vm771, %v770, 0
        %778 = vmatprep.subr.bf16.mxu0 0
        %779 = vmatpush1.bf16.xpose.msra.mxu0 %v776
        %780 = vmatprep.subr.bf16.mxu0 0
        %781 = vmatpush1.bf16.xpose.msra.mxu0 0
        %782 = vmatprep.subr.bf16.mxu0 0
        %783 = vmatpush1.bf16.xpose.msra.mxu0 0
        %784 = vmatprep.subr.bf16.mxu0 0
        %785 = vmatpush1.bf16.xpose.msra.mxu0 0
        %786 = vmatprep.subr.bf16.mxu0 0
        %787 = vmatpush1.bf16.xpose.msra.mxu0 0
        %788 = vmatprep.subr.bf16.mxu0 0
        %789 = vmatpush1.bf16.xpose.msra.mxu0 0
        %790 = vmatprep.subr.bf16.mxu0 0
        %791 = vmatpush1.bf16.xpose.msra.mxu0 0
        %792 = vmatprep.subr.bf16.mxu0 0
        %793 = vmatpush1.bf16.xpose.msra.mxu0 0
        %794 = vmatprep.subr.bf16.mxu0 0
        %795 = vmatpush1.bf16.xpose.msra.mxu0 0
        %796 = vmatprep.subr.bf16.mxu0 0
        %797 = vmatpush1.bf16.xpose.msra.mxu0 0
        %798 = vmatprep.subr.bf16.mxu0 0
        %799 = vmatpush1.bf16.xpose.msra.mxu0 0
        %800 = vmatprep.subr.bf16.mxu0 0
        %801 = vmatpush1.bf16.xpose.msra.mxu0 0
        %802 = vmatprep.subr.bf16.mxu0 0
        %803 = vmatpush1.bf16.xpose.msra.mxu0 0
        %804 = vmatprep.subr.bf16.mxu0 0
        %805 = vmatpush1.bf16.xpose.msra.mxu0 0
        %806 = vmatprep.subr.bf16.mxu0 0
        %807 = vmatpush1.bf16.xpose.msra.mxu0 0
        %808 = vmatprep.subr.bf16.mxu0 0
        %809 = vmatpush1.bf16.xpose.msra.mxu0 0
        %810 = vmatprep.mubr.bf16.mxu0 0
        %811 = vmatmul.mubr.bf16.gmra.mrb[0].mxu0 %v773
        %v812 = vpop.f32.mrb[0].mxu0
        %v813 = vadd.f32 0.0, %v812
        %v814 = vpop.f32.mrb[0].mxu0
        %v815 = vpop.f32.mrb[0].mxu0
        %v816 = vadd.f32 0.0, %v815
        %v817 = vpop.f32.mrb[0].mxu0
        %818 = vdwg.mxu0
        %820 = vrot.lane.b32.xlu0 %v767, 124
        %v821 = vpop.permute.xlu0 %820
        %v823 = vsel %vm771, %v767, 0
        %v826 = vsel %vm771, %v821, 0
        %828 = vmatprep.subr.bf16.mxu0 0
        %829 = vmatpush1.bf16.xpose.msra.mxu0 %v826
        %830 = vmatprep.subr.bf16.mxu0 0
        %831 = vmatpush1.bf16.xpose.msra.mxu0 0
        %832 = vmatprep.subr.bf16.mxu0 0
        %833 = vmatpush1.bf16.xpose.msra.mxu0 0
        %834 = vmatprep.subr.bf16.mxu0 0
        %835 = vmatpush1.bf16.xpose.msra.mxu0 0
        %836 = vmatprep.subr.bf16.mxu0 0
        %837 = vmatpush1.bf16.xpose.msra.mxu0 0
        %838 = vmatprep.subr.bf16.mxu0 0
        %839 = vmatpush1.bf16.xpose.msra.mxu0 0
        %840 = vmatprep.subr.bf16.mxu0 0
        %841 = vmatpush1.bf16.xpose.msra.mxu0 0
        %842 = vmatprep.subr.bf16.mxu0 0
        %843 = vmatpush1.bf16.xpose.msra.mxu0 0
        %844 = vmatprep.subr.bf16.mxu0 0
        %845 = vmatpush1.bf16.xpose.msra.mxu0 0
        %846 = vmatprep.subr.bf16.mxu0 0
        %847 = vmatpush1.bf16.xpose.msra.mxu0 0
        %848 = vmatprep.subr.bf16.mxu0 0
        %849 = vmatpush1.bf16.xpose.msra.mxu0 0
        %850 = vmatprep.subr.bf16.mxu0 0
        %851 = vmatpush1.bf16.xpose.msra.mxu0 0
        %852 = vmatprep.subr.bf16.mxu0 0
        %853 = vmatpush1.bf16.xpose.msra.mxu0 0
        %854 = vmatprep.subr.bf16.mxu0 0
        %855 = vmatpush1.bf16.xpose.msra.mxu0 0
        %856 = vmatprep.subr.bf16.mxu0 0
        %857 = vmatpush1.bf16.xpose.msra.mxu0 0
        %858 = vmatprep.subr.bf16.mxu0 0
        %859 = vmatpush1.bf16.xpose.msra.mxu0 0
        %860 = vmatprep.mubr.bf16.mxu0 0
        %861 = vmatmul.mubr.bf16.gmra.mrb[0].mxu0 %v823
        %v862 = vpop.f32.mrb[0].mxu0
        %v863 = vadd.f32 0.0, %v862
        %v864 = vpop.f32.mrb[0].mxu0
        %v865 = vpop.f32.mrb[0].mxu0
        %v866 = vadd.f32 0.0, %v865
        %v867 = vpop.f32.mrb[0].mxu0
        %868 = vdwg.mxu0
        %v869 = vmul.f32 %v813, 0.70710677
        %v870 = vmul.f32 %v816, 0.70710677
        %v871 = vmul.f32 %v863, 0.70710677
        %v872 = vmul.f32 %v866, 0.70710677
        %vm873 = vcmask 130048
        %v874 = vsel %vm873, %v869, -inf
        %875 = vmax.xlane.f32.xlu0 %v874
        %v876 = vpop.xlane.xlu0 %875
        %v877 = vsel %vm873, %v870, -inf
        %878 = vmax.xlane.f32.xlu0 %v877
        %v879 = vpop.xlane.xlu0 %878
        %v880 = vsel %vm873, %v871, -inf
        %881 = vmax.xlane.f32.xlu0 %v880
        %v882 = vpop.xlane.xlu0 %881
        %v883 = vsel %vm873, %v872, -inf
        %884 = vmax.xlane.f32.xlu0 %v883
        %v885 = vpop.xlane.xlu0 %884
        %v886 = vsub.f32 %v869, %v876
        %v887 = vsub.f32 %v870, %v879
        %v888 = vsub.f32 %v871, %v882
        %v889 = vsub.f32 %v872, %v885
        %v890 = vmul.f32 %v886, 1.442695
        %v891 = vpow.pop %v890
        %v892 = vmul.f32 %v887, 1.442695
        %v893 = vpow.pop %v892
        %v894 = vmul.f32 %v888, 1.442695
        %v895 = vpow.pop %v894
        %v896 = vmul.f32 %v889, 1.442695
        %v897 = vpow.pop %v896
        %v898 = vsel %vm873, %v891, 0.0
        %899 = vadd.xlane.f32.xlu0 %v898
        %v900 = vpop.xlane.xlu0 %899
        %v901 = vsel %vm873, %v893, 0.0
        %902 = vadd.xlane.f32.xlu0 %v901
        %v903 = vpop.xlane.xlu0 %902
        %v904 = vsel %vm873, %v895, 0.0
        %905 = vadd.xlane.f32.xlu0 %v904
        %v906 = vpop.xlane.xlu0 %905
        %v907 = vsel %vm873, %v897, 0.0
        %908 = vadd.xlane.f32.xlu0 %v907
        %v909 = vpop.xlane.xlu0 %908
        %v910 = vrcp.pop %v900
        %v911 = vrcp.pop %v903
        %v912 = vrcp.pop %v906
        %v913 = vrcp.pop %v909
        %v914 = vmul.f32 %v891, %v910
        %v915 = vmul.f32 %v893, %v911
        %v916 = vmul.f32 %v895, %v912
        %v917 = vmul.f32 %v897, %v913
        %v918 = vpack.c.bf16 %v915, %v914
        %v919 = vpack.c.bf16 %v917, %v916
        %920 = vrot.lane.b32.xlu0 %v766, 120
        %v921 = vpop.permute.xlu0 %920
        %v924 = vsel %vm873, %v918, 0
        %926 = vmatprep.subr.bf16.mxu0 0
        %927 = vmatpush1.bf16.msra.mxu0 %v921
        %928 = vmatprep.subr.bf16.mxu0 0
        %929 = vmatpush1.bf16.msra.mxu0 0
        %930 = vmatprep.subr.bf16.mxu0 0
        %931 = vmatpush1.bf16.msra.mxu0 0
        %932 = vmatprep.subr.bf16.mxu0 0
        %933 = vmatpush1.bf16.msra.mxu0 0
        %934 = vmatprep.subr.bf16.mxu0 0
        %935 = vmatpush1.bf16.msra.mxu0 0
        %936 = vmatprep.subr.bf16.mxu0 0
        %937 = vmatpush1.bf16.msra.mxu0 0
        %938 = vmatprep.subr.bf16.mxu0 0
        %939 = vmatpush1.bf16.msra.mxu0 0
        %940 = vmatprep.subr.bf16.mxu0 0
        %941 = vmatpush1.bf16.msra.mxu0 0
        %942 = vmatprep.subr.bf16.mxu0 0
        %943 = vmatpush1.bf16.msra.mxu0 0
        %944 = vmatprep.subr.bf16.mxu0 0
        %945 = vmatpush1.bf16.msra.mxu0 0
        %946 = vmatprep.subr.bf16.mxu0 0
        %947 = vmatpush1.bf16.msra.mxu0 0
        %948 = vmatprep.subr.bf16.mxu0 0
        %949 = vmatpush1.bf16.msra.mxu0 0
        %950 = vmatprep.subr.bf16.mxu0 0
        %951 = vmatpush1.bf16.msra.mxu0 0
        %952 = vmatprep.subr.bf16.mxu0 0
        %953 = vmatpush1.bf16.msra.mxu0 0
        %954 = vmatprep.subr.bf16.mxu0 0
        %955 = vmatpush1.bf16.msra.mxu0 0
        %956 = vmatprep.subr.bf16.mxu0 0
        %957 = vmatpush1.bf16.msra.mxu0 0
        %958 = vmatprep.mubr.bf16.mxu0 0
        %959 = vmatmul.mubr.bf16.gmra.mrb[0].mxu0 %v924
        %v960 = vpop.f32.mrb[0].mxu0
        %v961 = vadd.f32 0.0, %v960
        %v962 = vpop.f32.mrb[0].mxu0
        %v963 = vpop.f32.mrb[0].mxu0
        %v964 = vadd.f32 0.0, %v963
        %v965 = vpop.f32.mrb[0].mxu0
        %966 = vdwg.mxu0
        %967 = vrot.lane.b32.xlu0 %v767, 120
        %v968 = vpop.permute.xlu0 %967
        %v971 = vsel %vm873, %v919, 0
        %973 = vmatprep.subr.bf16.mxu0 0
        %974 = vmatpush1.bf16.msra.mxu0 %v968
        %975 = vmatprep.subr.bf16.mxu0 0
        %976 = vmatpush1.bf16.msra.mxu0 0
        %977 = vmatprep.subr.bf16.mxu0 0
        %978 = vmatpush1.bf16.msra.mxu0 0
        %979 = vmatprep.subr.bf16.mxu0 0
        %980 = vmatpush1.bf16.msra.mxu0 0
        %981 = vmatprep.subr.bf16.mxu0 0
        %982 = vmatpush1.bf16.msra.mxu0 0
        %983 = vmatprep.subr.bf16.mxu0 0
        %984 = vmatpush1.bf16.msra.mxu0 0
        %985 = vmatprep.subr.bf16.mxu0 0
        %986 = vmatpush1.bf16.msra.mxu0 0
        %987 = vmatprep.subr.bf16.mxu0 0
        %988 = vmatpush1.bf16.msra.mxu0 0
        %989 = vmatprep.subr.bf16.mxu0 0
        %990 = vmatpush1.bf16.msra.mxu0 0
        %991 = vmatprep.subr.bf16.mxu0 0
        %992 = vmatpush1.bf16.msra.mxu0 0
        %993 = vmatprep.subr.bf16.mxu0 0
        %994 = vmatpush1.bf16.msra.mxu0 0
        %995 = vmatprep.subr.bf16.mxu0 0
        %996 = vmatpush1.bf16.msra.mxu0 0
        %997 = vmatprep.subr.bf16.mxu0 0
        %998 = vmatpush1.bf16.msra.mxu0 0
        %999 = vmatprep.subr.bf16.mxu0 0
        %1000 = vmatpush1.bf16.msra.mxu0 0
        %1001 = vmatprep.subr.bf16.mxu0 0
        %1002 = vmatpush1.bf16.msra.mxu0 0
        %1003 = vmatprep.subr.bf16.mxu0 0
        %1004 = vmatpush1.bf16.msra.mxu0 0
        %1005 = vmatprep.mubr.bf16.mxu0 0
        %1006 = vmatmul.mubr.bf16.gmra.mrb[0].mxu0 %v971
        %v1007 = vpop.f32.mrb[0].mxu0
        %v1008 = vadd.f32 0.0, %v1007
        %v1009 = vpop.f32.mrb[0].mxu0
        %v1010 = vpop.f32.mrb[0].mxu0
        %v1011 = vadd.f32 0.0, %v1010
        %v1012 = vpop.f32.mrb[0].mxu0
        %1013 = vdwg.mxu0
        %1014 = vrot.lane.b32.xlu0 %v766, 126
        %v1015 = vpop.permute.xlu0 %1014
        %1016 = vrot.lane.b32.xlu0 %v766, 122
        %v1017 = vpop.permute.xlu0 %1016
        %v1019 = vsel %vm771, %v1015, 0
        %v1022 = vsel %vm771, %v1017, 0
        %1024 = vmatprep.subr.bf16.mxu0 0
        %1025 = vmatpush1.bf16.xpose.msra.mxu0 %v1022
        %1026 = vmatprep.subr.bf16.mxu0 0
        %1027 = vmatpush1.bf16.xpose.msra.mxu0 0
        %1028 = vmatprep.subr.bf16.mxu0 0
        %1029 = vmatpush1.bf16.xpose.msra.mxu0 0
        %1030 = vmatprep.subr.bf16.mxu0 0
        %1031 = vmatpush1.bf16.xpose.msra.mxu0 0
        %1032 = vmatprep.subr.bf16.mxu0 0
        %1033 = vmatpush1.bf16.xpose.msra.mxu0 0
        %1034 = vmatprep.subr.bf16.mxu0 0
        %1035 = vmatpush1.bf16.xpose.msra.mxu0 0
        %1036 = vmatprep.subr.bf16.mxu0 0
        %1037 = vmatpush1.bf16.xpose.msra.mxu0 0
        %1038 = vmatprep.subr.bf16.mxu0 0
        %1039 = vmatpush1.bf16.xpose.msra.mxu0 0
        %1040 = vmatprep.subr.bf16.mxu0 0
        %1041 = vmatpush1.bf16.xpose.msra.mxu0 0
        %1042 = vmatprep.subr.bf16.mxu0 0
        %1043 = vmatpush1.bf16.xpose.msra.mxu0 0
        %1044 = vmatprep.subr.bf16.mxu0 0
        %1045 = vmatpush1.bf16.xpose.msra.mxu0 0
        %1046 = vmatprep.subr.bf16.mxu0 0
        %1047 = vmatpush1.bf16.xpose.msra.mxu0 0
        %1048 = vmatprep.subr.bf16.mxu0 0
        %1049 = vmatpush1.bf16.xpose.msra.mxu0 0
        %1050 = vmatprep.subr.bf16.mxu0 0
        %1051 = vmatpush1.bf16.xpose.msra.mxu0 0
        %1052 = vmatprep.subr.bf16.mxu0 0
        %1053 = vmatpush1.bf16.xpose.msra.mxu0 0
        %1054 = vmatprep.subr.bf16.mxu0 0
        %1055 = vmatpush1.bf16.xpose.msra.mxu0 0
        %1056 = vmatprep.mubr.bf16.mxu0 0
        %1057 = vmatmul.mubr.bf16.gmra.mrb[0].mxu0 %v1019
        %v1058 = vpop.f32.mrb[0].mxu0
        %v1059 = vadd.f32 0.0, %v1058
        %v1060 = vpop.f32.mrb[0].mxu0
        %v1061 = vpop.f32.mrb[0].mxu0
        %v1062 = vadd.f32 0.0, %v1061
        %v1063 = vpop.f32.mrb[0].mxu0
        %1064 = vdwg.mxu0
        %1065 = vrot.lane.b32.xlu0 %v767, 126
        %v1066 = vpop.permute.xlu0 %1065
        %1067 = vrot.lane.b32.xlu0 %v767, 122
        %v1068 = vpop.permute.xlu0 %1067
        %v1070 = vsel %vm771, %v1066, 0
        %v1073 = vsel %vm771, %v1068, 0
        %1075 = vmatprep.subr.bf16.mxu0 0
        %1076 = vmatpush1.bf16.xpose.msra.mxu0 %v1073
        %1077 = vmatprep.subr.bf16.mxu0 0
        %1078 = vmatpush1.bf16.xpose.msra.mxu0 0
        %1079 = vmatprep.subr.bf16.mxu0 0
        %1080 = vmatpush1.bf16.xpose.msra.mxu0 0
        %1081 = vmatprep.subr.bf16.mxu0 0
        %1082 = vmatpush1.bf16.xpose.msra.mxu0 0
        %1083 = vmatprep.subr.bf16.mxu0 0
        %1084 = vmatpush1.bf16.xpose.msra.mxu0 0
        %1085 = vmatprep.subr.bf16.mxu0 0
        %1086 = vmatpush1.bf16.xpose.msra.mxu0 0
        %1087 = vmatprep.subr.bf16.mxu0 0
        %1088 = vmatpush1.bf16.xpose.msra.mxu0 0
        %1089 = vmatprep.subr.bf16.mxu0 0
        %1090 = vmatpush1.bf16.xpose.msra.mxu0 0
        %1091 = vmatprep.subr.bf16.mxu0 0
        %1092 = vmatpush1.bf16.xpose.msra.mxu0 0
        %1093 = vmatprep.subr.bf16.mxu0 0
        %1094 = vmatpush1.bf16.xpose.msra.mxu0 0
        %1095 = vmatprep.subr.bf16.mxu0 0
        %1096 = vmatpush1.bf16.xpose.msra.mxu0 0
        %1097 = vmatprep.subr.bf16.mxu0 0
        %1098 = vmatpush1.bf16.xpose.msra.mxu0 0
        %1099 = vmatprep.subr.bf16.mxu0 0
        %1100 = vmatpush1.bf16.xpose.msra.mxu0 0
        %1101 = vmatprep.subr.bf16.mxu0 0
        %1102 = vmatpush1.bf16.xpose.msra.mxu0 0
        %1103 = vmatprep.subr.bf16.mxu0 0
        %1104 = vmatpush1.bf16.xpose.msra.mxu0 0
        %1105 = vmatprep.subr.bf16.mxu0 0
        %1106 = vmatpush1.bf16.xpose.msra.mxu0 0
        %1107 = vmatprep.mubr.bf16.mxu0 0
        %1108 = vmatmul.mubr.bf16.gmra.mrb[0].mxu0 %v1070
        %v1109 = vpop.f32.mrb[0].mxu0
        %v1110 = vadd.f32 0.0, %v1109
        %v1111 = vpop.f32.mrb[0].mxu0
        %v1112 = vpop.f32.mrb[0].mxu0
        %v1113 = vadd.f32 0.0, %v1112
        %v1114 = vpop.f32.mrb[0].mxu0
        %1115 = vdwg.mxu0
        %v1116 = vmul.f32 %v1059, 0.70710677
        %v1117 = vmul.f32 %v1062, 0.70710677
        %v1118 = vmul.f32 %v1110, 0.70710677
        %v1119 = vmul.f32 %v1113, 0.70710677
        %v1120 = vsel %vm873, %v1116, -inf
        %1121 = vmax.xlane.f32.xlu0 %v1120
        %v1122 = vpop.xlane.xlu0 %1121
        %v1123 = vsel %vm873, %v1117, -inf
        %1124 = vmax.xlane.f32.xlu0 %v1123
        %v1125 = vpop.xlane.xlu0 %1124
        %v1126 = vsel %vm873, %v1118, -inf
        %1127 = vmax.xlane.f32.xlu0 %v1126
        %v1128 = vpop.xlane.xlu0 %1127
        %v1129 = vsel %vm873, %v1119, -inf
        %1130 = vmax.xlane.f32.xlu0 %v1129
        %v1131 = vpop.xlane.xlu0 %1130
        %v1132 = vsub.f32 %v1116, %v1122
        %v1133 = vsub.f32 %v1117, %v1125
        %v1134 = vsub.f32 %v1118, %v1128
        %v1135 = vsub.f32 %v1119, %v1131
        %v1136 = vmul.f32 %v1132, 1.442695
        %v1137 = vpow.pop %v1136
        %v1138 = vmul.f32 %v1133, 1.442695
        %v1139 = vpow.pop %v1138
        %v1140 = vmul.f32 %v1134, 1.442695
        %v1141 = vpow.pop %v1140
        %v1142 = vmul.f32 %v1135, 1.442695
        %v1143 = vpow.pop %v1142
        %v1144 = vsel %vm873, %v1137, 0.0
        %1145 = vadd.xlane.f32.xlu0 %v1144
        %v1146 = vpop.xlane.xlu0 %1145
        %v1147 = vsel %vm873, %v1139, 0.0
        %1148 = vadd.xlane.f32.xlu0 %v1147
        %v1149 = vpop.xlane.xlu0 %1148
        %v1150 = vsel %vm873, %v1141, 0.0
        %1151 = vadd.xlane.f32.xlu0 %v1150
        %v1152 = vpop.xlane.xlu0 %1151
        %v1153 = vsel %vm873, %v1143, 0.0
        %1154 = vadd.xlane.f32.xlu0 %v1153
        %v1155 = vpop.xlane.xlu0 %1154
        %v1156 = vrcp.pop %v1146
        %v1157 = vrcp.pop %v1149
        %v1158 = vrcp.pop %v1152
        %v1159 = vrcp.pop %v1155
        %v1160 = vmul.f32 %v1137, %v1156
        %v1161 = vmul.f32 %v1139, %v1157
        %v1162 = vmul.f32 %v1141, %v1158
        %v1163 = vmul.f32 %v1143, %v1159
        %v1164 = vpack.c.bf16 %v1161, %v1160
        %v1165 = vpack.c.bf16 %v1163, %v1162
        %1166 = vrot.lane.b32.xlu0 %v766, 118
        %v1167 = vpop.permute.xlu0 %1166
        %v1170 = vsel %vm873, %v1164, 0
        %1172 = vmatprep.subr.bf16.mxu0 0
        %1173 = vmatpush1.bf16.msra.mxu0 %v1167
        %1174 = vmatprep.subr.bf16.mxu0 0
        %1175 = vmatpush1.bf16.msra.mxu0 0
        %1176 = vmatprep.subr.bf16.mxu0 0
        %1177 = vmatpush1.bf16.msra.mxu0 0
        %1178 = vmatprep.subr.bf16.mxu0 0
        %1179 = vmatpush1.bf16.msra.mxu0 0
        %1180 = vmatprep.subr.bf16.mxu0 0
        %1181 = vmatpush1.bf16.msra.mxu0 0
        %1182 = vmatprep.subr.bf16.mxu0 0
        %1183 = vmatpush1.bf16.msra.mxu0 0
        %1184 = vmatprep.subr.bf16.mxu0 0
        %1185 = vmatpush1.bf16.msra.mxu0 0
        %1186 = vmatprep.subr.bf16.mxu0 0
        %1187 = vmatpush1.bf16.msra.mxu0 0
        %1188 = vmatprep.subr.bf16.mxu0 0
        %1189 = vmatpush1.bf16.msra.mxu0 0
        %1190 = vmatprep.subr.bf16.mxu0 0
        %1191 = vmatpush1.bf16.msra.mxu0 0
        %1192 = vmatprep.subr.bf16.mxu0 0
        %1193 = vmatpush1.bf16.msra.mxu0 0
        %1194 = vmatprep.subr.bf16.mxu0 0
        %1195 = vmatpush1.bf16.msra.mxu0 0
        %1196 = vmatprep.subr.bf16.mxu0 0
        %1197 = vmatpush1.bf16.msra.mxu0 0
        %1198 = vmatprep.subr.bf16.mxu0 0
        %1199 = vmatpush1.bf16.msra.mxu0 0
        %1200 = vmatprep.subr.bf16.mxu0 0
        %1201 = vmatpush1.bf16.msra.mxu0 0
        %1202 = vmatprep.subr.bf16.mxu0 0
        %1203 = vmatpush1.bf16.msra.mxu0 0
        %1204 = vmatprep.mubr.bf16.mxu0 0
        %1205 = vmatmul.mubr.bf16.gmra.mrb[0].mxu0 %v1170
        %v1206 = vpop.f32.mrb[0].mxu0
        %v1207 = vadd.f32 0.0, %v1206
        %v1208 = vpop.f32.mrb[0].mxu0
        %v1209 = vpop.f32.mrb[0].mxu0
        %v1210 = vadd.f32 0.0, %v1209
        %v1211 = vpop.f32.mrb[0].mxu0
        %1212 = vdwg.mxu0
        %1213 = vrot.lane.b32.xlu0 %v767, 118
        %v1214 = vpop.permute.xlu0 %1213
        %v1217 = vsel %vm873, %v1165, 0
        %1219 = vmatprep.subr.bf16.mxu0 0
        %1220 = vmatpush1.bf16.msra.mxu0 %v1214
        %1221 = vmatprep.subr.bf16.mxu0 0
        %1222 = vmatpush1.bf16.msra.mxu0 0
        %1223 = vmatprep.subr.bf16.mxu0 0
        %1224 = vmatpush1.bf16.msra.mxu0 0
        %1225 = vmatprep.subr.bf16.mxu0 0
        %1226 = vmatpush1.bf16.msra.mxu0 0
        %1227 = vmatprep.subr.bf16.mxu0 0
        %1228 = vmatpush1.bf16.msra.mxu0 0
        %1229 = vmatprep.subr.bf16.mxu0 0
        %1230 = vmatpush1.bf16.msra.mxu0 0
        %1231 = vmatprep.subr.bf16.mxu0 0
        %1232 = vmatpush1.bf16.msra.mxu0 0
        %1233 = vmatprep.subr.bf16.mxu0 0
        %1234 = vmatpush1.bf16.msra.mxu0 0
        %1235 = vmatprep.subr.bf16.mxu0 0
        %1236 = vmatpush1.bf16.msra.mxu0 0
        %1237 = vmatprep.subr.bf16.mxu0 0
        %1238 = vmatpush1.bf16.msra.mxu0 0
        %1239 = vmatprep.subr.bf16.mxu0 0
        %1240 = vmatpush1.bf16.msra.mxu0 0
        %1241 = vmatprep.subr.bf16.mxu0 0
        %1242 = vmatpush1.bf16.msra.mxu0 0
        %1243 = vmatprep.subr.bf16.mxu0 0
        %1244 = vmatpush1.bf16.msra.mxu0 0
        %1245 = vmatprep.subr.bf16.mxu0 0
        %1246 = vmatpush1.bf16.msra.mxu0 0
        %1247 = vmatprep.subr.bf16.mxu0 0
        %1248 = vmatpush1.bf16.msra.mxu0 0
        %1249 = vmatprep.subr.bf16.mxu0 0
        %1250 = vmatpush1.bf16.msra.mxu0 0
        %1251 = vmatprep.mubr.bf16.mxu0 0
        %1252 = vmatmul.mubr.bf16.gmra.mrb[0].mxu0 %v1217
        %v1253 = vpop.f32.mrb[0].mxu0
        %v1254 = vadd.f32 0.0, %v1253
        %v1255 = vpop.f32.mrb[0].mxu0
        %v1256 = vpop.f32.mrb[0].mxu0
        %v1257 = vadd.f32 0.0, %v1256
        %v1258 = vpop.f32.mrb[0].mxu0
        %1259 = vdwg.mxu0
        %1264 = vrot.lane.b32.xlu0 %v1207, 2
        %v1265 = vpop.permute.xlu0 %1264
        %1266 = vrot.lane.b32.xlu0 %v1210, 2
        %v1267 = vpop.permute.xlu0 %1266
        %1268 = vrot.lane.b32.xlu0 %v1254, 2
        %v1269 = vpop.permute.xlu0 %1268
        %1270 = vrot.lane.b32.xlu0 %v1257, 2
        %v1271 = vpop.permute.xlu0 %1270
        %v1276 = vsel %vm771, %v961, %v1265
        %v1277 = vsel %vm771, %v964, %v1267
        %v1278 = vsel %vm771, %v1008, %v1269
        %v1279 = vsel %vm771, %v1011, %v1271
        %v1280 = vpack.c.bf16 %v1277, %v1276
        %v1281 = vpack.c.bf16 %v1279, %v1278
        %v1284 = vunpack.c.l.s4 1983009808
        %v1285 = vunpack.c.0.s8 %v1284
        %v1286 = vlaneseq
        %v1287 = vshrl.u32 %v1286, 7
        %v1288 = vsub.s32 %v1285, %v1287
        %v1289 = vrot.slane %v696, %v1288
        %1290 = vrot.lane.b32.xlu0 %v1289, 116
        %v1291 = vpop.permute.xlu0 %1290
        %1292 = vrot.lane.b32.xlu0 %v704, 116
        %v1293 = vpop.permute.xlu0 %1292
        %v1296 = vsel %vm706, %v1280, 0
        %v1299 = vsel %vm706, %v1281, 0
        %v1302 = vsel %vm713, %v1291, 0
        %1304 = vmatprep.subr.bf16.mxu0 0
        %1305 = vmatpush1.bf16.msra.mxu0 %v1302
        %1306 = vmatprep.subr.bf16.mxu0 0
        %1307 = vmatpush1.bf16.msra.mxu0 0
        %1308 = vmatprep.subr.bf16.mxu0 0
        %1309 = vmatpush1.bf16.msra.mxu0 0
        %1310 = vmatprep.subr.bf16.mxu0 0
        %1311 = vmatpush1.bf16.msra.mxu0 0
        %1312 = vmatprep.subr.bf16.mxu0 0
        %1313 = vmatpush1.bf16.msra.mxu0 0
        %1314 = vmatprep.subr.bf16.mxu0 0
        %1315 = vmatpush1.bf16.msra.mxu0 0
        %1316 = vmatprep.subr.bf16.mxu0 0
        %1317 = vmatpush1.bf16.msra.mxu0 0
        %1318 = vmatprep.subr.bf16.mxu0 0
        %1319 = vmatpush1.bf16.msra.mxu0 0
        %1320 = vmatprep.subr.bf16.mxu0 0
        %1321 = vmatpush1.bf16.msra.mxu0 0
        %1322 = vmatprep.subr.bf16.mxu0 0
        %1323 = vmatpush1.bf16.msra.mxu0 0
        %1324 = vmatprep.subr.bf16.mxu0 0
        %1325 = vmatpush1.bf16.msra.mxu0 0
        %1326 = vmatprep.subr.bf16.mxu0 0
        %1327 = vmatpush1.bf16.msra.mxu0 0
        %1328 = vmatprep.subr.bf16.mxu0 0
        %1329 = vmatpush1.bf16.msra.mxu0 0
        %1330 = vmatprep.subr.bf16.mxu0 0
        %1331 = vmatpush1.bf16.msra.mxu0 0
        %1332 = vmatprep.subr.bf16.mxu0 0
        %1333 = vmatpush1.bf16.msra.mxu0 0
        %1334 = vmatprep.subr.bf16.mxu0 0
        %1335 = vmatpush1.bf16.msra.mxu0 0
        %1336 = vmatprep.mubr.bf16.mxu0 0
        %1337 = vmatmul.mubr.bf16.gmra.mrb[0].mxu0 %v1296
        %v1338 = vpop.f32.mrb[0].mxu0
        %v1339 = vadd.f32 %v1293, %v1338
        %v1340 = vpop.f32.mrb[0].mxu0
        %v1341 = vpop.f32.mrb[0].mxu0
        %v1342 = vadd.f32 %v1293, %v1341
        %v1343 = vpop.f32.mrb[0].mxu0
        %1344 = vmatprep.mubr.bf16.mxu0 0
        %1345 = vmatmul.mubr.bf16.gmra.mrb[0].mxu0 %v1299
        %v1346 = vpop.f32.mrb[0].mxu0
        %v1347 = vadd.f32 %v1293, %v1346
        %v1348 = vpop.f32.mrb[0].mxu0
        %v1349 = vpop.f32.mrb[0].mxu0
        %v1350 = vadd.f32 %v1293, %v1349
        %v1351 = vpop.f32.mrb[0].mxu0
        %1352 = vdwg.mxu0
        %v1353 = vadd.f32 %v690, %v1339
        %v1354 = vadd.f32 %v691, %v1342
        %v1355 = vadd.f32 %v692, %v1347
        %v1356 = vadd.f32 %v693, %v1350
        %v1357 = vsel %vm706, %v1353, 0.0
        %1358 = vadd.xlane.f32.xlu0 %v1357
        %v1359 = vpop.xlane.xlu0 %1358
        %v1360 = vsel %vm706, %v1354, 0.0
        %1361 = vadd.xlane.f32.xlu0 %v1360
        %v1362 = vpop.xlane.xlu0 %1361
        %v1363 = vsel %vm706, %v1355, 0.0
        %1364 = vadd.xlane.f32.xlu0 %v1363
        %v1365 = vpop.xlane.xlu0 %1364
        %v1366 = vsel %vm706, %v1356, 0.0
        %1367 = vadd.xlane.f32.xlu0 %v1366
        %v1368 = vpop.xlane.xlu0 %1367
        %v1369 = vrcp.pop 4.0
        %v1370 = vmul.f32 %v1359, %v1369
        %v1371 = vmul.f32 %v1362, %v1369
        %v1372 = vmul.f32 %v1365, %v1369
        %v1373 = vmul.f32 %v1368, %v1369
        %v1374 = vsub.f32 %v1353, %v1370
        %v1375 = vsub.f32 %v1354, %v1371
        %v1376 = vsub.f32 %v1355, %v1372
        %v1377 = vsub.f32 %v1356, %v1373
        %v1378 = vmul.f32 %v1374, %v1374
        %v1379 = vmul.f32 %v1375, %v1375
        %v1380 = vmul.f32 %v1376, %v1376
        %v1381 = vmul.f32 %v1377, %v1377
        %v1382 = vsel %vm706, %v1378, 0.0
        %1383 = vadd.xlane.f32.xlu0 %v1382
        %v1384 = vpop.xlane.xlu0 %1383
        %v1385 = vsel %vm706, %v1379, 0.0
        %1386 = vadd.xlane.f32.xlu0 %v1385
        %v1387 = vpop.xlane.xlu0 %1386
        %v1388 = vsel %vm706, %v1380, 0.0
        %1389 = vadd.xlane.f32.xlu0 %v1388
        %v1390 = vpop.xlane.xlu0 %1389
        %v1391 = vsel %vm706, %v1381, 0.0
        %1392 = vadd.xlane.f32.xlu0 %v1391
        %v1393 = vpop.xlane.xlu0 %1392
        %v1394 = vmul.f32 %v1384, %v1369
        %v1395 = vmul.f32 %v1387, %v1369
        %v1396 = vmul.f32 %v1390, %v1369
        %v1397 = vmul.f32 %v1393, %v1369
        %v1398 = vadd.f32 %v1394, 1e-05
        %v1399 = vadd.f32 %v1395, 1e-05
        %v1400 = vadd.f32 %v1396, 1e-05
        %v1401 = vadd.f32 %v1397, 1e-05
        %v1402 = vrsqrt.pop %v1398
        %v1403 = vrsqrt.pop %v1399
        %v1404 = vrsqrt.pop %v1400
        %v1405 = vrsqrt.pop %v1401
        %v1406 = vmul.f32 %v1374, %v1402
        %v1407 = vmul.f32 %v1375, %v1403
        %v1408 = vmul.f32 %v1376, %v1404
        %v1409 = vmul.f32 %v1377, %v1405
        %1410 = vrot.lane.b32.xlu0 %v704, 92
        %v1411 = vpop.permute.xlu0 %1410
        %v1413 = vmul.f32 %v1406, %v1411
        %v1414 = vmul.f32 %v1407, %v1411
        %v1415 = vmul.f32 %v1408, %v1411
        %v1416 = vmul.f32 %v1409, %v1411
        %1417 = vrot.lane.b32.xlu0 %v704, 88
        %v1418 = vpop.permute.xlu0 %1417
        %v1420 = vadd.f32 %v1413, %v1418
        %v1421 = vadd.f32 %v1414, %v1418
        %v1422 = vadd.f32 %v1415, %v1418
        %v1423 = vadd.f32 %v1416, %v1418
        %v1424 = vpack.c.bf16 %v1421, %v1420
        %v1425 = vpack.c.bf16 %v1423, %v1422
        %1426 = vrot.lane.b32.xlu0 %v1289, 112
        %v1427 = vpop.permute.xlu0 %1426
        %1428 = vrot.lane.b32.xlu0 %v704, 112
        %v1429 = vpop.permute.xlu0 %1428
        %v1432 = vsel %vm706, %v1424, 0
        %v1435 = vsel %vm706, %v1425, 0
        %v1438 = vsel %vm713, %v1427, 0
        %1440 = vmatprep.subr.bf16.mxu0 0
        %1441 = vmatpush1.bf16.msra.mxu0 %v1438
        %1442 = vmatprep.subr.bf16.mxu0 0
        %1443 = vmatpush1.bf16.msra.mxu0 0
        %1444 = vmatprep.subr.bf16.mxu0 0
        %1445 = vmatpush1.bf16.msra.mxu0 0
        %1446 = vmatprep.subr.bf16.mxu0 0
        %1447 = vmatpush1.bf16.msra.mxu0 0
        %1448 = vmatprep.subr.bf16.mxu0 0
        %1449 = vmatpush1.bf16.msra.mxu0 0
        %1450 = vmatprep.subr.bf16.mxu0 0
        %1451 = vmatpush1.bf16.msra.mxu0 0
        %1452 = vmatprep.subr.bf16.mxu0 0
        %1453 = vmatpush1.bf16.msra.mxu0 0
        %1454 = vmatprep.subr.bf16.mxu0 0
        %1455 = vmatpush1.bf16.msra.mxu0 0
        %1456 = vmatprep.subr.bf16.mxu0 0
        %1457 = vmatpush1.bf16.msra.mxu0 0
        %1458 = vmatprep.subr.bf16.mxu0 0
        %1459 = vmatpush1.bf16.msra.mxu0 0
        %1460 = vmatprep.subr.bf16.mxu0 0
        %1461 = vmatpush1.bf16.msra.mxu0 0
        %1462 = vmatprep.subr.bf16.mxu0 0
        %1463 = vmatpush1.bf16.msra.mxu0 0
        %1464 = vmatprep.subr.bf16.mxu0 0
        %1465 = vmatpush1.bf16.msra.mxu0 0
        %1466 = vmatprep.subr.bf16.mxu0 0
        %1467 = vmatpush1.bf16.msra.mxu0 0
        %1468 = vmatprep.subr.bf16.mxu0 0
        %1469 = vmatpush1.bf16.msra.mxu0 0
        %1470 = vmatprep.subr.bf16.mxu0 0
        %1471 = vmatpush1.bf16.msra.mxu0 0
        %1472 = vmatprep.mubr.bf16.mxu0 0
        %1473 = vmatmul.mubr.bf16.gmra.mrb[0].mxu0 %v1432
        %v1474 = vpop.f32.mrb[0].mxu0
        %v1475 = vadd.f32 %v1429, %v1474
        %v1476 = vpop.f32.mrb[0].mxu0
        %v1477 = vpop.f32.mrb[0].mxu0
        %v1478 = vadd.f32 %v1429, %v1477
        %v1479 = vpop.f32.mrb[0].mxu0
        %1480 = vmatprep.mubr.bf16.mxu0 0
        %1481 = vmatmul.mubr.bf16.gmra.mrb[0].mxu0 %v1435
        %v1482 = vpop.f32.mrb[0].mxu0
        %v1483 = vadd.f32 %v1429, %v1482
        %v1484 = vpop.f32.mrb[0].mxu0
        %v1485 = vpop.f32.mrb[0].mxu0
        %v1486 = vadd.f32 %v1429, %v1485
        %v1487 = vpop.f32.mrb[0].mxu0
        %1488 = vdwg.mxu0
        %v1489 = vmax.f32 %v1475, 0.0
        %v1490 = vmax.f32 %v1478, 0.0
        %v1491 = vmax.f32 %v1483, 0.0
        %v1492 = vmax.f32 %v1486, 0.0
        %v1493 = vpack.c.bf16 %v1490, %v1489
        %v1494 = vpack.c.bf16 %v1492, %v1491
        %v1497 = vunpack.c.l.b16 %v697
        %v1498 = vunpack.c.l.b16 %v698
        %v1499 = vpack.c.b16 %v1498, %v1497
        %1501 = vrot.lane.b32.xlu0 %v704, 96
        %v1502 = vpop.permute.xlu0 %1501
        %v1505 = vsel %vm873, %v1493, 0
        %v1508 = vsel %vm873, %v1494, 0
        %1510 = vmatprep.subr.bf16.mxu0 0
        %1511 = vmatpush1.bf16.msra.mxu0 %v1499
        %1512 = vmatprep.subr.bf16.mxu0 0
        %1513 = vmatpush1.bf16.msra.mxu0 0
        %1514 = vmatprep.subr.bf16.mxu0 0
        %1515 = vmatpush1.bf16.msra.mxu0 0
        %1516 = vmatprep.subr.bf16.mxu0 0
        %1517 = vmatpush1.bf16.msra.mxu0 0
        %1518 = vmatprep.subr.bf16.mxu0 0
        %1519 = vmatpush1.bf16.msra.mxu0 0
        %1520 = vmatprep.subr.bf16.mxu0 0
        %1521 = vmatpush1.bf16.msra.mxu0 0
        %1522 = vmatprep.subr.bf16.mxu0 0
        %1523 = vmatpush1.bf16.msra.mxu0 0
        %1524 = vmatprep.subr.bf16.mxu0 0
        %1525 = vmatpush1.bf16.msra.mxu0 0
        %1526 = vmatprep.subr.bf16.mxu0 0
        %1527 = vmatpush1.bf16.msra.mxu0 0
        %1528 = vmatprep.subr.bf16.mxu0 0
        %1529 = vmatpush1.bf16.msra.mxu0 0
        %1530 = vmatprep.subr.bf16.mxu0 0
        %1531 = vmatpush1.bf16.msra.mxu0 0
        %1532 = vmatprep.subr.bf16.mxu0 0
        %1533 = vmatpush1.bf16.msra.mxu0 0
        %1534 = vmatprep.subr.bf16.mxu0 0
        %1535 = vmatpush1.bf16.msra.mxu0 0
        %1536 = vmatprep.subr.bf16.mxu0 0
        %1537 = vmatpush1.bf16.msra.mxu0 0
        %1538 = vmatprep.subr.bf16.mxu0 0
        %1539 = vmatpush1.bf16.msra.mxu0 0
        %1540 = vmatprep.subr.bf16.mxu0 0
        %1541 = vmatpush1.bf16.msra.mxu0 0
        %1542 = vmatprep.mubr.bf16.mxu0 0
        %1543 = vmatmul.mubr.bf16.gmra.mrb[0].mxu0 %v1505
        %v1544 = vpop.f32.mrb[0].mxu0
        %v1545 = vadd.f32 %v1502, %v1544
        %v1546 = vpop.f32.mrb[0].mxu0
        %v1547 = vpop.f32.mrb[0].mxu0
        %v1548 = vadd.f32 %v1502, %v1547
        %v1549 = vpop.f32.mrb[0].mxu0
        %1550 = vmatprep.mubr.bf16.mxu0 0
        %1551 = vmatmul.mubr.bf16.gmra.mrb[0].mxu0 %v1508
        %v1552 = vpop.f32.mrb[0].mxu0
        %v1553 = vadd.f32 %v1502, %v1552
        %v1554 = vpop.f32.mrb[0].mxu0
        %v1555 = vpop.f32.mrb[0].mxu0
        %v1556 = vadd.f32 %v1502, %v1555
        %v1557 = vpop.f32.mrb[0].mxu0
        %1558 = vdwg.mxu0
        %v1559 = vadd.f32 %v1420, %v1545
        %v1560 = vadd.f32 %v1421, %v1548
        %v1561 = vadd.f32 %v1422, %v1553
        %v1562 = vadd.f32 %v1423, %v1556
        %v1563 = vsel %vm706, %v1559, 0.0
        %1564 = vadd.xlane.f32.xlu0 %v1563
        %v1565 = vpop.xlane.xlu0 %1564
        %v1566 = vsel %vm706, %v1560, 0.0
        %1567 = vadd.xlane.f32.xlu0 %v1566
        %v1568 = vpop.xlane.xlu0 %1567
        %v1569 = vsel %vm706, %v1561, 0.0
        %1570 = vadd.xlane.f32.xlu0 %v1569
        %v1571 = vpop.xlane.xlu0 %1570
        %v1572 = vsel %vm706, %v1562, 0.0
        %1573 = vadd.xlane.f32.xlu0 %v1572
        %v1574 = vpop.xlane.xlu0 %1573
        %v1575 = vmul.f32 %v1565, %v1369
        %v1576 = vmul.f32 %v1568, %v1369
        %v1577 = vmul.f32 %v1571, %v1369
        %v1578 = vmul.f32 %v1574, %v1369
        %v1579 = vsub.f32 %v1559, %v1575
        %v1580 = vsub.f32 %v1560, %v1576
        %v1581 = vsub.f32 %v1561, %v1577
        %v1582 = vsub.f32 %v1562, %v1578
        %v1583 = vmul.f32 %v1579, %v1579
        %v1584 = vmul.f32 %v1580, %v1580
        %v1585 = vmul.f32 %v1581, %v1581
        %v1586 = vmul.f32 %v1582, %v1582
        %v1587 = vsel %vm706, %v1583, 0.0
        %1588 = vadd.xlane.f32.xlu0 %v1587
        %v1589 = vpop.xlane.xlu0 %1588
        %v1590 = vsel %vm706, %v1584, 0.0
        %1591 = vadd.xlane.f32.xlu0 %v1590
        %v1592 = vpop.xlane.xlu0 %1591
        %v1593 = vsel %vm706, %v1585, 0.0
        %1594 = vadd.xlane.f32.xlu0 %v1593
        %v1595 = vpop.xlane.xlu0 %1594
        %v1596 = vsel %vm706, %v1586, 0.0
        %1597 = vadd.xlane.f32.xlu0 %v1596
        %v1598 = vpop.xlane.xlu0 %1597
        %v1599 = vmul.f32 %v1589, %v1369
        %v1600 = vmul.f32 %v1592, %v1369
        %v1601 = vmul.f32 %v1595, %v1369
        %v1602 = vmul.f32 %v1598, %v1369
        %v1603 = vadd.f32 %v1599, 1e-05
        %v1604 = vadd.f32 %v1600, 1e-05
        %v1605 = vadd.f32 %v1601, 1e-05
        %v1606 = vadd.f32 %v1602, 1e-05
        %v1607 = vrsqrt.pop %v1603
        %v1608 = vrsqrt.pop %v1604
        %v1609 = vrsqrt.pop %v1605
        %v1610 = vrsqrt.pop %v1606
        %v1611 = vmul.f32 %v1579, %v1607
        %v1612 = vmul.f32 %v1580, %v1608
        %v1613 = vmul.f32 %v1581, %v1609
        %v1614 = vmul.f32 %v1582, %v1610
        %1615 = vrot.lane.b32.xlu0 %v704, 84
        %v1616 = vpop.permute.xlu0 %1615
        %v1618 = vmul.f32 %v1611, %v1616
        %v1619 = vmul.f32 %v1612, %v1616
        %v1620 = vmul.f32 %v1613, %v1616
        %v1621 = vmul.f32 %v1614, %v1616
        %1622 = vrot.lane.b32.xlu0 %v704, 80
        %v1623 = vpop.permute.xlu0 %1622
        %v1625 = vadd.f32 %v1618, %v1623
        %v1626 = vadd.f32 %v1619, %v1623
        %v1627 = vadd.f32 %v1620, %v1623
        %v1628 = vadd.f32 %v1621, %v1623
        %1629 = vst.msk [vmem:[#allocation2] sm:$0xff] %vm706, %v1625
        %1630 = vst.msk [vmem:[#allocation2 + $0x8] sm:$0xff] %vm706, %v1626
        %1631 = vst.msk [vmem:[#allocation2 + $0x10] sm:$0xff] %vm706, %v1627
        %1632 = vst.msk [vmem:[#allocation2 + $0x18] sm:$0xff] %vm706, %v1628
        %p1633 = scmp.eq.s32.totalorder %s33, 3
        // Predicated region
        $region89: #{multi_branch_forward.3} parent=71 // pred_check
          %p1634 = pneg %p1633
        $region90: #{multi_branch_forward.3} parent=71 // pred_check_branch
          %1636 = sbr.rel (%p1634) target = $region92
        $region91: #{multi_branch_forward.3} parent=71 // pred_region
          %v1637 = vsel %vm706, %v1625, 0.0
          %v1638 = vsel %vm706, %v1626, 0.0
          %v1639 = vadd.f32 %v1637, %v1638
          %v1640 = vrot.slane %v1639, 4
          %v1641 = vadd.f32 %v1639, %v1640
          %v1642 = vrot.slane %v1641, 2
          %v1643 = vadd.f32 %v1641, %v1642
          %v1644 = vrot.slane %v1643, 1
          %v1645 = vadd.f32 %v1643, %v1644
          %v1646 = vsel %vm706, %v1627, 0.0
          %v1647 = vsel %vm706, %v1628, 0.0
          %v1648 = vadd.f32 %v1646, %v1647
          %v1649 = vrot.slane %v1648, 4
          %v1650 = vadd.f32 %v1648, %v1649
          %v1651 = vrot.slane %v1650, 2
          %v1652 = vadd.f32 %v1650, %v1651
          %v1653 = vrot.slane %v1652, 1
          %v1654 = vadd.f32 %v1652, %v1653
          %v1655 = vrcp.pop 16.0
          %v1656 = vmul.f32 %v1645, %v1655
          %v1657 = vmul.f32 %v1654, %v1655
          %v1658 = vld [vmem:[%s9] sm:$0xf]
          %v1659 = vld [vmem:[%s10] sm:$0x1]
          %v1661 = vlaneseq
          %v1662 = vshrl.u32 %v1661, 7
          %v1663 = vsub.s32 0, %v1662
          %v1664 = vrot.slane %v1659, %v1663
          %vm1668 = vcmask 1041409
          %v1669 = vsel %vm1668, %v1657, %v1656
          %v1670 = vsel %vm706, %v1669, 0
          %vm1672 = vcmask 1043456
          %v1674 = vsel %vm1672, %v1658, 0
          %1676 = vmatprep.subr.mxu0 0.0
          %1677 = vmatpush1.msra.mxu0 %v1674
          %1678 = vmatprep.subr.mxu0 0.0
          %1679 = vmatpush1.msra.mxu0 0.0
          %1680 = vmatprep.subr.mxu0 0.0
          %1681 = vmatpush1.msra.mxu0 0.0
          %1682 = vmatprep.subr.mxu0 0.0
          %1683 = vmatpush1.msra.mxu0 0.0
          %1684 = vmatprep.subr.mxu0 0.0
          %1685 = vmatpush1.msra.mxu0 0.0
          %1686 = vmatprep.subr.mxu0 0.0
          %1687 = vmatpush1.msra.mxu0 0.0
          %1688 = vmatprep.subr.mxu0 0.0
          %1689 = vmatpush1.msra.mxu0 0.0
          %1690 = vmatprep.subr.mxu0 0.0
          %1691 = vmatpush1.msra.mxu0 0.0
          %1692 = vmatprep.subr.mxu0 0.0
          %1693 = vmatpush1.msra.mxu0 0.0
          %1694 = vmatprep.subr.mxu0 0.0
          %1695 = vmatpush1.msra.mxu0 0.0
          %1696 = vmatprep.subr.mxu0 0.0
          %1697 = vmatpush1.msra.mxu0 0.0
          %1698 = vmatprep.subr.mxu0 0.0
          %1699 = vmatpush1.msra.mxu0 0.0
          %1700 = vmatprep.subr.mxu0 0.0
          %1701 = vmatpush1.msra.mxu0 0.0
          %1702 = vmatprep.subr.mxu0 0.0
          %1703 = vmatpush1.msra.mxu0 0.0
          %1704 = vmatprep.subr.mxu0 0.0
          %1705 = vmatpush1.msra.mxu0 0.0
          %1706 = vmatprep.subr.mxu0 0.0
          %1707 = vmatpush1.msra.mxu0 0.0
          %1708 = vmatprep.subr.mxu0 0.0
          %1709 = vmatpush1.msra.mxu0 0.0
          %1710 = vmatprep.subr.mxu0 0.0
          %1711 = vmatpush1.msra.mxu0 0.0
          %1712 = vmatprep.subr.mxu0 0.0
          %1713 = vmatpush1.msra.mxu0 0.0
          %1714 = vmatprep.subr.mxu0 0.0
          %1715 = vmatpush1.msra.mxu0 0.0
          %1716 = vmatprep.subr.mxu0 0.0
          %1717 = vmatpush1.msra.mxu0 0.0
          %1718 = vmatprep.subr.mxu0 0.0
          %1719 = vmatpush1.msra.mxu0 0.0
          %1720 = vmatprep.subr.mxu0 0.0
          %1721 = vmatpush1.msra.mxu0 0.0
          %1722 = vmatprep.subr.mxu0 0.0
          %1723 = vmatpush1.msra.mxu0 0.0
          %1724 = vmatprep.subr.mxu0 0.0
          %1725 = vmatpush1.msra.mxu0 0.0
          %1726 = vmatprep.subr.mxu0 0.0
          %1727 = vmatpush1.msra.mxu0 0.0
          %1728 = vmatprep.subr.mxu0 0.0
          %1729 = vmatpush1.msra.mxu0 0.0
          %1730 = vmatprep.subr.mxu0 0.0
          %1731 = vmatpush1.msra.mxu0 0.0
          %1732 = vmatprep.subr.mxu0 0.0
          %1733 = vmatpush1.msra.mxu0 0.0
          %1734 = vmatprep.subr.mxu0 0.0
          %1735 = vmatpush1.msra.mxu0 0.0
          %1736 = vmatprep.subr.mxu0 0.0
          %1737 = vmatpush1.msra.mxu0 0.0
          %1738 = vmatprep.subr.mxu0 0.0
          %1739 = vmatpush1.msra.mxu0 0.0
          %1740 = vmatprep.mubr.f32.mxu0 0.0
          %1741 = vmatmul.mubr.f32.gmra.mrb[0].mxu0 %v1670
          %v1742 = vpop.f32.mrb[0].mxu0
          %v1743 = vadd.f32 %v1664, %v1742
          %v1744 = vpop.f32.mrb[0].mxu0
          %1745 = vdwg.mxu0
          %v1746 = vld [vmem:[%s545] sm:$0x1]
          %s1747 = scalar_lea.vmem %s545, 1
          %v1748 = vld [vmem:[%s1747] sm:$0x1]
          %v1750 = vlaneseq
          %v1751 = vshrl.u32 %v1750, 7
          %v1752 = vsub.s32 0, %v1751
          %v1753 = vrot.slane %v1748, %v1752
          %vm1755 = vcmask 1040384
          %v1756 = vsel %vm1755, %v1746, %v1753
          %s1757 = sld [smem:[#allocation3]]
          %v1758 = vstv %s1757
          %v1759 = vmul.f32 %v1758, %v1756
          %s1760 = sld [smem:[#allocation3 + $0x1]]
          %v1761 = vstv %s1760
          %v1762 = vmul.f32 %v1761, %v1743
          %v1763 = vadd.f32 %v1759, %v1762
          %v1764 = vld [vmem:[%s11] sm:$0xff]
          %v1765 = vld [vmem:[%s11 + $0x8] sm:$0xff]
          %v1766 = vld [vmem:[%s11 + $0x10] sm:$0xff]
          %v1767 = vld [vmem:[%s11 + $0x18] sm:$0xff]
          %v1768 = vld [vmem:[%s11 + $0x20] sm:$0xff]
          %v1769 = vld [vmem:[%s11 + $0x28] sm:$0xff]
          %v1770 = vld [vmem:[%s11 + $0x30] sm:$0xff]
          %v1771 = vld [vmem:[%s11 + $0x38] sm:$0xff]
          %v1772 = vld [vmem:[%s11 + $0x40] sm:$0xff]
          %v1773 = vld [vmem:[%s11 + $0x48] sm:$0xff]
          %v1774 = vld [vmem:[%s11 + $0x50] sm:$0xff]
          %v1775 = vld [vmem:[%s11 + $0x58] sm:$0xff]
          %v1776 = vld [vmem:[%s11 + $0x60] sm:$0xff]
          %v1777 = vld [vmem:[%s11 + $0x68] sm:$0xff]
          %v1778 = vld [vmem:[%s11 + $0x70] sm:$0xff]
          %v1779 = vld [vmem:[%s11 + $0x78] sm:$0xff]
          %v1780 = vld [vmem:[#allocation8] sm:$0x1]
          %v1782 = vlaneseq
          %v1783 = vshrl.u32 %v1782, 7
          %v1784 = vsub.s32 0, %v1783
          %v1785 = vrot.slane %v1780, %v1784
          %1787 = vmatprep.subr.mxu0 0.0
          %1788 = vmatpush1.msra.mxu0 %v1764
          %1789 = vmatprep.subr.mxu0 0.0
          %1790 = vmatpush1.msra.mxu0 %v1765
          %1791 = vmatprep.subr.mxu0 0.0
          %1792 = vmatpush1.msra.mxu0 %v1766
          %1793 = vmatprep.subr.mxu0 0.0
          %1794 = vmatpush1.msra.mxu0 %v1767
          %1795 = vmatprep.subr.mxu0 0.0
          %1796 = vmatpush1.msra.mxu0 %v1768
          %1797 = vmatprep.subr.mxu0 0.0
          %1798 = vmatpush1.msra.mxu0 %v1769
          %1799 = vmatprep.subr.mxu0 0.0
          %1800 = vmatpush1.msra.mxu0 %v1770
          %1801 = vmatprep.subr.mxu0 0.0
          %1802 = vmatpush1.msra.mxu0 %v1771
          %1803 = vmatprep.subr.mxu0 0.0
          %1804 = vmatpush1.msra.mxu0 %v1772
          %1805 = vmatprep.subr.mxu0 0.0
          %1806 = vmatpush1.msra.mxu0 %v1773
          %1807 = vmatprep.subr.mxu0 0.0
          %1808 = vmatpush1.msra.mxu0 %v1774
          %1809 = vmatprep.subr.mxu0 0.0
          %1810 = vmatpush1.msra.mxu0 %v1775
          %1811 = vmatprep.subr.mxu0 0.0
          %1812 = vmatpush1.msra.mxu0 %v1776
          %1813 = vmatprep.subr.mxu0 0.0
          %1814 = vmatpush1.msra.mxu0 %v1777
          %1815 = vmatprep.subr.mxu0 0.0
          %1816 = vmatpush1.msra.mxu0 %v1778
          %1817 = vmatprep.subr.mxu0 0.0
          %1818 = vmatpush1.msra.mxu0 %v1779
          %1819 = vmatprep.subr.mxu0 0.0
          %1820 = vmatpush1.msra.mxu0 0.0
          %1821 = vmatprep.subr.mxu0 0.0
          %1822 = vmatpush1.msra.mxu0 0.0
          %1823 = vmatprep.subr.mxu0 0.0
          %1824 = vmatpush1.msra.mxu0 0.0
          %1825 = vmatprep.subr.mxu0 0.0
          %1826 = vmatpush1.msra.mxu0 0.0
          %1827 = vmatprep.subr.mxu0 0.0
          %1828 = vmatpush1.msra.mxu0 0.0
          %1829 = vmatprep.subr.mxu0 0.0
          %1830 = vmatpush1.msra.mxu0 0.0
          %1831 = vmatprep.subr.mxu0 0.0
          %1832 = vmatpush1.msra.mxu0 0.0
          %1833 = vmatprep.subr.mxu0 0.0
          %1834 = vmatpush1.msra.mxu0 0.0
          %1835 = vmatprep.subr.mxu0 0.0
          %1836 = vmatpush1.msra.mxu0 0.0
          %1837 = vmatprep.subr.mxu0 0.0
          %1838 = vmatpush1.msra.mxu0 0.0
          %1839 = vmatprep.subr.mxu0 0.0
          %1840 = vmatpush1.msra.mxu0 0.0
          %1841 = vmatprep.subr.mxu0 0.0
          %1842 = vmatpush1.msra.mxu0 0.0
          %1843 = vmatprep.subr.mxu0 0.0
          %1844 = vmatpush1.msra.mxu0 0.0
          %1845 = vmatprep.subr.mxu0 0.0
          %1846 = vmatpush1.msra.mxu0 0.0
          %1847 = vmatprep.subr.mxu0 0.0
          %1848 = vmatpush1.msra.mxu0 0.0
          %1849 = vmatprep.subr.mxu0 0.0
          %1850 = vmatpush1.msra.mxu0 0.0
          %1851 = vmatprep.mubr.f32.mxu0 0.0
          %1852 = vmatmul.mubr.f32.gmra.mrb[0].mxu0 %v1763
          %v1853 = vpop.f32.mrb[0].mxu0
          %v1854 = vadd.f32 %v1785, %v1853
          %v1855 = vpop.f32.mrb[0].mxu0
          %1856 = vdwg.mxu0
          %1857 = vst [vmem:[#allocation10] sm:$0x1] %v1854
          %s1858 = scalar_lea.vmem [#allocation10], 1
          %1859 = vst [vmem:[%s1858 - $0x1] sm:$0x2] %v1854
        $region92: #{multi_branch_forward.3} parent=71 // pred_fallthru
          _
        // Predicated region
        $region93: #{multi_branch_forward.3} parent=71 // pred_check
          %p1860 = pneg %p356
        $region94: #{multi_branch_forward.3} parent=71 // pred_check_branch
          %1862 = sbr.rel (%p1860) target = $region96
        $region95: #{multi_branch_forward.3} parent=71 // pred_region
          %s1863 = smul.u32 2, %s32
          %s1865 = ssub.s32 32, 32
          %1866 = vsyncadd [#allocation5], %s1865
          %s1867 = smul.addr %s1863, 16
          %s1868 = scalar_lea.hbm %s13, %s1867
          %s1869 = sshll.u32 [#allocation10], 4
          %s1870 = int_to_ptr.vmem [resolvable:$true] %s1869
          %1875 = dma.vmem_to_hbm [thread:$0]  %s1870, 32, %s1868, [#allocation5], 16, 16, 1
        $region96: #{multi_branch_forward.3} parent=71 // pred_fallthru
          _
        // Predicated region
        $region97: #{multi_branch_forward.3} parent=71 // pred_check
          %p1876 = pneg %p356
        $region98: #{multi_branch_forward.3} parent=71 // pred_check_branch
          %1878 = sbr.rel (%p1876) target = $region100
        $region99: #{multi_branch_forward.3} parent=71 // pred_region
          %1879 = dma.done [#allocation5], 32
        $region100: #{multi_branch_forward.3} parent=71 // pred_fallthru
          _
      $region72: #{multi_branch_forward.3} parent=5 // pred_fallthru
        _
      %p1880 = scmp.le.s32.totalorder 2, %s23
      // Predicated region
      $region101: #{multi_branch_forward.3} parent=5 // pred_check
        %p1881 = pneg %p1880
      $region102: #{multi_branch_forward.3} parent=5 // pred_check_branch
        %1883 = sbr.rel (%p1881) target = $region104
      $region103: #{multi_branch_forward.3} parent=5 // pred_region
        %s1884 = ssub.s32 %s23, 2
      $region104: #{multi_branch_forward.3} parent=5 // pred_fallthru
        _
    $region6: #{multi_branch_forward.3} parent=1 // loop_footer
      %s27 = sadd.s32 1, %s23
    $region7: #{multi_branch_forward.3} parent=1 // loop_footer_branch
      %22 = sbr.rel target = $region3
    $region8: #{multi_branch_forward.3} parent=1 // loop_exit
      _
    %1885 = vsyncpa [#allocation4], 1
    %s1886 = scalar_lea.sflag [#allocation4], 1
    %1887 = vsyncpa %s1886, 1
    %1888 = vsyncpa [#allocation9], 1
    %1889 = vsyncpa [#allocation5], 1
    %s1890 = scalar_lea.sflag [#allocation5], 1
    %1891 = vsyncpa %s1890, 1
    %1892 = vsyncpa [#allocation6], 1
    %s1893 = scalar_lea.sflag [#allocation6], 1
    %1894 = vsyncpa %s1893, 1

</llo_original>
